<compile_context>
chip_gen: v7x
topology: tpu7x:2x2x1
jax: 0.10.0
libtpu: 0.0.40
codegen_flags: <defaults>
</compile_context>

<pallas_src>
import functools

import jax
import jax.numpy as jnp
from jax.experimental import pallas as pl
from jax.experimental.pallas import tpu as pltpu


# ----------------------------------------------------------------------------
# Fused kernel: grid = (B, phase, n_chunk).
#   phase 0 -> accumulate kv_acc (HF, 2C) over N-chunks (scratch, f32)
#   phase 1 -> stream q-chunks through num|z + output projection
# ----------------------------------------------------------------------------
def _eff_attn_kernel(x_ref, wqkv_ref, bqkv_ref, rfbd_ref, mask_ref, wproj_ref,
                     bproj_ref, o_ref, kv_acc_ref, *, approx_recip):
    f32 = jnp.float32
    cdt = wqkv_ref.dtype                       # MXU operand dtype (bf16 or f32)
    NT, C = x_ref.shape                        # one N-chunk of one batch element
    phase = pl.program_id(1)
    chunk = pl.program_id(2)
    last_chunk = pl.num_programs(2) - 1

    @pl.when((phase == 0) & (chunk == 0))
    def _init():
        kv_acc_ref[...] = jnp.zeros_like(kv_acc_ref)

    @pl.when(phase == 0)
    def _accumulate():
        xc = x_ref[...].astype(cdt)                                   # (NT, C)
        # k/v projection only (q is not needed in this phase).
        kv_lin = (jnp.dot(xc, wqkv_ref[:, C:], preferred_element_type=f32)
                  + bqkv_ref[:, C:].astype(f32))                       # (NT, 2C)
        k = kv_lin[:, :C]
        v = kv_lin[:, C:]
        # ReLU random-feature map for all heads in one lane-dense matmul
        # (rf_bd is (C, H*F) block-diagonal).
        k_prime = jnp.maximum(
            jnp.dot(k.astype(cdt), rfbd_ref[...], preferred_element_type=f32),
            0.0)                                                       # (NT, HF)
        # Append a full block of ones so the second half of kv_acc carries the
        # per-feature k'-sums (normalizer) — lane width 2C, no (N, C+1) shape.
        v_cat = jnp.concatenate([v, jnp.ones_like(v)], axis=1)        # (NT, 2C)
        kv_acc_ref[...] += jax.lax.dot_general(
            k_prime.astype(cdt), v_cat.astype(cdt),
            dimension_numbers=(((0,), (0,)), ((), ())),                # contract N
            preferred_element_type=f32)                                # (HF, 2C)

    @pl.when((phase == 0) & (chunk == last_chunk))
    def _mask_once():
        # Zero cross-head blocks once per batch element (mask precomputed host-side).
        kv_acc_ref[...] = kv_acc_ref[...] * mask_ref[...].astype(f32)

    @pl.when(phase == 1)
    def _emit():
        xc = x_ref[...].astype(cdt)                                    # (NT, C)
        q = (jnp.dot(xc, wqkv_ref[:, :C], preferred_element_type=f32)
             + bqkv_ref[:, :C].astype(f32))                            # (NT, C)
        q_prime = jnp.maximum(
            jnp.dot(q.astype(cdt), rfbd_ref[...], preferred_element_type=f32),
            0.0)                                                        # (NT, HF)
        # Fused num|z: one MXU pass against the masked accumulator.
        numz = jnp.dot(q_prime.astype(cdt), kv_acc_ref[...].astype(cdt),
                       preferred_element_type=f32)                      # (NT, 2C)
        num = numz[:, :C]
        z = numz[:, C:]
        attn = num * pl.reciprocal(z + 1e-6, approx=approx_recip)       # (NT, C)
        out = (jnp.dot(attn.astype(cdt), wproj_ref[...],
                       preferred_element_type=f32)
               + bproj_ref[...].astype(f32))
        o_ref[...] = out.astype(o_ref.dtype)


# ----------------------------------------------------------------------------
# Helpers
# ----------------------------------------------------------------------------
def _pick_chunk(n):
    """Largest N-chunk <= 512 that divides N (keeps per-step VMEM bounded)."""
    if n <= 512:
        return n
    for cand in (512, 384, 256, 128, 64, 32, 16, 8):
        if n % cand == 0:
            return cand
    return n


def _vmem_limit_bytes():
    """7/8 of physical VMEM per generation (56 MiB v7x, 112 MiB v5e/v6e)."""
    try:
        cap = int(pltpu.get_tpu_info().vmem_capacity_bytes)
    except Exception:
        cap = 64 * 1024 * 1024
    return (cap * 7) // 8


# ----------------------------------------------------------------------------
# Module wrapper
# ----------------------------------------------------------------------------
def efficient_attention(x, params, num_heads, *, compute_dtype=jnp.bfloat16):
    """Forward pass of EfficientAttention.  x: (B, N, C)."""
    B, N, C = x.shape
    D = C // num_heads
    rf = params["random_features"]                       # (H, D, F)
    F_feat = rf.shape[-1]
    HF = num_heads * F_feat

    NT = _pick_chunk(N)
    n_chunks = N // NT

    # ---- host-side weight prep (weight-sized; in production hoist + jit) ----
    # Block-diagonal (C, H*F) random-feature matrix, pre-cast to the MXU dtype.
    rf_bd = jax.scipy.linalg.block_diag(
        *[rf[h] for h in range(num_heads)]).astype(compute_dtype)
    # Block-diagonal head mask for the fused (HF, 2C) accumulator.
    row_head = (jnp.arange(HF) // F_feat)[:, None]
    col_head = (jnp.arange(C) // D)[None, :]
    hm = (row_head == col_head)
    mask = jnp.concatenate([hm, hm], axis=1).astype(compute_dtype)     # (HF, 2C)

    w_qkv = params["w_qkv"].astype(compute_dtype)
    w_proj = params["w_proj"].astype(compute_dtype)
    b_qkv = params["b_qkv"].reshape(1, 3 * C).astype(jnp.float32)
    b_proj = params["b_proj"].reshape(1, C).astype(jnp.float32)

    kernel = functools.partial(
        _eff_attn_kernel,
        approx_recip=(compute_dtype == jnp.bfloat16))

    def run(single_buffer_weights):
        def wspec(shape):
            kw = {}
            if single_buffer_weights:
                kw["pipeline_mode"] = pl.Buffered(1)   # invariant -> no 2x VMEM
            return pl.BlockSpec(shape, lambda b, p, c: (0,) * len(shape), **kw)

        return pl.pallas_call(
            kernel,
            out_shape=jax.ShapeDtypeStruct((B, N, C), x.dtype),
            grid=(B, 2, n_chunks),
            in_specs=[
                pl.BlockSpec((None, NT, C), lambda b, p, c: (b, c, 0)),   # x chunk
                wspec((C, 3 * C)),                                        # w_qkv
                wspec((1, 3 * C)),                                        # b_qkv
                wspec((C, HF)),                                           # rf block-diag
                wspec((HF, 2 * C)),                                       # head mask
                wspec((C, C)),                                            # w_proj
                wspec((1, C)),                                            # b_proj
            ],
            # Phase 0 parks the output window on chunk 0 (never written there),
            # phase 1 walks the chunks -> every output block is written exactly
            # once, with consecutive visits.
            out_specs=pl.BlockSpec((None, NT, C), lambda b, p, c: (b, p * c, 0)),
            scratch_shapes=[pltpu.VMEM((HF, 2 * C), jnp.float32)],        # kv | ksum
            compiler_params=pltpu.CompilerParams(
                dimension_semantics=("parallel", "arbitrary", "arbitrary"),
                vmem_limit_bytes=_vmem_limit_bytes()),
        )(x, w_qkv, b_qkv, rf_bd, mask, w_proj, b_proj)

    # TODO(synk): for B == 1 on v7x add a parallel row-tile axis so both
    # TensorCores stay busy; for tiny B*N on 1-TC chips fold the batch into a
    # single program to shave the per-grid-step overhead.
    try:
        return run(True)
    except Exception:
        # pipeline_mode=Buffered(1) unsupported on this JAX build -> default
        # double-buffered weights (correctness identical, slightly more VMEM).
        return run(False)


# ----------------------------------------------------------------------------
# Pure-JAX reference (matches the PyTorch forward) + param init
# ----------------------------------------------------------------------------
def _reference(x, params, num_heads):
    B, N, C = x.shape
    D = C // num_heads
    qkv = x @ params["w_qkv"] + params["b_qkv"]
    qkv = qkv.reshape(B, N, 3, num_heads, D).transpose(2, 0, 3, 1, 4)
    q, k, v = qkv[0], qkv[1], qkv[2]
    rf = params["random_features"]
    qp = jax.nn.relu(jnp.einsum("bhnd,hdf->bhnf", q, rf))
    kp = jax.nn.relu(jnp.einsum("bhnd,hdf->bhnf", k, rf))
    kv = jnp.einsum("bhnf,bhnd->bhfd", kp, v)
    num = jnp.einsum("bhnf,bhfd->bhnd", qp, kv)
    z = jnp.einsum("bhnf,bhf->bhn", qp, kp.sum(axis=2))[..., None]
    o = num / (z + 1e-6)
    o = o.transpose(0, 2, 1, 3).reshape(B, N, C)
    return o @ params["w_proj"] + params["b_proj"]


def init_params(key, dim, num_heads):
    head_dim = dim // num_heads
    nb_features = max(32, dim // 4)
    k1, k2, k3, k4 = jax.random.split(key, 4)
    # qkv_bias=False in the module -> zero bias (semantically identical).
    return {
        "w_qkv": jax.random.normal(k1, (dim, 3 * dim), jnp.float32) * 0.05,
        "b_qkv": jnp.zeros((3 * dim,), jnp.float32),
        "w_proj": jax.random.normal(k2, (dim, dim), jnp.float32) * 0.05,
        "b_proj": jax.random.normal(k3, (dim,), jnp.float32) * 0.01,
        "random_features": jax.random.normal(
            k4, (num_heads, head_dim, nb_features), jnp.float32),
    }


if __name__ == "__main__":
    B, N, C, H = 2, 8, 32, 8   # head_dim = 4, nb_features = 32
    key = jax.random.PRNGKey(0)
    kx, kp = jax.random.split(key)
    x = jax.random.normal(kx, (B, N, C), jnp.float32)
    params = init_params(kp, C, H)

    ref = _reference(x, params, H)

    # Strict-accuracy path (f32 MXU operands, exact reciprocal).
    out_f32 = jax.block_until_ready(
        efficient_attention(x, params, H, compute_dtype=jnp.float32))
    assert out_f32.shape == (B, N, C)
    assert jnp.allclose(out_f32, ref, atol=1e-4, rtol=1e-4), "f32 path mismatch"

    # Fast path (bf16 MXU operands, f32 accumulation, approx reciprocal).
    out_bf16 = jax.block_until_ready(efficient_attention(x, params, H))
    assert out_bf16.shape == (B, N, C)
    assert jnp.allclose(out_bf16, ref, atol=5e-2, rtol=5e-2), "bf16 path mismatch"

    print("KERNEL_OK")
</pallas_src>

<mosaic_0001>
module attributes {stable_mosaic.version = 11 : i64} {
  func.func @_eff_attn_kernel(%arg0: i32, %arg1: i32, %arg2: i32, %arg3: memref<1x8x32xf32, #tpu.memory_space<vmem>>, %arg4: memref<32x96xf32, #tpu.memory_space<vmem>>, %arg5: memref<1x96xf32, #tpu.memory_space<vmem>>, %arg6: memref<32x256xf32, #tpu.memory_space<vmem>>, %arg7: memref<256x64xf32, #tpu.memory_space<vmem>>, %arg8: memref<32x32xf32, #tpu.memory_space<vmem>>, %arg9: memref<1x32xf32, #tpu.memory_space<vmem>>, %arg10: memref<1x8x32xf32, #tpu.memory_space<vmem>>, %arg11: memref<256x64xf32, #tpu.memory_space<vmem>>) attributes {dimension_semantics = [#tpu.dimension_semantics<parallel>, #tpu.dimension_semantics<arbitrary>, #tpu.dimension_semantics<arbitrary>], iteration_bounds = array<i64: 2, 2, 1>, scalar_prefetch = 0 : i64, scratch_operands = 1 : i64, tpu.core_type = #tpu.core_type<tc>, window_params = [{transform_indices = @transform_0, window_bounds = array<i64: 1, 8, 32>}, {pipeline_mode = #tpu.pipeline_mode<synchronous>, transform_indices = @transform_1, window_bounds = array<i64: 32, 96>}, {pipeline_mode = #tpu.pipeline_mode<synchronous>, transform_indices = @transform_2, window_bounds = array<i64: 1, 96>}, {pipeline_mode = #tpu.pipeline_mode<synchronous>, transform_indices = @transform_3, window_bounds = array<i64: 32, 256>}, {pipeline_mode = #tpu.pipeline_mode<synchronous>, transform_indices = @transform_4, window_bounds = array<i64: 256, 64>}, {pipeline_mode = #tpu.pipeline_mode<synchronous>, transform_indices = @transform_5, window_bounds = array<i64: 32, 32>}, {pipeline_mode = #tpu.pipeline_mode<synchronous>, transform_indices = @transform_6, window_bounds = array<i64: 1, 32>}, {transform_indices = @transform_7, window_bounds = array<i64: 1, 8, 32>}]} {
    %c0_i32 = arith.constant 0 : i32
    %0 = arith.cmpi eq, %arg1, %c0_i32 : i32
    %c0_i32_0 = arith.constant 0 : i32
    %1 = arith.cmpi eq, %arg2, %c0_i32_0 : i32
    %2 = arith.andi %0, %1 : i1
    %3 = arith.extui %2 : i1 to i32
    %c0_i32_1 = arith.constant 0 : i32
    %4 = arith.cmpi ne, %3, %c0_i32_1 : i32
    scf.if %4 {
      %cst = arith.constant 0.000000e+00 : f32
      %16 = vector.broadcast %cst : f32 to vector<256x64xf32>
      %c0 = arith.constant 0 : index
      %c0_8 = arith.constant 0 : index
      %17 = vector.load %arg11[%c0, %c0_8] : memref<256x64xf32, #tpu.memory_space<vmem>>, vector<256x64xf32>
      tpu.vector_store %arg11[%c0, %c0_8], %16 {strides = array<i32>} : memref<256x64xf32, #tpu.memory_space<vmem>>, vector<256x64xf32>,
    } else {
    }
    %c0_i32_2 = arith.constant 0 : i32
    %5 = arith.cmpi eq, %arg1, %c0_i32_2 : i32
    %6 = arith.extui %5 : i1 to i32
    %c0_i32_3 = arith.constant 0 : i32
    %7 = arith.cmpi ne, %6, %c0_i32_3 : i32
    scf.if %7 {
      %c0 = arith.constant 0 : index
      %c0_8 = arith.constant 0 : index
      %c0_9 = arith.constant 0 : index
      %16 = vector.load %arg3[%c0, %c0_8, %c0_9] : memref<1x8x32xf32, #tpu.memory_space<vmem>>, vector<1x8x32xf32>
      %17 = vector.shape_cast %16 : vector<1x8x32xf32> to vector<8x32xf32>
      %c0_10 = arith.constant 0 : index
      %c32 = arith.constant 32 : index
      %18 = vector.load %arg4[%c0_10, %c32] : memref<32x96xf32, #tpu.memory_space<vmem>>, vector<32x64xf32>
      %cst = arith.constant dense<0.000000e+00> : vector<8x64xf32>
      %19 = tpu.matmul %17, %18, %cst {dimension_numbers = #tpu.dot_dimension_numbers<[1], [0], [0], [1], [0, 0, 1, 1], [], []>} : vector<8x32xf32>, vector<32x64xf32>, vector<8x64xf32> -> vector<8x64xf32>
      %c0_11 = arith.constant 0 : index
      %c32_12 = arith.constant 32 : index
      %20 = vector.load %arg5[%c0_11, %c32_12] : memref<1x96xf32, #tpu.memory_space<vmem>>, vector<1x64xf32>
      %21 = vector.broadcast %20 : vector<1x64xf32> to vector<8x64xf32>
      %22 = arith.addf %19, %21 : vector<8x64xf32>
      %23 = vector.extract_strided_slice %22 {offsets = [0, 0], sizes = [8, 32], strides = [1, 1]} : vector<8x64xf32> to vector<8x32xf32>
      %24 = vector.extract_strided_slice %22 {offsets = [0, 32], sizes = [8, 32], strides = [1, 1]} : vector<8x64xf32> to vector<8x32xf32>
      %c0_13 = arith.constant 0 : index
      %c0_14 = arith.constant 0 : index
      %25 = vector.load %arg6[%c0_13, %c0_14] : memref<32x256xf32, #tpu.memory_space<vmem>>, vector<32x256xf32>
      %cst_15 = arith.constant dense<0.000000e+00> : vector<8x256xf32>
      %26 = tpu.matmul %23, %25, %cst_15 {dimension_numbers = #tpu.dot_dimension_numbers<[1], [0], [0], [1], [0, 0, 1, 1], [], []>} : vector<8x32xf32>, vector<32x256xf32>, vector<8x256xf32> -> vector<8x256xf32>
      %cst_16 = arith.constant 0.000000e+00 : f32
      %27 = vector.broadcast %cst_16 : f32 to vector<8x256xf32>
      %28 = arith.maximumf %26, %27 : vector<8x256xf32>
      %cst_17 = arith.constant 1.000000e+00 : f32
      %29 = vector.broadcast %cst_17 : f32 to vector<8x32xf32>
      %30 = tpu.concatenate %24, %29 in 1 : vector<8x32xf32>, vector<8x32xf32> -> vector<8x64xf32>
      %c0_18 = arith.constant 0 : index
      %c0_19 = arith.constant 0 : index
      %31 = vector.load %arg11[%c0_18, %c0_19] : memref<256x64xf32, #tpu.memory_space<vmem>>, vector<256x64xf32>
      %cst_20 = arith.constant dense<0.000000e+00> : vector<256x64xf32>
      %32 = tpu.matmul %28, %30, %cst_20 {dimension_numbers = #tpu.dot_dimension_numbers<[0], [0], [1], [1], [0, 1, 1, 1], [], []>} : vector<8x256xf32>, vector<8x64xf32>, vector<256x64xf32> -> vector<256x64xf32>
      %33 = arith.addf %31, %32 : vector<256x64xf32>
      %c0_21 = arith.constant 0 : index
      %c0_22 = arith.constant 0 : index
      %34 = vector.load %arg11[%c0_21, %c0_22] : memref<256x64xf32, #tpu.memory_space<vmem>>, vector<256x64xf32>
      tpu.vector_store %arg11[%c0_21, %c0_22], %33 {strides = array<i32>} : memref<256x64xf32, #tpu.memory_space<vmem>>, vector<256x64xf32>,
    } else {
    }
    %c0_i32_4 = arith.constant 0 : i32
    %8 = arith.cmpi eq, %arg1, %c0_i32_4 : i32
    %c0_i32_5 = arith.constant 0 : i32
    %9 = arith.cmpi eq, %arg2, %c0_i32_5 : i32
    %10 = arith.andi %8, %9 : i1
    %11 = arith.extui %10 : i1 to i32
    %c0_i32_6 = arith.constant 0 : i32
    %12 = arith.cmpi ne, %11, %c0_i32_6 : i32
    scf.if %12 {
      %c0 = arith.constant 0 : index
      %c0_8 = arith.constant 0 : index
      %16 = vector.load %arg11[%c0, %c0_8] : memref<256x64xf32, #tpu.memory_space<vmem>>, vector<256x64xf32>
      %c0_9 = arith.constant 0 : index
      %c0_10 = arith.constant 0 : index
      %17 = vector.load %arg7[%c0_9, %c0_10] : memref<256x64xf32, #tpu.memory_space<vmem>>, vector<256x64xf32>
      %18 = arith.mulf %16, %17 : vector<256x64xf32>
      %c0_11 = arith.constant 0 : index
      %c0_12 = arith.constant 0 : index
      %19 = vector.load %arg11[%c0_11, %c0_12] : memref<256x64xf32, #tpu.memory_space<vmem>>, vector<256x64xf32>
      tpu.vector_store %arg11[%c0_11, %c0_12], %18 {strides = array<i32>} : memref<256x64xf32, #tpu.memory_space<vmem>>, vector<256x64xf32>,
    } else {
    }
    %c1_i32 = arith.constant 1 : i32
    %13 = arith.cmpi eq, %arg1, %c1_i32 : i32
    %14 = arith.extui %13 : i1 to i32
    %c0_i32_7 = arith.constant 0 : i32
    %15 = arith.cmpi ne, %14, %c0_i32_7 : i32
    scf.if %15 {
      %c0 = arith.constant 0 : index
      %c0_8 = arith.constant 0 : index
      %c0_9 = arith.constant 0 : index
      %16 = vector.load %arg3[%c0, %c0_8, %c0_9] : memref<1x8x32xf32, #tpu.memory_space<vmem>>, vector<1x8x32xf32>
      %17 = vector.shape_cast %16 : vector<1x8x32xf32> to vector<8x32xf32>
      %c0_10 = arith.constant 0 : index
      %c0_11 = arith.constant 0 : index
      %18 = vector.load %arg4[%c0_10, %c0_11] : memref<32x96xf32, #tpu.memory_space<vmem>>, vector<32x32xf32>
      %cst = arith.constant dense<0.000000e+00> : vector<8x32xf32>
      %19 = tpu.matmul %17, %18, %cst {dimension_numbers = #tpu.dot_dimension_numbers<[1], [0], [0], [1], [0, 0, 1, 1], [], []>} : vector<8x32xf32>, vector<32x32xf32>, vector<8x32xf32> -> vector<8x32xf32>
      %c0_12 = arith.constant 0 : index
      %c0_13 = arith.constant 0 : index
      %20 = vector.load %arg5[%c0_12, %c0_13] : memref<1x96xf32, #tpu.memory_space<vmem>>, vector<1x32xf32>
      %21 = vector.broadcast %20 : vector<1x32xf32> to vector<8x32xf32>
      %22 = arith.addf %19, %21 : vector<8x32xf32>
      %c0_14 = arith.constant 0 : index
      %c0_15 = arith.constant 0 : index
      %23 = vector.load %arg6[%c0_14, %c0_15] : memref<32x256xf32, #tpu.memory_space<vmem>>, vector<32x256xf32>
      %cst_16 = arith.constant dense<0.000000e+00> : vector<8x256xf32>
      %24 = tpu.matmul %22, %23, %cst_16 {dimension_numbers = #tpu.dot_dimension_numbers<[1], [0], [0], [1], [0, 0, 1, 1], [], []>} : vector<8x32xf32>, vector<32x256xf32>, vector<8x256xf32> -> vector<8x256xf32>
      %cst_17 = arith.constant 0.000000e+00 : f32
      %25 = vector.broadcast %cst_17 : f32 to vector<8x256xf32>
      %26 = arith.maximumf %24, %25 : vector<8x256xf32>
      %c0_18 = arith.constant 0 : index
      %c0_19 = arith.constant 0 : index
      %27 = vector.load %arg11[%c0_18, %c0_19] : memref<256x64xf32, #tpu.memory_space<vmem>>, vector<256x64xf32>
      %cst_20 = arith.constant dense<0.000000e+00> : vector<8x64xf32>
      %28 = tpu.matmul %26, %27, %cst_20 {dimension_numbers = #tpu.dot_dimension_numbers<[1], [0], [0], [1], [0, 0, 1, 1], [], []>} : vector<8x256xf32>, vector<256x64xf32>, vector<8x64xf32> -> vector<8x64xf32>
      %29 = vector.extract_strided_slice %28 {offsets = [0, 0], sizes = [8, 32], strides = [1, 1]} : vector<8x64xf32> to vector<8x32xf32>
      %30 = vector.extract_strided_slice %28 {offsets = [0, 32], sizes = [8, 32], strides = [1, 1]} : vector<8x64xf32> to vector<8x32xf32>
      %cst_21 = arith.constant 9.99999997E-7 : f32
      %31 = vector.broadcast %cst_21 : f32 to vector<8x32xf32>
      %32 = arith.addf %30, %31 : vector<8x32xf32>
      %33 = tpu.reciprocal %32 : vector<8x32xf32> -> vector<8x32xf32>
      %34 = arith.mulf %29, %33 : vector<8x32xf32>
      %c0_22 = arith.constant 0 : index
      %c0_23 = arith.constant 0 : index
      %35 = vector.load %arg8[%c0_22, %c0_23] : memref<32x32xf32, #tpu.memory_space<vmem>>, vector<32x32xf32>
      %cst_24 = arith.constant dense<0.000000e+00> : vector<8x32xf32>
      %36 = tpu.matmul %34, %35, %cst_24 {dimension_numbers = #tpu.dot_dimension_numbers<[1], [0], [0], [1], [0, 0, 1, 1], [], []>} : vector<8x32xf32>, vector<32x32xf32>, vector<8x32xf32> -> vector<8x32xf32>
      %c0_25 = arith.constant 0 : index
      %c0_26 = arith.constant 0 : index
      %37 = vector.load %arg9[%c0_25, %c0_26] : memref<1x32xf32, #tpu.memory_space<vmem>>, vector<1x32xf32>
      %38 = vector.broadcast %37 : vector<1x32xf32> to vector<8x32xf32>
      %39 = arith.addf %36, %38 : vector<8x32xf32>
      %c0_27 = arith.constant 0 : index
      %c0_28 = arith.constant 0 : index
      %c0_29 = arith.constant 0 : index
      %40 = vector.load %arg10[%c0_27, %c0_28, %c0_29] : memref<1x8x32xf32, #tpu.memory_space<vmem>>, vector<1x8x32xf32>
      %41 = vector.shape_cast %40 : vector<1x8x32xf32> to vector<8x32xf32>
      %42 = vector.shape_cast %39 : vector<8x32xf32> to vector<1x8x32xf32>
      tpu.vector_store %arg10[%c0_27, %c0_28, %c0_29], %42 {strides = array<i32>} : memref<1x8x32xf32, #tpu.memory_space<vmem>>, vector<1x8x32xf32>,
    } else {
    }
    return
  }
  func.func @transform_0(%arg0: i32, %arg1: i32, %arg2: i32) -> (i32, i32, i32) {
    %c0_i32 = arith.constant 0 : i32
    %c0_i32_0 = arith.constant 0 : i32
    return %arg0, %arg2, %c0_i32 : i32, i32, i32
  }
  func.func @transform_1(%arg0: i32, %arg1: i32, %arg2: i32) -> (i32, i32) {
    %c0_i32 = arith.constant 0 : i32
    %c0_i32_0 = arith.constant 0 : i32
    %c0_i32_1 = arith.constant 0 : i32
    return %c0_i32, %c0_i32_0 : i32, i32
  }
  func.func @transform_2(%arg0: i32, %arg1: i32, %arg2: i32) -> (i32, i32) {
    %c0_i32 = arith.constant 0 : i32
    %c0_i32_0 = arith.constant 0 : i32
    %c0_i32_1 = arith.constant 0 : i32
    return %c0_i32, %c0_i32_0 : i32, i32
  }
  func.func @transform_3(%arg0: i32, %arg1: i32, %arg2: i32) -> (i32, i32) {
    %c0_i32 = arith.constant 0 : i32
    %c0_i32_0 = arith.constant 0 : i32
    %c0_i32_1 = arith.constant 0 : i32
    return %c0_i32, %c0_i32_0 : i32, i32
  }
  func.func @transform_4(%arg0: i32, %arg1: i32, %arg2: i32) -> (i32, i32) {
    %c0_i32 = arith.constant 0 : i32
    %c0_i32_0 = arith.constant 0 : i32
    %c0_i32_1 = arith.constant 0 : i32
    return %c0_i32, %c0_i32_0 : i32, i32
  }
  func.func @transform_5(%arg0: i32, %arg1: i32, %arg2: i32) -> (i32, i32) {
    %c0_i32 = arith.constant 0 : i32
    %c0_i32_0 = arith.constant 0 : i32
    %c0_i32_1 = arith.constant 0 : i32
    return %c0_i32, %c0_i32_0 : i32, i32
  }
  func.func @transform_6(%arg0: i32, %arg1: i32, %arg2: i32) -> (i32, i32) {
    %c0_i32 = arith.constant 0 : i32
    %c0_i32_0 = arith.constant 0 : i32
    %c0_i32_1 = arith.constant 0 : i32
    return %c0_i32, %c0_i32_0 : i32, i32
  }
  func.func @transform_7(%arg0: i32, %arg1: i32, %arg2: i32) -> (i32, i32, i32) {
    %0 = arith.muli %arg1, %arg2 : i32
    %c0_i32 = arith.constant 0 : i32
    %c0_i32_0 = arith.constant 0 : i32
    return %arg0, %0, %c0_i32 : i32, i32, i32
  }
}

module attributes {stable_mosaic.version = 11 : i64} {
  func.func @_eff_attn_kernel(%arg0: i32, %arg1: i32, %arg2: i32, %arg3: memref<1x8x32xf32, #tpu.memory_space<vmem>>, %arg4: memref<32x96xf32, #tpu.memory_space<vmem>>, %arg5: memref<1x96xf32, #tpu.memory_space<vmem>>, %arg6: memref<32x256xf32, #tpu.memory_space<vmem>>, %arg7: memref<256x64xf32, #tpu.memory_space<vmem>>, %arg8: memref<32x32xf32, #tpu.memory_space<vmem>>, %arg9: memref<1x32xf32, #tpu.memory_space<vmem>>, %arg10: memref<1x8x32xf32, #tpu.memory_space<vmem>>, %arg11: memref<256x64xf32, #tpu.memory_space<vmem>>) attributes {dimension_semantics = [#tpu.dimension_semantics<parallel>, #tpu.dimension_semantics<arbitrary>, #tpu.dimension_semantics<arbitrary>], iteration_bounds = array<i64: 2, 2, 1>, scalar_prefetch = 0 : i64, scratch_operands = 1 : i64, tpu.core_type = #tpu.core_type<tc>, window_params = [{transform_indices = @transform_0, window_bounds = array<i64: 1, 8, 32>}, {pipeline_mode = #tpu.pipeline_mode<synchronous>, transform_indices = @transform_1, window_bounds = array<i64: 32, 96>}, {pipeline_mode = #tpu.pipeline_mode<synchronous>, transform_indices = @transform_2, window_bounds = array<i64: 1, 96>}, {pipeline_mode = #tpu.pipeline_mode<synchronous>, transform_indices = @transform_3, window_bounds = array<i64: 32, 256>}, {pipeline_mode = #tpu.pipeline_mode<synchronous>, transform_indices = @transform_4, window_bounds = array<i64: 256, 64>}, {pipeline_mode = #tpu.pipeline_mode<synchronous>, transform_indices = @transform_5, window_bounds = array<i64: 32, 32>}, {pipeline_mode = #tpu.pipeline_mode<synchronous>, transform_indices = @transform_6, window_bounds = array<i64: 1, 32>}, {transform_indices = @transform_7, window_bounds = array<i64: 1, 8, 32>}]} {
    %c0_i32 = arith.constant 0 : i32
    %0 = arith.cmpi eq, %arg1, %c0_i32 : i32
    %c0_i32_0 = arith.constant 0 : i32
    %1 = arith.cmpi eq, %arg2, %c0_i32_0 : i32
    %2 = arith.andi %0, %1 : i1
    %3 = arith.extui %2 : i1 to i32
    %c0_i32_1 = arith.constant 0 : i32
    %4 = arith.cmpi ne, %3, %c0_i32_1 : i32
    scf.if %4 {
      %cst = arith.constant 0.000000e+00 : f32
      %16 = vector.broadcast %cst : f32 to vector<256x64xf32>
      %c0 = arith.constant 0 : index
      %c0_8 = arith.constant 0 : index
      %17 = vector.load %arg11[%c0, %c0_8] : memref<256x64xf32, #tpu.memory_space<vmem>>, vector<256x64xf32>
      tpu.vector_store %arg11[%c0, %c0_8], %16 {strides = array<i32>} : memref<256x64xf32, #tpu.memory_space<vmem>>, vector<256x64xf32>,
    } else {
    }
    %c0_i32_2 = arith.constant 0 : i32
    %5 = arith.cmpi eq, %arg1, %c0_i32_2 : i32
    %6 = arith.extui %5 : i1 to i32
    %c0_i32_3 = arith.constant 0 : i32
    %7 = arith.cmpi ne, %6, %c0_i32_3 : i32
    scf.if %7 {
      %c0 = arith.constant 0 : index
      %c0_8 = arith.constant 0 : index
      %c0_9 = arith.constant 0 : index
      %16 = vector.load %arg3[%c0, %c0_8, %c0_9] : memref<1x8x32xf32, #tpu.memory_space<vmem>>, vector<1x8x32xf32>
      %17 = vector.shape_cast %16 : vector<1x8x32xf32> to vector<8x32xf32>
      %c0_10 = arith.constant 0 : index
      %c32 = arith.constant 32 : index
      %18 = vector.load %arg4[%c0_10, %c32] : memref<32x96xf32, #tpu.memory_space<vmem>>, vector<32x64xf32>
      %cst = arith.constant dense<0.000000e+00> : vector<8x64xf32>
      %19 = tpu.matmul %17, %18, %cst {dimension_numbers = #tpu.dot_dimension_numbers<[1], [0], [0], [1], [0, 0, 1, 1], [], []>} : vector<8x32xf32>, vector<32x64xf32>, vector<8x64xf32> -> vector<8x64xf32>
      %c0_11 = arith.constant 0 : index
      %c32_12 = arith.constant 32 : index
      %20 = vector.load %arg5[%c0_11, %c32_12] : memref<1x96xf32, #tpu.memory_space<vmem>>, vector<1x64xf32>
      %21 = vector.broadcast %20 : vector<1x64xf32> to vector<8x64xf32>
      %22 = arith.addf %19, %21 : vector<8x64xf32>
      %23 = vector.extract_strided_slice %22 {offsets = [0, 0], sizes = [8, 32], strides = [1, 1]} : vector<8x64xf32> to vector<8x32xf32>
      %24 = vector.extract_strided_slice %22 {offsets = [0, 32], sizes = [8, 32], strides = [1, 1]} : vector<8x64xf32> to vector<8x32xf32>
      %c0_13 = arith.constant 0 : index
      %c0_14 = arith.constant 0 : index
      %25 = vector.load %arg6[%c0_13, %c0_14] : memref<32x256xf32, #tpu.memory_space<vmem>>, vector<32x256xf32>
      %cst_15 = arith.constant dense<0.000000e+00> : vector<8x256xf32>
      %26 = tpu.matmul %23, %25, %cst_15 {dimension_numbers = #tpu.dot_dimension_numbers<[1], [0], [0], [1], [0, 0, 1, 1], [], []>} : vector<8x32xf32>, vector<32x256xf32>, vector<8x256xf32> -> vector<8x256xf32>
      %cst_16 = arith.constant 0.000000e+00 : f32
      %27 = vector.broadcast %cst_16 : f32 to vector<8x256xf32>
      %28 = arith.maximumf %26, %27 : vector<8x256xf32>
      %cst_17 = arith.constant 1.000000e+00 : f32
      %29 = vector.broadcast %cst_17 : f32 to vector<8x32xf32>
      %30 = tpu.concatenate %24, %29 in 1 : vector<8x32xf32>, vector<8x32xf32> -> vector<8x64xf32>
      %c0_18 = arith.constant 0 : index
      %c0_19 = arith.constant 0 : index
      %31 = vector.load %arg11[%c0_18, %c0_19] : memref<256x64xf32, #tpu.memory_space<vmem>>, vector<256x64xf32>
      %cst_20 = arith.constant dense<0.000000e+00> : vector<256x64xf32>
      %32 = tpu.matmul %28, %30, %cst_20 {dimension_numbers = #tpu.dot_dimension_numbers<[0], [0], [1], [1], [0, 1, 1, 1], [], []>} : vector<8x256xf32>, vector<8x64xf32>, vector<256x64xf32> -> vector<256x64xf32>
      %33 = arith.addf %31, %32 : vector<256x64xf32>
      %c0_21 = arith.constant 0 : index
      %c0_22 = arith.constant 0 : index
      %34 = vector.load %arg11[%c0_21, %c0_22] : memref<256x64xf32, #tpu.memory_space<vmem>>, vector<256x64xf32>
      tpu.vector_store %arg11[%c0_21, %c0_22], %33 {strides = array<i32>} : memref<256x64xf32, #tpu.memory_space<vmem>>, vector<256x64xf32>,
    } else {
    }
    %c0_i32_4 = arith.constant 0 : i32
    %8 = arith.cmpi eq, %arg1, %c0_i32_4 : i32
    %c0_i32_5 = arith.constant 0 : i32
    %9 = arith.cmpi eq, %arg2, %c0_i32_5 : i32
    %10 = arith.andi %8, %9 : i1
    %11 = arith.extui %10 : i1 to i32
    %c0_i32_6 = arith.constant 0 : i32
    %12 = arith.cmpi ne, %11, %c0_i32_6 : i32
    scf.if %12 {
      %c0 = arith.constant 0 : index
      %c0_8 = arith.constant 0 : index
      %16 = vector.load %arg11[%c0, %c0_8] : memref<256x64xf32, #tpu.memory_space<vmem>>, vector<256x64xf32>
      %c0_9 = arith.constant 0 : index
      %c0_10 = arith.constant 0 : index
      %17 = vector.load %arg7[%c0_9, %c0_10] : memref<256x64xf32, #tpu.memory_space<vmem>>, vector<256x64xf32>
      %18 = arith.mulf %16, %17 : vector<256x64xf32>
      %c0_11 = arith.constant 0 : index
      %c0_12 = arith.constant 0 : index
      %19 = vector.load %arg11[%c0_11, %c0_12] : memref<256x64xf32, #tpu.memory_space<vmem>>, vector<256x64xf32>
      tpu.vector_store %arg11[%c0_11, %c0_12], %18 {strides = array<i32>} : memref<256x64xf32, #tpu.memory_space<vmem>>, vector<256x64xf32>,
    } else {
    }
    %c1_i32 = arith.constant 1 : i32
    %13 = arith.cmpi eq, %arg1, %c1_i32 : i32
    %14 = arith.extui %13 : i1 to i32
    %c0_i32_7 = arith.constant 0 : i32
    %15 = arith.cmpi ne, %14, %c0_i32_7 : i32
    scf.if %15 {
      %c0 = arith.constant 0 : index
      %c0_8 = arith.constant 0 : index
      %c0_9 = arith.constant 0 : index
      %16 = vector.load %arg3[%c0, %c0_8, %c0_9] : memref<1x8x32xf32, #tpu.memory_space<vmem>>, vector<1x8x32xf32>
      %17 = vector.shape_cast %16 : vector<1x8x32xf32> to vector<8x32xf32>
      %c0_10 = arith.constant 0 : index
      %c0_11 = arith.constant 0 : index
      %18 = vector.load %arg4[%c0_10, %c0_11] : memref<32x96xf32, #tpu.memory_space<vmem>>, vector<32x32xf32>
      %cst = arith.constant dense<0.000000e+00> : vector<8x32xf32>
      %19 = tpu.matmul %17, %18, %cst {dimension_numbers = #tpu.dot_dimension_numbers<[1], [0], [0], [1], [0, 0, 1, 1], [], []>} : vector<8x32xf32>, vector<32x32xf32>, vector<8x32xf32> -> vector<8x32xf32>
      %c0_12 = arith.constant 0 : index
      %c0_13 = arith.constant 0 : index
      %20 = vector.load %arg5[%c0_12, %c0_13] : memref<1x96xf32, #tpu.memory_space<vmem>>, vector<1x32xf32>
      %21 = vector.broadcast %20 : vector<1x32xf32> to vector<8x32xf32>
      %22 = arith.addf %19, %21 : vector<8x32xf32>
      %c0_14 = arith.constant 0 : index
      %c0_15 = arith.constant 0 : index
      %23 = vector.load %arg6[%c0_14, %c0_15] : memref<32x256xf32, #tpu.memory_space<vmem>>, vector<32x256xf32>
      %cst_16 = arith.constant dense<0.000000e+00> : vector<8x256xf32>
      %24 = tpu.matmul %22, %23, %cst_16 {dimension_numbers = #tpu.dot_dimension_numbers<[1], [0], [0], [1], [0, 0, 1, 1], [], []>} : vector<8x32xf32>, vector<32x256xf32>, vector<8x256xf32> -> vector<8x256xf32>
      %cst_17 = arith.constant 0.000000e+00 : f32
      %25 = vector.broadcast %cst_17 : f32 to vector<8x256xf32>
      %26 = arith.maximumf %24, %25 : vector<8x256xf32>
      %c0_18 = arith.constant 0 : index
      %c0_19 = arith.constant 0 : index
      %27 = vector.load %arg11[%c0_18, %c0_19] : memref<256x64xf32, #tpu.memory_space<vmem>>, vector<256x64xf32>
      %cst_20 = arith.constant dense<0.000000e+00> : vector<8x64xf32>
      %28 = tpu.matmul %26, %27, %cst_20 {dimension_numbers = #tpu.dot_dimension_numbers<[1], [0], [0], [1], [0, 0, 1, 1], [], []>} : vector<8x256xf32>, vector<256x64xf32>, vector<8x64xf32> -> vector<8x64xf32>
      %29 = vector.extract_strided_slice %28 {offsets = [0, 0], sizes = [8, 32], strides = [1, 1]} : vector<8x64xf32> to vector<8x32xf32>
      %30 = vector.extract_strided_slice %28 {offsets = [0, 32], sizes = [8, 32], strides = [1, 1]} : vector<8x64xf32> to vector<8x32xf32>
      %cst_21 = arith.constant 9.99999997E-7 : f32
      %31 = vector.broadcast %cst_21 : f32 to vector<8x32xf32>
      %32 = arith.addf %30, %31 : vector<8x32xf32>
      %33 = tpu.reciprocal %32 : vector<8x32xf32> -> vector<8x32xf32>
      %34 = arith.mulf %29, %33 : vector<8x32xf32>
      %c0_22 = arith.constant 0 : index
      %c0_23 = arith.constant 0 : index
      %35 = vector.load %arg8[%c0_22, %c0_23] : memref<32x32xf32, #tpu.memory_space<vmem>>, vector<32x32xf32>
      %cst_24 = arith.constant dense<0.000000e+00> : vector<8x32xf32>
      %36 = tpu.matmul %34, %35, %cst_24 {dimension_numbers = #tpu.dot_dimension_numbers<[1], [0], [0], [1], [0, 0, 1, 1], [], []>} : vector<8x32xf32>, vector<32x32xf32>, vector<8x32xf32> -> vector<8x32xf32>
      %c0_25 = arith.constant 0 : index
      %c0_26 = arith.constant 0 : index
      %37 = vector.load %arg9[%c0_25, %c0_26] : memref<1x32xf32, #tpu.memory_space<vmem>>, vector<1x32xf32>
      %38 = vector.broadcast %37 : vector<1x32xf32> to vector<8x32xf32>
      %39 = arith.addf %36, %38 : vector<8x32xf32>
      %c0_27 = arith.constant 0 : index
      %c0_28 = arith.constant 0 : index
      %c0_29 = arith.constant 0 : index
      %40 = vector.load %arg10[%c0_27, %c0_28, %c0_29] : memref<1x8x32xf32, #tpu.memory_space<vmem>>, vector<1x8x32xf32>
      %41 = vector.shape_cast %40 : vector<1x8x32xf32> to vector<8x32xf32>
      %42 = vector.shape_cast %39 : vector<8x32xf32> to vector<1x8x32xf32>
      tpu.vector_store %arg10[%c0_27, %c0_28, %c0_29], %42 {strides = array<i32>} : memref<1x8x32xf32, #tpu.memory_space<vmem>>, vector<1x8x32xf32>,
    } else {
    }
    return
  }
  func.func @transform_0(%arg0: i32, %arg1: i32, %arg2: i32) -> (i32, i32, i32) {
    %c0_i32 = arith.constant 0 : i32
    %c0_i32_0 = arith.constant 0 : i32
    return %arg0, %arg2, %c0_i32 : i32, i32, i32
  }
  func.func @transform_1(%arg0: i32, %arg1: i32, %arg2: i32) -> (i32, i32) {
    %c0_i32 = arith.constant 0 : i32
    %c0_i32_0 = arith.constant 0 : i32
    %c0_i32_1 = arith.constant 0 : i32
    return %c0_i32, %c0_i32_0 : i32, i32
  }
  func.func @transform_2(%arg0: i32, %arg1: i32, %arg2: i32) -> (i32, i32) {
    %c0_i32 = arith.constant 0 : i32
    %c0_i32_0 = arith.constant 0 : i32
    %c0_i32_1 = arith.constant 0 : i32
    return %c0_i32, %c0_i32_0 : i32, i32
  }
  func.func @transform_3(%arg0: i32, %arg1: i32, %arg2: i32) -> (i32, i32) {
    %c0_i32 = arith.constant 0 : i32
    %c0_i32_0 = arith.constant 0 : i32
    %c0_i32_1 = arith.constant 0 : i32
    return %c0_i32, %c0_i32_0 : i32, i32
  }
  func.func @transform_4(%arg0: i32, %arg1: i32, %arg2: i32) -> (i32, i32) {
    %c0_i32 = arith.constant 0 : i32
    %c0_i32_0 = arith.constant 0 : i32
    %c0_i32_1 = arith.constant 0 : i32
    return %c0_i32, %c0_i32_0 : i32, i32
  }
  func.func @transform_5(%arg0: i32, %arg1: i32, %arg2: i32) -> (i32, i32) {
    %c0_i32 = arith.constant 0 : i32
    %c0_i32_0 = arith.constant 0 : i32
    %c0_i32_1 = arith.constant 0 : i32
    return %c0_i32, %c0_i32_0 : i32, i32
  }
  func.func @transform_6(%arg0: i32, %arg1: i32, %arg2: i32) -> (i32, i32) {
    %c0_i32 = arith.constant 0 : i32
    %c0_i32_0 = arith.constant 0 : i32
    %c0_i32_1 = arith.constant 0 : i32
    return %c0_i32, %c0_i32_0 : i32, i32
  }
  func.func @transform_7(%arg0: i32, %arg1: i32, %arg2: i32) -> (i32, i32, i32) {
    %0 = arith.muli %arg1, %arg2 : i32
    %c0_i32 = arith.constant 0 : i32
    %c0_i32_0 = arith.constant 0 : i32
    return %arg0, %0, %c0_i32 : i32, i32, i32
  }
}

</mosaic_0001>

<llo_original>
// kernel: tpu_custom_call.1
$region0: #{tpu_custom_call.1}
  #allocation0 [shape = 'u32[]', space=smem, size = 0x4, offset = 0x4, fixed_abs, tag = 'smem constant byte address 0x4 - core index']
  #allocation1 [shape = 'u32[144,128]{1,0:T(1,128)}', space=vmem, size = 0x12000, scoped, tag = 'internal scratch']
  #allocation2 [shape = 'f32[256,64]{1,0:T(8,128)}', space=vmem, size = 0x20000, scoped, tag = 'scratch operand']
  %s0 = inlined_call_operand.vmem [shape: f32[2,8,32], index: 0, kind: input, shape index: {}]
  %s1 = inlined_call_operand.vmem [shape: f32[32,96], index: 1, kind: input, shape index: {}]
  %s2 = inlined_call_operand.vmem [shape: f32[1,96], index: 2, kind: input, shape index: {}]
  %s3 = inlined_call_operand.vmem [shape: f32[32,256], index: 3, kind: input, shape index: {}]
  %s4 = inlined_call_operand.vmem [shape: f32[256,64], index: 4, kind: input, shape index: {}]
  %s5 = inlined_call_operand.vmem [shape: f32[32,32], index: 5, kind: input, shape index: {}]
  %s6 = inlined_call_operand.vmem [shape: f32[1,32], index: 6, kind: input, shape index: {}]
  %s7 = inlined_call_operand.hbm [shape: f32[2,8,32], index: 7, kind: output, shape index: {}]
  %s8 = sld [smem:[#allocation0]]
  $region77: #{tpu_custom_call.1} parent=0
    _
  %s10 = ssub.s32 1, %s8
  %s11 = scalar_select 0, %s10, %s8
  $region1: #{tpu_custom_call.1} parent=0
    #allocation3 [shape = 'u8[8192]{0}', space=vmem, size = 0x2000, scoped, tag = 'output window, operand 0']
    #allocation4 [shape = 's32[2]{0}', space=sflag, size = 0x8, scoped, tag = 'scoped memory for tpu_custom_call.1']
    %12 = vsyncpa [#allocation4], 0
    %s13 = scalar_lea.sflag [#allocation4], 1
    %14 = vsyncpa %s13, 0
    loop: start=0, step=1, limit=6
    $region2: #{tpu_custom_call.1} parent=1 // loop_pre_header
      _
    $region3: #{tpu_custom_call.1} parent=1 // loop_header
      %s16 = sphi 0, %s20
      %p17 = scmp.ge.s32.totalorder %s16, 6
      %s23 = sphi 0, %s42
      %s24 = sphi 0, %s38
      %s25 = sphi 0, %s34
      %s26 = sphi 0, %s23
      %s27 = sphi 0, %s24
      %s28 = sphi 0, %s25
      %s29 = sphi 0, %s26
      %s30 = sphi 0, %s27
      %s31 = sphi 0, %s28
      %s47 = sphi 0, %s49
      %s50 = sphi 0, %s47
      %s51 = sphi 0, %s50
      %s67 = sphi 0, %s51
      %s71 = sphi 0, %s71
      %s73 = sphi 0, %s71
      %s74 = sphi 0, %s73
      %s88 = sphi 0, %s74
      %s92 = sphi 0, %s92
      %s94 = sphi 0, %s92
      %s95 = sphi 0, %s94
      %s109 = sphi 0, %s95
      %s113 = sphi 0, %s113
      %s115 = sphi 0, %s113
      %s116 = sphi 0, %s115
      %s130 = sphi 0, %s116
      %s134 = sphi 0, %s134
      %s136 = sphi 0, %s134
      %s137 = sphi 0, %s136
      %s151 = sphi 0, %s137
      %s155 = sphi 0, %s155
      %s157 = sphi 0, %s155
      %s158 = sphi 0, %s157
      %s172 = sphi 0, %s158
      %s176 = sphi 0, %s176
      %s178 = sphi 0, %s176
      %s179 = sphi 0, %s178
      %s193 = sphi 0, %s179
      %s203 = sphi 0, %s205
      %s206 = sphi 0, %s203
      %s207 = sphi 0, %s206
      %s223 = sphi 0, %s207
    $region4: #{tpu_custom_call.1} parent=1 // loop_header_branch
      %19 = sbr.rel (%p17) target = $region8
    $region5: #{tpu_custom_call.1} parent=1 // loop_body
      %s21 = ssub.s32 %s16, 1
      %s22 = ssub.s32 %s16, 2
      %s32 = sadd.s32 1, %s25
      %p33 = scmp.ge.s32.totalorder %s32, 1
      %s34 = scalar_select %p33, 0, %s32
      %s35 = sadd.s32 1, %s24
      %s36 = scalar_select %p33, %s35, %s24
      %p37 = scmp.ge.s32.totalorder %s36, 2
      %s38 = scalar_select %p37, 0, %s36
      %s39 = sadd.s32 1, %s23
      %s40 = scalar_select %p37, %s39, %s23
      %p41 = scmp.ge.s32.totalorder %s40, 2
      %s42 = scalar_select %p41, 0, %s40
      %s43 = ssub.s32 %s23, %s42
      %s44 = ssub.s32 %s25, %s34
      %s45 = sor.u32 %s43, %s44
      %p46 = scmp.eq.s32.totalorder %s45, 0
      %s48 = sadd.s32 %s47, 1
      %s49 = scalar_select %p46, %s47, %s48
      %p52 = pneg %p46
      %p53 = scmp.eq.s32.totalorder %s16, 3
      %p54 = por %p52, %p53
      %p55 = scmp.ne.s32.totalorder %s47, %s50
      %p56 = scmp.eq.s32.totalorder %s16, 0
      %p57 = por %p55, %p56
      %p58 = scmp.ne.s32.totalorder %s47, %s50
      %p59 = scmp.eq.s32.totalorder %s21, 3
      %p60 = por %p58, %p59
      %p61 = scmp.ne.s32.totalorder %s50, %s51
      %p62 = scmp.eq.s32.totalorder %s21, 0
      %p63 = por %p61, %p62
      %p64 = scmp.ne.s32.totalorder %s50, %s51
      %p65 = scmp.eq.s32.totalorder %s22, 3
      %p66 = por %p64, %p65
      %p68 = scmp.ne.s32.totalorder %s51, %s67
      %p69 = scmp.eq.s32.totalorder %s22, 0
      %p70 = por %p68, %p69
      %s72 = sadd.s32 %s71, 1
      %p75 = scmp.eq.s32.totalorder %s16, 3
      %p76 = scmp.ne.s32.totalorder %s71, %s73
      %p77 = scmp.eq.s32.totalorder %s16, 0
      %p78 = por %p76, %p77
      %p79 = scmp.ne.s32.totalorder %s71, %s73
      %p80 = scmp.eq.s32.totalorder %s21, 3
      %p81 = por %p79, %p80
      %p82 = scmp.ne.s32.totalorder %s73, %s74
      %p83 = scmp.eq.s32.totalorder %s21, 0
      %p84 = por %p82, %p83
      %p85 = scmp.ne.s32.totalorder %s73, %s74
      %p86 = scmp.eq.s32.totalorder %s22, 3
      %p87 = por %p85, %p86
      %p89 = scmp.ne.s32.totalorder %s74, %s88
      %p90 = scmp.eq.s32.totalorder %s22, 0
      %p91 = por %p89, %p90
      %s93 = sadd.s32 %s92, 1
      %p96 = scmp.eq.s32.totalorder %s16, 3
      %p97 = scmp.ne.s32.totalorder %s92, %s94
      %p98 = scmp.eq.s32.totalorder %s16, 0
      %p99 = por %p97, %p98
      %p100 = scmp.ne.s32.totalorder %s92, %s94
      %p101 = scmp.eq.s32.totalorder %s21, 3
      %p102 = por %p100, %p101
      %p103 = scmp.ne.s32.totalorder %s94, %s95
      %p104 = scmp.eq.s32.totalorder %s21, 0
      %p105 = por %p103, %p104
      %p106 = scmp.ne.s32.totalorder %s94, %s95
      %p107 = scmp.eq.s32.totalorder %s22, 3
      %p108 = por %p106, %p107
      %p110 = scmp.ne.s32.totalorder %s95, %s109
      %p111 = scmp.eq.s32.totalorder %s22, 0
      %p112 = por %p110, %p111
      %s114 = sadd.s32 %s113, 1
      %p117 = scmp.eq.s32.totalorder %s16, 3
      %p118 = scmp.ne.s32.totalorder %s113, %s115
      %p119 = scmp.eq.s32.totalorder %s16, 0
      %p120 = por %p118, %p119
      %p121 = scmp.ne.s32.totalorder %s113, %s115
      %p122 = scmp.eq.s32.totalorder %s21, 3
      %p123 = por %p121, %p122
      %p124 = scmp.ne.s32.totalorder %s115, %s116
      %p125 = scmp.eq.s32.totalorder %s21, 0
      %p126 = por %p124, %p125
      %p127 = scmp.ne.s32.totalorder %s115, %s116
      %p128 = scmp.eq.s32.totalorder %s22, 3
      %p129 = por %p127, %p128
      %p131 = scmp.ne.s32.totalorder %s116, %s130
      %p132 = scmp.eq.s32.totalorder %s22, 0
      %p133 = por %p131, %p132
      %s135 = sadd.s32 %s134, 1
      %p138 = scmp.eq.s32.totalorder %s16, 3
      %p139 = scmp.ne.s32.totalorder %s134, %s136
      %p140 = scmp.eq.s32.totalorder %s16, 0
      %p141 = por %p139, %p140
      %p142 = scmp.ne.s32.totalorder %s134, %s136
      %p143 = scmp.eq.s32.totalorder %s21, 3
      %p144 = por %p142, %p143
      %p145 = scmp.ne.s32.totalorder %s136, %s137
      %p146 = scmp.eq.s32.totalorder %s21, 0
      %p147 = por %p145, %p146
      %p148 = scmp.ne.s32.totalorder %s136, %s137
      %p149 = scmp.eq.s32.totalorder %s22, 3
      %p150 = por %p148, %p149
      %p152 = scmp.ne.s32.totalorder %s137, %s151
      %p153 = scmp.eq.s32.totalorder %s22, 0
      %p154 = por %p152, %p153
      %s156 = sadd.s32 %s155, 1
      %p159 = scmp.eq.s32.totalorder %s16, 3
      %p160 = scmp.ne.s32.totalorder %s155, %s157
      %p161 = scmp.eq.s32.totalorder %s16, 0
      %p162 = por %p160, %p161
      %p163 = scmp.ne.s32.totalorder %s155, %s157
      %p164 = scmp.eq.s32.totalorder %s21, 3
      %p165 = por %p163, %p164
      %p166 = scmp.ne.s32.totalorder %s157, %s158
      %p167 = scmp.eq.s32.totalorder %s21, 0
      %p168 = por %p166, %p167
      %p169 = scmp.ne.s32.totalorder %s157, %s158
      %p170 = scmp.eq.s32.totalorder %s22, 3
      %p171 = por %p169, %p170
      %p173 = scmp.ne.s32.totalorder %s158, %s172
      %p174 = scmp.eq.s32.totalorder %s22, 0
      %p175 = por %p173, %p174
      %s177 = sadd.s32 %s176, 1
      %p180 = scmp.eq.s32.totalorder %s16, 3
      %p181 = scmp.ne.s32.totalorder %s176, %s178
      %p182 = scmp.eq.s32.totalorder %s16, 0
      %p183 = por %p181, %p182
      %p184 = scmp.ne.s32.totalorder %s176, %s178
      %p185 = scmp.eq.s32.totalorder %s21, 3
      %p186 = por %p184, %p185
      %p187 = scmp.ne.s32.totalorder %s178, %s179
      %p188 = scmp.eq.s32.totalorder %s21, 0
      %p189 = por %p187, %p188
      %p190 = scmp.ne.s32.totalorder %s178, %s179
      %p191 = scmp.eq.s32.totalorder %s22, 3
      %p192 = por %p190, %p191
      %p194 = scmp.ne.s32.totalorder %s179, %s193
      %p195 = scmp.eq.s32.totalorder %s22, 0
      %p196 = por %p194, %p195
      %s197 = smul.u32 %s24, %s25
      %s198 = smul.u32 %s38, %s34
      %s199 = ssub.s32 %s23, %s42
      %s200 = ssub.s32 %s197, %s198
      %s201 = sor.u32 %s199, %s200
      %p202 = scmp.eq.s32.totalorder %s201, 0
      %s204 = sadd.s32 %s203, 1
      %s205 = scalar_select %p202, %s203, %s204
      %p208 = pneg %p202
      %p209 = scmp.eq.s32.totalorder %s16, 3
      %p210 = por %p208, %p209
      %p211 = scmp.ne.s32.totalorder %s203, %s206
      %p212 = scmp.eq.s32.totalorder %s16, 0
      %p213 = por %p211, %p212
      %p214 = scmp.ne.s32.totalorder %s203, %s206
      %p215 = scmp.eq.s32.totalorder %s21, 3
      %p216 = por %p214, %p215
      %p217 = scmp.ne.s32.totalorder %s206, %s207
      %p218 = scmp.eq.s32.totalorder %s21, 0
      %p219 = por %p217, %p218
      %p220 = scmp.ne.s32.totalorder %s206, %s207
      %p221 = scmp.eq.s32.totalorder %s22, 3
      %p222 = por %p220, %p221
      %p224 = scmp.ne.s32.totalorder %s207, %s223
      %p225 = scmp.eq.s32.totalorder %s22, 0
      %p226 = por %p224, %p225
      %p227 = scmp.le.s32.totalorder 1, %s16
      %p228 = scmp.lt.s32.totalorder %s16, 5
      %p229 = pnand %p227, %p228
      %p230 = pneg %p229
      // Predicated region
      $region9: #{tpu_custom_call.1} parent=5 // pred_check
        _
      $region10: #{tpu_custom_call.1} parent=5 // pred_check_branch
        %232 = sbr.rel (%p229) target = $region12
      $region11: #{tpu_custom_call.1} parent=5 // pred_region
        %s233 = ssub.s32 %s16, 1
        // Predicated region
        $region13: #{tpu_custom_call.1} parent=11 // pred_check
          %p234 = pneg %p84
        $region14: #{tpu_custom_call.1} parent=11 // pred_check_branch
          %236 = sbr.rel (%p234) target = $region16
        $region15: #{tpu_custom_call.1} parent=11 // pred_region
          _
        $region16: #{tpu_custom_call.1} parent=11 // pred_fallthru
          _
        // Predicated region
        $region17: #{tpu_custom_call.1} parent=11 // pred_check
          %p237 = pneg %p105
        $region18: #{tpu_custom_call.1} parent=11 // pred_check_branch
          %239 = sbr.rel (%p237) target = $region20
        $region19: #{tpu_custom_call.1} parent=11 // pred_region
          _
        $region20: #{tpu_custom_call.1} parent=11 // pred_fallthru
          _
        // Predicated region
        $region21: #{tpu_custom_call.1} parent=11 // pred_check
          %p240 = pneg %p126
        $region22: #{tpu_custom_call.1} parent=11 // pred_check_branch
          %242 = sbr.rel (%p240) target = $region24
        $region23: #{tpu_custom_call.1} parent=11 // pred_region
          _
        $region24: #{tpu_custom_call.1} parent=11 // pred_fallthru
          _
        // Predicated region
        $region25: #{tpu_custom_call.1} parent=11 // pred_check
          %p243 = pneg %p147
        $region26: #{tpu_custom_call.1} parent=11 // pred_check_branch
          %245 = sbr.rel (%p243) target = $region28
        $region27: #{tpu_custom_call.1} parent=11 // pred_region
          _
        $region28: #{tpu_custom_call.1} parent=11 // pred_fallthru
          _
        // Predicated region
        $region29: #{tpu_custom_call.1} parent=11 // pred_check
          %p246 = pneg %p168
        $region30: #{tpu_custom_call.1} parent=11 // pred_check_branch
          %248 = sbr.rel (%p246) target = $region32
        $region31: #{tpu_custom_call.1} parent=11 // pred_region
          _
        $region32: #{tpu_custom_call.1} parent=11 // pred_fallthru
          _
        // Predicated region
        $region33: #{tpu_custom_call.1} parent=11 // pred_check
          %p249 = pneg %p189
        $region34: #{tpu_custom_call.1} parent=11 // pred_check_branch
          %251 = sbr.rel (%p249) target = $region36
        $region35: #{tpu_custom_call.1} parent=11 // pred_region
          _
        $region36: #{tpu_custom_call.1} parent=11 // pred_fallthru
          _
      $region12: #{tpu_custom_call.1} parent=5 // pred_fallthru
        _
      %p252 = scmp.lt.s32.totalorder %s16, 4
      // Predicated region
      $region37: #{tpu_custom_call.1} parent=5 // pred_check
        %p253 = pneg %p252
      $region38: #{tpu_custom_call.1} parent=5 // pred_check_branch
        %255 = sbr.rel (%p253) target = $region40
      $region39: #{tpu_custom_call.1} parent=5 // pred_region
        // Predicated region
        $region41: #{tpu_custom_call.1} parent=39 // pred_check
          %p256 = pneg %p57
        $region42: #{tpu_custom_call.1} parent=39 // pred_check_branch
          %258 = sbr.rel (%p256) target = $region44
        $region43: #{tpu_custom_call.1} parent=39 // pred_region
          %p259 = scmp.lt.s32.totalorder %s23, 1
          %s260 = scalar_select %p259, %s23, 1
          %p261 = scmp.lt.s32.totalorder %s25, 0
          %s262 = scalar_select %p261, %s25, 0
          %s263 = sadd.s32 %s262, %s260
          %s264 = smul.addr %s263, 8
          %s265 = scalar_lea.vmem %s0, %s264
        $region44: #{tpu_custom_call.1} parent=39 // pred_fallthru
          _
      $region40: #{tpu_custom_call.1} parent=5 // pred_fallthru
        _
      %p266 = scmp.le.s32.totalorder 1, %s16
      %p267 = scmp.lt.s32.totalorder %s16, 5
      %p268 = pnand %p266, %p267
      %p269 = pneg %p268
      // Predicated region
      $region45: #{tpu_custom_call.1} parent=5 // pred_check
        _
      $region46: #{tpu_custom_call.1} parent=5 // pred_check_branch
        %271 = sbr.rel (%p268) target = $region48
      $region47: #{tpu_custom_call.1} parent=5 // pred_region
        %s272 = ssub.s32 %s16, 1
        %p273 = scmp.lt.s32.totalorder %s26, 1
        %s274 = scalar_select %p273, %s26, 1
        %p275 = scmp.lt.s32.totalorder %s28, 0
        %s276 = scalar_select %p275, %s28, 0
        %s277 = sadd.s32 %s276, %s274
        %s278 = smul.addr %s277, 8
        %s279 = scalar_lea.vmem %s0, %s278
        %p280 = pneg %p63
        %p281 = pneg %p60
        %p282 = pneg %p84
        %p283 = pneg %p81
        %p284 = pneg %p105
        %p285 = pneg %p102
        %p286 = pneg %p126
        %p287 = pneg %p123
        %p288 = pneg %p147
        %p289 = pneg %p144
        %p290 = pneg %p168
        %p291 = pneg %p165
        %p292 = pneg %p189
        %p293 = pneg %p186
        %p294 = pneg %p219
        %p295 = pneg %p216
        %s296 = sand.u32 %s206, 1
        %s297 = scalar_lea.sflag [#allocation4], %s296
        %s298 = sand.u32 %s206, 1
        %s299 = smul.addr %s298, 8
        %s300 = scalar_lea.vmem [#allocation3], %s299
        %p301 = scmp.lt.s32.totalorder %s26, 1
        %s302 = scalar_select %p301, %s26, 1
        %p303 = scmp.lt.s32.totalorder %s28, 0
        %s304 = scalar_select %p303, %s28, 0
        %s305 = sadd.s32 %s304, %s302
        %s306 = smul.addr %s305, 8
        %s307 = scalar_lea.vmem %s0, %s306
        %s308 = smul.u32 %s27, %s28
        %p309 = scmp.eq.s32.totalorder %s27, 0
        %p310 = scmp.eq.s32.totalorder %s28, 0
        %p311 = pnand %p309, %p310
        %p312 = pneg %p311
        // Predicated region
        $region49: #{tpu_custom_call.1} parent=47 // pred_check
          _
        $region50: #{tpu_custom_call.1} parent=47 // pred_check_branch
          %314 = sbr.rel (%p311) target = $region52
        $region51: #{tpu_custom_call.1} parent=47 // pred_region
          %vm315 = vcmask 523264
          %316 = vst.msk [vmem:[#allocation2] sm:$0xff] %vm315, 0.0
          %317 = vst.msk [vmem:[#allocation2 + $0x8] sm:$0xff] %vm315, 0.0
          %318 = vst.msk [vmem:[#allocation2 + $0x10] sm:$0xff] %vm315, 0.0
          %319 = vst.msk [vmem:[#allocation2 + $0x18] sm:$0xff] %vm315, 0.0
          %320 = vst.msk [vmem:[#allocation2 + $0x20] sm:$0xff] %vm315, 0.0
          %321 = vst.msk [vmem:[#allocation2 + $0x28] sm:$0xff] %vm315, 0.0
          %322 = vst.msk [vmem:[#allocation2 + $0x30] sm:$0xff] %vm315, 0.0
          %323 = vst.msk [vmem:[#allocation2 + $0x38] sm:$0xff] %vm315, 0.0
          %324 = vst.msk [vmem:[#allocation2 + $0x40] sm:$0xff] %vm315, 0.0
          %325 = vst.msk [vmem:[#allocation2 + $0x48] sm:$0xff] %vm315, 0.0
          %326 = vst.msk [vmem:[#allocation2 + $0x50] sm:$0xff] %vm315, 0.0
          %327 = vst.msk [vmem:[#allocation2 + $0x58] sm:$0xff] %vm315, 0.0
          %328 = vst.msk [vmem:[#allocation2 + $0x60] sm:$0xff] %vm315, 0.0
          %329 = vst.msk [vmem:[#allocation2 + $0x68] sm:$0xff] %vm315, 0.0
          %330 = vst.msk [vmem:[#allocation2 + $0x70] sm:$0xff] %vm315, 0.0
          %331 = vst.msk [vmem:[#allocation2 + $0x78] sm:$0xff] %vm315, 0.0
          %332 = vst.msk [vmem:[#allocation2 + $0x80] sm:$0xff] %vm315, 0.0
          %333 = vst.msk [vmem:[#allocation2 + $0x88] sm:$0xff] %vm315, 0.0
          %334 = vst.msk [vmem:[#allocation2 + $0x90] sm:$0xff] %vm315, 0.0
          %335 = vst.msk [vmem:[#allocation2 + $0x98] sm:$0xff] %vm315, 0.0
          %336 = vst.msk [vmem:[#allocation2 + $0xa0] sm:$0xff] %vm315, 0.0
          %337 = vst.msk [vmem:[#allocation2 + $0xa8] sm:$0xff] %vm315, 0.0
          %338 = vst.msk [vmem:[#allocation2 + $0xb0] sm:$0xff] %vm315, 0.0
          %339 = vst.msk [vmem:[#allocation2 + $0xb8] sm:$0xff] %vm315, 0.0
          %340 = vst.msk [vmem:[#allocation2 + $0xc0] sm:$0xff] %vm315, 0.0
          %341 = vst.msk [vmem:[#allocation2 + $0xc8] sm:$0xff] %vm315, 0.0
          %342 = vst.msk [vmem:[#allocation2 + $0xd0] sm:$0xff] %vm315, 0.0
          %343 = vst.msk [vmem:[#allocation2 + $0xd8] sm:$0xff] %vm315, 0.0
          %344 = vst.msk [vmem:[#allocation2 + $0xe0] sm:$0xff] %vm315, 0.0
          %345 = vst.msk [vmem:[#allocation2 + $0xe8] sm:$0xff] %vm315, 0.0
          %346 = vst.msk [vmem:[#allocation2 + $0xf0] sm:$0xff] %vm315, 0.0
          %347 = vst.msk [vmem:[#allocation2 + $0xf8] sm:$0xff] %vm315, 0.0
        $region52: #{tpu_custom_call.1} parent=47 // pred_fallthru
          _
        // Predicated region
        $region53: #{tpu_custom_call.1} parent=47 // pred_check
          %p348 = pneg %p309
        $region54: #{tpu_custom_call.1} parent=47 // pred_check_branch
          %350 = sbr.rel (%p348) target = $region56
        $region55: #{tpu_custom_call.1} parent=47 // pred_region
          %v351 = vld [vmem:[%s307] sm:$0xff]
          %v352 = vld [vmem:[%s1] sm:$0xff]
          %v353 = vld [vmem:[%s1 + $0x8] sm:$0xff]
          %v354 = vld [vmem:[%s1 + $0x10] sm:$0xff]
          %v355 = vld [vmem:[%s1 + $0x18] sm:$0xff]
          %v356 = vld [vmem:[%s2] sm:$0x1]
          %v358 = vlaneseq
          %v359 = vshrl.u32 %v358, 7
          %v360 = vsub.s32 0, %v359
          %v361 = vrot.slane %v356, %v360
          %366 = vrot.lane.b32.xlu0 %v352, 96
          %v367 = vpop.permute.xlu0 %366
          %368 = vrot.lane.b32.xlu0 %v353, 96
          %v369 = vpop.permute.xlu0 %368
          %370 = vrot.lane.b32.xlu0 %v354, 96
          %v371 = vpop.permute.xlu0 %370
          %372 = vrot.lane.b32.xlu0 %v355, 96
          %v373 = vpop.permute.xlu0 %372
          %378 = vrot.lane.b32.xlu0 %v361, 96
          %v379 = vpop.permute.xlu0 %378
          %vm381 = vcmask 261120
          %v383 = vsel %vm381, %v351, 0
          %385 = vmatprep.subr.mxu0 0.0
          %386 = vmatpush1.msra.mxu0 %v367
          %387 = vmatprep.subr.mxu0 0.0
          %388 = vmatpush1.msra.mxu0 %v369
          %389 = vmatprep.subr.mxu0 0.0
          %390 = vmatpush1.msra.mxu0 %v371
          %391 = vmatprep.subr.mxu0 0.0
          %392 = vmatpush1.msra.mxu0 %v373
          %393 = vmatprep.subr.mxu0 0.0
          %394 = vmatpush1.msra.mxu0 0.0
          %395 = vmatprep.subr.mxu0 0.0
          %396 = vmatpush1.msra.mxu0 0.0
          %397 = vmatprep.subr.mxu0 0.0
          %398 = vmatpush1.msra.mxu0 0.0
          %399 = vmatprep.subr.mxu0 0.0
          %400 = vmatpush1.msra.mxu0 0.0
          %401 = vmatprep.subr.mxu0 0.0
          %402 = vmatpush1.msra.mxu0 0.0
          %403 = vmatprep.subr.mxu0 0.0
          %404 = vmatpush1.msra.mxu0 0.0
          %405 = vmatprep.subr.mxu0 0.0
          %406 = vmatpush1.msra.mxu0 0.0
          %407 = vmatprep.subr.mxu0 0.0
          %408 = vmatpush1.msra.mxu0 0.0
          %409 = vmatprep.subr.mxu0 0.0
          %410 = vmatpush1.msra.mxu0 0.0
          %411 = vmatprep.subr.mxu0 0.0
          %412 = vmatpush1.msra.mxu0 0.0
          %413 = vmatprep.subr.mxu0 0.0
          %414 = vmatpush1.msra.mxu0 0.0
          %415 = vmatprep.subr.mxu0 0.0
          %416 = vmatpush1.msra.mxu0 0.0
          %417 = vmatprep.subr.mxu0 0.0
          %418 = vmatpush1.msra.mxu0 0.0
          %419 = vmatprep.subr.mxu0 0.0
          %420 = vmatpush1.msra.mxu0 0.0
          %421 = vmatprep.subr.mxu0 0.0
          %422 = vmatpush1.msra.mxu0 0.0
          %423 = vmatprep.subr.mxu0 0.0
          %424 = vmatpush1.msra.mxu0 0.0
          %425 = vmatprep.subr.mxu0 0.0
          %426 = vmatpush1.msra.mxu0 0.0
          %427 = vmatprep.subr.mxu0 0.0
          %428 = vmatpush1.msra.mxu0 0.0
          %429 = vmatprep.subr.mxu0 0.0
          %430 = vmatpush1.msra.mxu0 0.0
          %431 = vmatprep.subr.mxu0 0.0
          %432 = vmatpush1.msra.mxu0 0.0
          %433 = vmatprep.subr.mxu0 0.0
          %434 = vmatpush1.msra.mxu0 0.0
          %435 = vmatprep.subr.mxu0 0.0
          %436 = vmatpush1.msra.mxu0 0.0
          %437 = vmatprep.subr.mxu0 0.0
          %438 = vmatpush1.msra.mxu0 0.0
          %439 = vmatprep.subr.mxu0 0.0
          %440 = vmatpush1.msra.mxu0 0.0
          %441 = vmatprep.subr.mxu0 0.0
          %442 = vmatpush1.msra.mxu0 0.0
          %443 = vmatprep.subr.mxu0 0.0
          %444 = vmatpush1.msra.mxu0 0.0
          %445 = vmatprep.subr.mxu0 0.0
          %446 = vmatpush1.msra.mxu0 0.0
          %447 = vmatprep.subr.mxu0 0.0
          %448 = vmatpush1.msra.mxu0 0.0
          %449 = vmatprep.mubr.f32.mxu0 0.0
          %450 = vmatmul.mubr.f32.gmra.mrb[0].mxu0 %v383
          %v451 = vpop.f32.mrb[0].mxu0
          %v452 = vadd.f32 %v379, %v451
          %v453 = vpop.f32.mrb[0].mxu0
          %454 = vdwg.mxu0
          %v455 = vld [vmem:[%s3] sm:$0xff]
          %v456 = vld [vmem:[%s3 + $0x8] sm:$0xff]
          %v457 = vld [vmem:[%s3 + $0x10] sm:$0xff]
          %v458 = vld [vmem:[%s3 + $0x18] sm:$0xff]
          %v459 = vld [vmem:[%s3 + $0x20] sm:$0xff]
          %v460 = vld [vmem:[%s3 + $0x28] sm:$0xff]
          %v461 = vld [vmem:[%s3 + $0x30] sm:$0xff]
          %v462 = vld [vmem:[%s3 + $0x38] sm:$0xff]
          %v464 = vsel %vm381, %v452, 0
          %466 = vmatprep.subr.mxu0 %v456
          %467 = vmatpush1.msra.mxu0 %v455
          %468 = vmatprep.subr.mxu0 %v458
          %469 = vmatpush1.msra.mxu0 %v457
          %470 = vmatprep.subr.mxu0 %v460
          %471 = vmatpush1.msra.mxu0 %v459
          %472 = vmatprep.subr.mxu0 %v462
          %473 = vmatpush1.msra.mxu0 %v461
          %474 = vmatprep.subr.mxu0 0.0
          %475 = vmatpush1.msra.mxu0 0.0
          %476 = vmatprep.subr.mxu0 0.0
          %477 = vmatpush1.msra.mxu0 0.0
          %478 = vmatprep.subr.mxu0 0.0
          %479 = vmatpush1.msra.mxu0 0.0
          %480 = vmatprep.subr.mxu0 0.0
          %481 = vmatpush1.msra.mxu0 0.0
          %482 = vmatprep.subr.mxu0 0.0
          %483 = vmatpush1.msra.mxu0 0.0
          %484 = vmatprep.subr.mxu0 0.0
          %485 = vmatpush1.msra.mxu0 0.0
          %486 = vmatprep.subr.mxu0 0.0
          %487 = vmatpush1.msra.mxu0 0.0
          %488 = vmatprep.subr.mxu0 0.0
          %489 = vmatpush1.msra.mxu0 0.0
          %490 = vmatprep.subr.mxu0 0.0
          %491 = vmatpush1.msra.mxu0 0.0
          %492 = vmatprep.subr.mxu0 0.0
          %493 = vmatpush1.msra.mxu0 0.0
          %494 = vmatprep.subr.mxu0 0.0
          %495 = vmatpush1.msra.mxu0 0.0
          %496 = vmatprep.subr.mxu0 0.0
          %497 = vmatpush1.msra.mxu0 0.0
          %498 = vmatprep.subr.mxu0 0.0
          %499 = vmatpush1.msra.mxu0 0.0
          %500 = vmatprep.subr.mxu0 0.0
          %501 = vmatpush1.msra.mxu0 0.0
          %502 = vmatprep.subr.mxu0 0.0
          %503 = vmatpush1.msra.mxu0 0.0
          %504 = vmatprep.subr.mxu0 0.0
          %505 = vmatpush1.msra.mxu0 0.0
          %506 = vmatprep.subr.mxu0 0.0
          %507 = vmatpush1.msra.mxu0 0.0
          %508 = vmatprep.subr.mxu0 0.0
          %509 = vmatpush1.msra.mxu0 0.0
          %510 = vmatprep.subr.mxu0 0.0
          %511 = vmatpush1.msra.mxu0 0.0
          %512 = vmatprep.subr.mxu0 0.0
          %513 = vmatpush1.msra.mxu0 0.0
          %514 = vmatprep.subr.mxu0 0.0
          %515 = vmatpush1.msra.mxu0 0.0
          %516 = vmatprep.subr.mxu0 0.0
          %517 = vmatpush1.msra.mxu0 0.0
          %518 = vmatprep.subr.mxu0 0.0
          %519 = vmatpush1.msra.mxu0 0.0
          %520 = vmatprep.subr.mxu0 0.0
          %521 = vmatpush1.msra.mxu0 0.0
          %522 = vmatprep.subr.mxu0 0.0
          %523 = vmatpush1.msra.mxu0 0.0
          %524 = vmatprep.subr.mxu0 0.0
          %525 = vmatpush1.msra.mxu0 0.0
          %526 = vmatprep.subr.mxu0 0.0
          %527 = vmatpush1.msra.mxu0 0.0
          %528 = vmatprep.subr.mxu0 0.0
          %529 = vmatpush1.msra.mxu0 0.0
          %530 = vmatprep.mubr.f32.mxu0 0.0
          %531 = vmatmul.mubr.f32.gmra.mrb[0].mxu0 %v464
          %v532 = vpop.f32.mrb[0].mxu0
          %v533 = vadd.f32 0.0, %v532
          %v534 = vpop.f32.mrb[0].mxu0
          %v535 = vadd.f32 0.0, %v534
          %536 = vdwg.mxu0
          %v537 = vmax.f32 %v533, 0.0
          %v538 = vmax.f32 %v535, 0.0
          %539 = vrot.lane.b32.xlu0 %v452, 96
          %v540 = vpop.permute.xlu0 %539
          %v542 = vsel %vm381, %v540, 1.0
          %v543 = vld [vmem:[#allocation2] sm:$0xff]
          %v544 = vld [vmem:[#allocation2 + $0x8] sm:$0xff]
          %v545 = vld [vmem:[#allocation2 + $0x10] sm:$0xff]
          %v546 = vld [vmem:[#allocation2 + $0x18] sm:$0xff]
          %v547 = vld [vmem:[#allocation2 + $0x20] sm:$0xff]
          %v548 = vld [vmem:[#allocation2 + $0x28] sm:$0xff]
          %v549 = vld [vmem:[#allocation2 + $0x30] sm:$0xff]
          %v550 = vld [vmem:[#allocation2 + $0x38] sm:$0xff]
          %v551 = vld [vmem:[#allocation2 + $0x40] sm:$0xff]
          %v552 = vld [vmem:[#allocation2 + $0x48] sm:$0xff]
          %v553 = vld [vmem:[#allocation2 + $0x50] sm:$0xff]
          %v554 = vld [vmem:[#allocation2 + $0x58] sm:$0xff]
          %v555 = vld [vmem:[#allocation2 + $0x60] sm:$0xff]
          %v556 = vld [vmem:[#allocation2 + $0x68] sm:$0xff]
          %v557 = vld [vmem:[#allocation2 + $0x70] sm:$0xff]
          %v558 = vld [vmem:[#allocation2 + $0x78] sm:$0xff]
          %v559 = vld [vmem:[#allocation2 + $0x80] sm:$0xff]
          %v560 = vld [vmem:[#allocation2 + $0x88] sm:$0xff]
          %v561 = vld [vmem:[#allocation2 + $0x90] sm:$0xff]
          %v562 = vld [vmem:[#allocation2 + $0x98] sm:$0xff]
          %v563 = vld [vmem:[#allocation2 + $0xa0] sm:$0xff]
          %v564 = vld [vmem:[#allocation2 + $0xa8] sm:$0xff]
          %v565 = vld [vmem:[#allocation2 + $0xb0] sm:$0xff]
          %v566 = vld [vmem:[#allocation2 + $0xb8] sm:$0xff]
          %v567 = vld [vmem:[#allocation2 + $0xc0] sm:$0xff]
          %v568 = vld [vmem:[#allocation2 + $0xc8] sm:$0xff]
          %v569 = vld [vmem:[#allocation2 + $0xd0] sm:$0xff]
          %v570 = vld [vmem:[#allocation2 + $0xd8] sm:$0xff]
          %v571 = vld [vmem:[#allocation2 + $0xe0] sm:$0xff]
          %v572 = vld [vmem:[#allocation2 + $0xe8] sm:$0xff]
          %v573 = vld [vmem:[#allocation2 + $0xf0] sm:$0xff]
          %v574 = vld [vmem:[#allocation2 + $0xf8] sm:$0xff]
          %575 = vxpose.xlu0.b32.start [1/16] %v537, 128
          %576 = vxpose.xlu0.b32.cont [2/16] 0.0, 128
          %577 = vxpose.xlu0.b32.cont [3/16] 0.0, 128
          %578 = vxpose.xlu0.b32.cont [4/16] 0.0, 128
          %579 = vxpose.xlu0.b32.cont [5/16] 0.0, 128
          %580 = vxpose.xlu0.b32.cont [6/16] 0.0, 128
          %581 = vxpose.xlu0.b32.cont [7/16] 0.0, 128
          %582 = vxpose.xlu0.b32.cont [8/16] 0.0, 128
          %583 = vxpose.xlu0.b32.cont [9/16] 0.0, 128
          %584 = vxpose.xlu0.b32.cont [10/16] 0.0, 128
          %585 = vxpose.xlu0.b32.cont [11/16] 0.0, 128
          %586 = vxpose.xlu0.b32.cont [12/16] 0.0, 128
          %587 = vxpose.xlu0.b32.cont [13/16] 0.0, 128
          %588 = vxpose.xlu0.b32.cont [14/16] 0.0, 128
          %589 = vxpose.xlu0.b32.cont [15/16] 0.0, 128
          %590 = vxpose.xlu0.b32.end [16/16] 0.0, 128
          %v591 = vpop.trf.xlu0
          %v592 = vpop.trf.xlu0
          %v593 = vpop.trf.xlu0
          %v594 = vpop.trf.xlu0
          %v595 = vpop.trf.xlu0
          %v596 = vpop.trf.xlu0
          %v597 = vpop.trf.xlu0
          %v598 = vpop.trf.xlu0
          %v599 = vpop.trf.xlu0
          %v600 = vpop.trf.xlu0
          %v601 = vpop.trf.xlu0
          %v602 = vpop.trf.xlu0
          %v603 = vpop.trf.xlu0
          %v604 = vpop.trf.xlu0
          %v605 = vpop.trf.xlu0
          %v606 = vpop.trf.xlu0
          %607 = vxpose.xlu0.b32.start [1/16] %v538, 128
          %608 = vxpose.xlu0.b32.cont [2/16] 0.0, 128
          %609 = vxpose.xlu0.b32.cont [3/16] 0.0, 128
          %610 = vxpose.xlu0.b32.cont [4/16] 0.0, 128
          %611 = vxpose.xlu0.b32.cont [5/16] 0.0, 128
          %612 = vxpose.xlu0.b32.cont [6/16] 0.0, 128
          %613 = vxpose.xlu0.b32.cont [7/16] 0.0, 128
          %614 = vxpose.xlu0.b32.cont [8/16] 0.0, 128
          %615 = vxpose.xlu0.b32.cont [9/16] 0.0, 128
          %616 = vxpose.xlu0.b32.cont [10/16] 0.0, 128
          %617 = vxpose.xlu0.b32.cont [11/16] 0.0, 128
          %618 = vxpose.xlu0.b32.cont [12/16] 0.0, 128
          %619 = vxpose.xlu0.b32.cont [13/16] 0.0, 128
          %620 = vxpose.xlu0.b32.cont [14/16] 0.0, 128
          %621 = vxpose.xlu0.b32.cont [15/16] 0.0, 128
          %622 = vxpose.xlu0.b32.end [16/16] 0.0, 128
          %v623 = vpop.trf.xlu0
          %v624 = vpop.trf.xlu0
          %v625 = vpop.trf.xlu0
          %v626 = vpop.trf.xlu0
          %v627 = vpop.trf.xlu0
          %v628 = vpop.trf.xlu0
          %v629 = vpop.trf.xlu0
          %v630 = vpop.trf.xlu0
          %v631 = vpop.trf.xlu0
          %v632 = vpop.trf.xlu0
          %v633 = vpop.trf.xlu0
          %v634 = vpop.trf.xlu0
          %v635 = vpop.trf.xlu0
          %v636 = vpop.trf.xlu0
          %v637 = vpop.trf.xlu0
          %v638 = vpop.trf.xlu0
          %vm639 = vcmask 64512
          %v641 = vsel %vm639, %v591, 0
          %v644 = vsel %vm639, %v592, 0
          %v647 = vsel %vm639, %v593, 0
          %v650 = vsel %vm639, %v594, 0
          %v653 = vsel %vm639, %v595, 0
          %v656 = vsel %vm639, %v596, 0
          %v659 = vsel %vm639, %v597, 0
          %v662 = vsel %vm639, %v598, 0
          %v665 = vsel %vm639, %v599, 0
          %v668 = vsel %vm639, %v600, 0
          %v671 = vsel %vm639, %v601, 0
          %v674 = vsel %vm639, %v602, 0
          %v677 = vsel %vm639, %v603, 0
          %v680 = vsel %vm639, %v604, 0
          %v683 = vsel %vm639, %v605, 0
          %v686 = vsel %vm639, %v606, 0
          %v689 = vsel %vm639, %v623, 0
          %v692 = vsel %vm639, %v624, 0
          %v695 = vsel %vm639, %v625, 0
          %v698 = vsel %vm639, %v626, 0
          %v701 = vsel %vm639, %v627, 0
          %v704 = vsel %vm639, %v628, 0
          %v707 = vsel %vm639, %v629, 0
          %v710 = vsel %vm639, %v630, 0
          %v713 = vsel %vm639, %v631, 0
          %v716 = vsel %vm639, %v632, 0
          %v719 = vsel %vm639, %v633, 0
          %v722 = vsel %vm639, %v634, 0
          %v725 = vsel %vm639, %v635, 0
          %v728 = vsel %vm639, %v636, 0
          %v731 = vsel %vm639, %v637, 0
          %v734 = vsel %vm639, %v638, 0
          %736 = vmatprep.subr.mxu0 0.0
          %737 = vmatpush1.msra.mxu0 %v542
          %738 = vmatprep.subr.mxu0 0.0
          %739 = vmatpush1.msra.mxu0 0.0
          %740 = vmatprep.subr.mxu0 0.0
          %741 = vmatpush1.msra.mxu0 0.0
          %742 = vmatprep.subr.mxu0 0.0
          %743 = vmatpush1.msra.mxu0 0.0
          %744 = vmatprep.subr.mxu0 0.0
          %745 = vmatpush1.msra.mxu0 0.0
          %746 = vmatprep.subr.mxu0 0.0
          %747 = vmatpush1.msra.mxu0 0.0
          %748 = vmatprep.subr.mxu0 0.0
          %749 = vmatpush1.msra.mxu0 0.0
          %750 = vmatprep.subr.mxu0 0.0
          %751 = vmatpush1.msra.mxu0 0.0
          %752 = vmatprep.subr.mxu0 0.0
          %753 = vmatpush1.msra.mxu0 0.0
          %754 = vmatprep.subr.mxu0 0.0
          %755 = vmatpush1.msra.mxu0 0.0
          %756 = vmatprep.subr.mxu0 0.0
          %757 = vmatpush1.msra.mxu0 0.0
          %758 = vmatprep.subr.mxu0 0.0
          %759 = vmatpush1.msra.mxu0 0.0
          %760 = vmatprep.subr.mxu0 0.0
          %761 = vmatpush1.msra.mxu0 0.0
          %762 = vmatprep.subr.mxu0 0.0
          %763 = vmatpush1.msra.mxu0 0.0
          %764 = vmatprep.subr.mxu0 0.0
          %765 = vmatpush1.msra.mxu0 0.0
          %766 = vmatprep.subr.mxu0 0.0
          %767 = vmatpush1.msra.mxu0 0.0
          %768 = vmatprep.subr.mxu0 0.0
          %769 = vmatpush1.msra.mxu0 0.0
          %770 = vmatprep.subr.mxu0 0.0
          %771 = vmatpush1.msra.mxu0 0.0
          %772 = vmatprep.subr.mxu0 0.0
          %773 = vmatpush1.msra.mxu0 0.0
          %774 = vmatprep.subr.mxu0 0.0
          %775 = vmatpush1.msra.mxu0 0.0
          %776 = vmatprep.subr.mxu0 0.0
          %777 = vmatpush1.msra.mxu0 0.0
          %778 = vmatprep.subr.mxu0 0.0
          %779 = vmatpush1.msra.mxu0 0.0
          %780 = vmatprep.subr.mxu0 0.0
          %781 = vmatpush1.msra.mxu0 0.0
          %782 = vmatprep.subr.mxu0 0.0
          %783 = vmatpush1.msra.mxu0 0.0
          %784 = vmatprep.subr.mxu0 0.0
          %785 = vmatpush1.msra.mxu0 0.0
          %786 = vmatprep.subr.mxu0 0.0
          %787 = vmatpush1.msra.mxu0 0.0
          %788 = vmatprep.subr.mxu0 0.0
          %789 = vmatpush1.msra.mxu0 0.0
          %790 = vmatprep.subr.mxu0 0.0
          %791 = vmatpush1.msra.mxu0 0.0
          %792 = vmatprep.subr.mxu0 0.0
          %793 = vmatpush1.msra.mxu0 0.0
          %794 = vmatprep.subr.mxu0 0.0
          %795 = vmatpush1.msra.mxu0 0.0
          %796 = vmatprep.subr.mxu0 0.0
          %797 = vmatpush1.msra.mxu0 0.0
          %798 = vmatprep.subr.mxu0 0.0
          %799 = vmatpush1.msra.mxu0 0.0
          %800 = vmatprep.mubr.f32.mxu0 0.0
          %801 = vmatmul.mubr.f32.gmra.mrb[0].mxu0 %v641
          %v802 = vpop.f32.mrb[0].mxu0
          %v803 = vadd.f32 0.0, %v802
          %v804 = vpop.f32.mrb[0].mxu0
          %805 = vmatprep.mubr.f32.mxu0 0.0
          %806 = vmatmul.mubr.f32.gmra.mrb[0].mxu0 %v644
          %v807 = vpop.f32.mrb[0].mxu0
          %v808 = vadd.f32 0.0, %v807
          %v809 = vpop.f32.mrb[0].mxu0
          %810 = vmatprep.mubr.f32.mxu0 0.0
          %811 = vmatmul.mubr.f32.gmra.mrb[0].mxu0 %v647
          %v812 = vpop.f32.mrb[0].mxu0
          %v813 = vadd.f32 0.0, %v812
          %v814 = vpop.f32.mrb[0].mxu0
          %815 = vmatprep.mubr.f32.mxu0 0.0
          %816 = vmatmul.mubr.f32.gmra.mrb[0].mxu0 %v650
          %v817 = vpop.f32.mrb[0].mxu0
          %v818 = vadd.f32 0.0, %v817
          %v819 = vpop.f32.mrb[0].mxu0
          %820 = vmatprep.mubr.f32.mxu0 0.0
          %821 = vmatmul.mubr.f32.gmra.mrb[0].mxu0 %v653
          %v822 = vpop.f32.mrb[0].mxu0
          %v823 = vadd.f32 0.0, %v822
          %v824 = vpop.f32.mrb[0].mxu0
          %825 = vmatprep.mubr.f32.mxu0 0.0
          %826 = vmatmul.mubr.f32.gmra.mrb[0].mxu0 %v656
          %v827 = vpop.f32.mrb[0].mxu0
          %v828 = vadd.f32 0.0, %v827
          %v829 = vpop.f32.mrb[0].mxu0
          %830 = vmatprep.mubr.f32.mxu0 0.0
          %831 = vmatmul.mubr.f32.gmra.mrb[0].mxu0 %v659
          %v832 = vpop.f32.mrb[0].mxu0
          %v833 = vadd.f32 0.0, %v832
          %v834 = vpop.f32.mrb[0].mxu0
          %835 = vmatprep.mubr.f32.mxu0 0.0
          %836 = vmatmul.mubr.f32.gmra.mrb[0].mxu0 %v662
          %v837 = vpop.f32.mrb[0].mxu0
          %v838 = vadd.f32 0.0, %v837
          %v839 = vpop.f32.mrb[0].mxu0
          %840 = vmatprep.mubr.f32.mxu0 0.0
          %841 = vmatmul.mubr.f32.gmra.mrb[0].mxu0 %v665
          %v842 = vpop.f32.mrb[0].mxu0
          %v843 = vadd.f32 0.0, %v842
          %v844 = vpop.f32.mrb[0].mxu0
          %845 = vmatprep.mubr.f32.mxu0 0.0
          %846 = vmatmul.mubr.f32.gmra.mrb[0].mxu0 %v668
          %v847 = vpop.f32.mrb[0].mxu0
          %v848 = vadd.f32 0.0, %v847
          %v849 = vpop.f32.mrb[0].mxu0
          %850 = vmatprep.mubr.f32.mxu0 0.0
          %851 = vmatmul.mubr.f32.gmra.mrb[0].mxu0 %v671
          %v852 = vpop.f32.mrb[0].mxu0
          %v853 = vadd.f32 0.0, %v852
          %v854 = vpop.f32.mrb[0].mxu0
          %855 = vmatprep.mubr.f32.mxu0 0.0
          %856 = vmatmul.mubr.f32.gmra.mrb[0].mxu0 %v674
          %v857 = vpop.f32.mrb[0].mxu0
          %v858 = vadd.f32 0.0, %v857
          %v859 = vpop.f32.mrb[0].mxu0
          %860 = vmatprep.mubr.f32.mxu0 0.0
          %861 = vmatmul.mubr.f32.gmra.mrb[0].mxu0 %v677
          %v862 = vpop.f32.mrb[0].mxu0
          %v863 = vadd.f32 0.0, %v862
          %v864 = vpop.f32.mrb[0].mxu0
          %865 = vmatprep.mubr.f32.mxu0 0.0
          %866 = vmatmul.mubr.f32.gmra.mrb[0].mxu0 %v680
          %v867 = vpop.f32.mrb[0].mxu0
          %v868 = vadd.f32 0.0, %v867
          %v869 = vpop.f32.mrb[0].mxu0
          %870 = vmatprep.mubr.f32.mxu0 0.0
          %871 = vmatmul.mubr.f32.gmra.mrb[0].mxu0 %v683
          %v872 = vpop.f32.mrb[0].mxu0
          %v873 = vadd.f32 0.0, %v872
          %v874 = vpop.f32.mrb[0].mxu0
          %875 = vmatprep.mubr.f32.mxu0 0.0
          %876 = vmatmul.mubr.f32.gmra.mrb[0].mxu0 %v686
          %v877 = vpop.f32.mrb[0].mxu0
          %v878 = vadd.f32 0.0, %v877
          %v879 = vpop.f32.mrb[0].mxu0
          %880 = vmatprep.mubr.f32.mxu0 0.0
          %881 = vmatmul.mubr.f32.gmra.mrb[0].mxu0 %v689
          %v882 = vpop.f32.mrb[0].mxu0
          %v883 = vadd.f32 0.0, %v882
          %v884 = vpop.f32.mrb[0].mxu0
          %885 = vmatprep.mubr.f32.mxu0 0.0
          %886 = vmatmul.mubr.f32.gmra.mrb[0].mxu0 %v692
          %v887 = vpop.f32.mrb[0].mxu0
          %v888 = vadd.f32 0.0, %v887
          %v889 = vpop.f32.mrb[0].mxu0
          %890 = vmatprep.mubr.f32.mxu0 0.0
          %891 = vmatmul.mubr.f32.gmra.mrb[0].mxu0 %v695
          %v892 = vpop.f32.mrb[0].mxu0
          %v893 = vadd.f32 0.0, %v892
          %v894 = vpop.f32.mrb[0].mxu0
          %895 = vmatprep.mubr.f32.mxu0 0.0
          %896 = vmatmul.mubr.f32.gmra.mrb[0].mxu0 %v698
          %v897 = vpop.f32.mrb[0].mxu0
          %v898 = vadd.f32 0.0, %v897
          %v899 = vpop.f32.mrb[0].mxu0
          %900 = vmatprep.mubr.f32.mxu0 0.0
          %901 = vmatmul.mubr.f32.gmra.mrb[0].mxu0 %v701
          %v902 = vpop.f32.mrb[0].mxu0
          %v903 = vadd.f32 0.0, %v902
          %v904 = vpop.f32.mrb[0].mxu0
          %905 = vmatprep.mubr.f32.mxu0 0.0
          %906 = vmatmul.mubr.f32.gmra.mrb[0].mxu0 %v704
          %v907 = vpop.f32.mrb[0].mxu0
          %v908 = vadd.f32 0.0, %v907
          %v909 = vpop.f32.mrb[0].mxu0
          %910 = vmatprep.mubr.f32.mxu0 0.0
          %911 = vmatmul.mubr.f32.gmra.mrb[0].mxu0 %v707
          %v912 = vpop.f32.mrb[0].mxu0
          %v913 = vadd.f32 0.0, %v912
          %v914 = vpop.f32.mrb[0].mxu0
          %915 = vmatprep.mubr.f32.mxu0 0.0
          %916 = vmatmul.mubr.f32.gmra.mrb[0].mxu0 %v710
          %v917 = vpop.f32.mrb[0].mxu0
          %v918 = vadd.f32 0.0, %v917
          %v919 = vpop.f32.mrb[0].mxu0
          %920 = vmatprep.mubr.f32.mxu0 0.0
          %921 = vmatmul.mubr.f32.gmra.mrb[0].mxu0 %v713
          %v922 = vpop.f32.mrb[0].mxu0
          %v923 = vadd.f32 0.0, %v922
          %v924 = vpop.f32.mrb[0].mxu0
          %925 = vmatprep.mubr.f32.mxu0 0.0
          %926 = vmatmul.mubr.f32.gmra.mrb[0].mxu0 %v716
          %v927 = vpop.f32.mrb[0].mxu0
          %v928 = vadd.f32 0.0, %v927
          %v929 = vpop.f32.mrb[0].mxu0
          %930 = vmatprep.mubr.f32.mxu0 0.0
          %931 = vmatmul.mubr.f32.gmra.mrb[0].mxu0 %v719
          %v932 = vpop.f32.mrb[0].mxu0
          %v933 = vadd.f32 0.0, %v932
          %v934 = vpop.f32.mrb[0].mxu0
          %935 = vmatprep.mubr.f32.mxu0 0.0
          %936 = vmatmul.mubr.f32.gmra.mrb[0].mxu0 %v722
          %v937 = vpop.f32.mrb[0].mxu0
          %v938 = vadd.f32 0.0, %v937
          %v939 = vpop.f32.mrb[0].mxu0
          %940 = vmatprep.mubr.f32.mxu0 0.0
          %941 = vmatmul.mubr.f32.gmra.mrb[0].mxu0 %v725
          %v942 = vpop.f32.mrb[0].mxu0
          %v943 = vadd.f32 0.0, %v942
          %v944 = vpop.f32.mrb[0].mxu0
          %945 = vmatprep.mubr.f32.mxu0 0.0
          %946 = vmatmul.mubr.f32.gmra.mrb[0].mxu0 %v728
          %v947 = vpop.f32.mrb[0].mxu0
          %v948 = vadd.f32 0.0, %v947
          %v949 = vpop.f32.mrb[0].mxu0
          %950 = vmatprep.mubr.f32.mxu0 0.0
          %951 = vmatmul.mubr.f32.gmra.mrb[0].mxu0 %v731
          %v952 = vpop.f32.mrb[0].mxu0
          %v953 = vadd.f32 0.0, %v952
          %v954 = vpop.f32.mrb[0].mxu0
          %955 = vmatprep.mubr.f32.mxu0 0.0
          %956 = vmatmul.mubr.f32.gmra.mrb[0].mxu0 %v734
          %v957 = vpop.f32.mrb[0].mxu0
          %v958 = vadd.f32 0.0, %v957
          %v959 = vpop.f32.mrb[0].mxu0
          %960 = vdwg.mxu0
          %v961 = vadd.f32 %v543, %v803
          %v962 = vadd.f32 %v544, %v808
          %v963 = vadd.f32 %v545, %v813
          %v964 = vadd.f32 %v546, %v818
          %v965 = vadd.f32 %v547, %v823
          %v966 = vadd.f32 %v548, %v828
          %v967 = vadd.f32 %v549, %v833
          %v968 = vadd.f32 %v550, %v838
          %v969 = vadd.f32 %v551, %v843
          %v970 = vadd.f32 %v552, %v848
          %v971 = vadd.f32 %v553, %v853
          %v972 = vadd.f32 %v554, %v858
          %v973 = vadd.f32 %v555, %v863
          %v974 = vadd.f32 %v556, %v868
          %v975 = vadd.f32 %v557, %v873
          %v976 = vadd.f32 %v558, %v878
          %v977 = vadd.f32 %v559, %v883
          %v978 = vadd.f32 %v560, %v888
          %v979 = vadd.f32 %v561, %v893
          %v980 = vadd.f32 %v562, %v898
          %v981 = vadd.f32 %v563, %v903
          %v982 = vadd.f32 %v564, %v908
          %v983 = vadd.f32 %v565, %v913
          %v984 = vadd.f32 %v566, %v918
          %v985 = vadd.f32 %v567, %v923
          %v986 = vadd.f32 %v568, %v928
          %v987 = vadd.f32 %v569, %v933
          %v988 = vadd.f32 %v570, %v938
          %v989 = vadd.f32 %v571, %v943
          %v990 = vadd.f32 %v572, %v948
          %v991 = vadd.f32 %v573, %v953
          %v992 = vadd.f32 %v574, %v958
          %vm993 = vcmask 523264
          %994 = vst.msk [vmem:[#allocation2] sm:$0xff] %vm993, %v961
          %995 = vst.msk [vmem:[#allocation2 + $0x8] sm:$0xff] %vm993, %v962
          %996 = vst.msk [vmem:[#allocation2 + $0x10] sm:$0xff] %vm993, %v963
          %997 = vst.msk [vmem:[#allocation2 + $0x18] sm:$0xff] %vm993, %v964
          %998 = vst.msk [vmem:[#allocation2 + $0x20] sm:$0xff] %vm993, %v965
          %999 = vst.msk [vmem:[#allocation2 + $0x28] sm:$0xff] %vm993, %v966
          %1000 = vst.msk [vmem:[#allocation2 + $0x30] sm:$0xff] %vm993, %v967
          %1001 = vst.msk [vmem:[#allocation2 + $0x38] sm:$0xff] %vm993, %v968
          %1002 = vst.msk [vmem:[#allocation2 + $0x40] sm:$0xff] %vm993, %v969
          %1003 = vst.msk [vmem:[#allocation2 + $0x48] sm:$0xff] %vm993, %v970
          %1004 = vst.msk [vmem:[#allocation2 + $0x50] sm:$0xff] %vm993, %v971
          %1005 = vst.msk [vmem:[#allocation2 + $0x58] sm:$0xff] %vm993, %v972
          %1006 = vst.msk [vmem:[#allocation2 + $0x60] sm:$0xff] %vm993, %v973
          %1007 = vst.msk [vmem:[#allocation2 + $0x68] sm:$0xff] %vm993, %v974
          %1008 = vst.msk [vmem:[#allocation2 + $0x70] sm:$0xff] %vm993, %v975
          %1009 = vst.msk [vmem:[#allocation2 + $0x78] sm:$0xff] %vm993, %v976
          %1010 = vst.msk [vmem:[#allocation2 + $0x80] sm:$0xff] %vm993, %v977
          %1011 = vst.msk [vmem:[#allocation2 + $0x88] sm:$0xff] %vm993, %v978
          %1012 = vst.msk [vmem:[#allocation2 + $0x90] sm:$0xff] %vm993, %v979
          %1013 = vst.msk [vmem:[#allocation2 + $0x98] sm:$0xff] %vm993, %v980
          %1014 = vst.msk [vmem:[#allocation2 + $0xa0] sm:$0xff] %vm993, %v981
          %1015 = vst.msk [vmem:[#allocation2 + $0xa8] sm:$0xff] %vm993, %v982
          %1016 = vst.msk [vmem:[#allocation2 + $0xb0] sm:$0xff] %vm993, %v983
          %1017 = vst.msk [vmem:[#allocation2 + $0xb8] sm:$0xff] %vm993, %v984
          %1018 = vst.msk [vmem:[#allocation2 + $0xc0] sm:$0xff] %vm993, %v985
          %1019 = vst.msk [vmem:[#allocation2 + $0xc8] sm:$0xff] %vm993, %v986
          %1020 = vst.msk [vmem:[#allocation2 + $0xd0] sm:$0xff] %vm993, %v987
          %1021 = vst.msk [vmem:[#allocation2 + $0xd8] sm:$0xff] %vm993, %v988
          %1022 = vst.msk [vmem:[#allocation2 + $0xe0] sm:$0xff] %vm993, %v989
          %1023 = vst.msk [vmem:[#allocation2 + $0xe8] sm:$0xff] %vm993, %v990
          %1024 = vst.msk [vmem:[#allocation2 + $0xf0] sm:$0xff] %vm993, %v991
          %1025 = vst.msk [vmem:[#allocation2 + $0xf8] sm:$0xff] %vm993, %v992
        $region56: #{tpu_custom_call.1} parent=47 // pred_fallthru
          _
        // Predicated region
        $region57: #{tpu_custom_call.1} parent=47 // pred_check
          _
        $region58: #{tpu_custom_call.1} parent=47 // pred_check_branch
          %1027 = sbr.rel (%p311) target = $region60
        $region59: #{tpu_custom_call.1} parent=47 // pred_region
          %v1028 = vld [vmem:[#allocation2] sm:$0xff]
          %v1029 = vld [vmem:[#allocation2 + $0x8] sm:$0xff]
          %v1030 = vld [vmem:[#allocation2 + $0x10] sm:$0xff]
          %v1031 = vld [vmem:[#allocation2 + $0x18] sm:$0xff]
          %v1032 = vld [vmem:[#allocation2 + $0x20] sm:$0xff]
          %v1033 = vld [vmem:[#allocation2 + $0x28] sm:$0xff]
          %v1034 = vld [vmem:[#allocation2 + $0x30] sm:$0xff]
          %v1035 = vld [vmem:[#allocation2 + $0x38] sm:$0xff]
          %v1036 = vld [vmem:[#allocation2 + $0x40] sm:$0xff]
          %v1037 = vld [vmem:[#allocation2 + $0x48] sm:$0xff]
          %v1038 = vld [vmem:[#allocation2 + $0x50] sm:$0xff]
          %v1039 = vld [vmem:[#allocation2 + $0x58] sm:$0xff]
          %v1040 = vld [vmem:[#allocation2 + $0x60] sm:$0xff]
          %v1041 = vld [vmem:[#allocation2 + $0x68] sm:$0xff]
          %v1042 = vld [vmem:[#allocation2 + $0x70] sm:$0xff]
          %v1043 = vld [vmem:[#allocation2 + $0x78] sm:$0xff]
          %v1044 = vld [vmem:[#allocation2 + $0x80] sm:$0xff]
          %v1045 = vld [vmem:[#allocation2 + $0x88] sm:$0xff]
          %v1046 = vld [vmem:[#allocation2 + $0x90] sm:$0xff]
          %v1047 = vld [vmem:[#allocation2 + $0x98] sm:$0xff]
          %v1048 = vld [vmem:[#allocation2 + $0xa0] sm:$0xff]
          %v1049 = vld [vmem:[#allocation2 + $0xa8] sm:$0xff]
          %v1050 = vld [vmem:[#allocation2 + $0xb0] sm:$0xff]
          %v1051 = vld [vmem:[#allocation2 + $0xb8] sm:$0xff]
          %v1052 = vld [vmem:[#allocation2 + $0xc0] sm:$0xff]
          %v1053 = vld [vmem:[#allocation2 + $0xc8] sm:$0xff]
          %v1054 = vld [vmem:[#allocation2 + $0xd0] sm:$0xff]
          %v1055 = vld [vmem:[#allocation2 + $0xd8] sm:$0xff]
          %v1056 = vld [vmem:[#allocation2 + $0xe0] sm:$0xff]
          %v1057 = vld [vmem:[#allocation2 + $0xe8] sm:$0xff]
          %v1058 = vld [vmem:[#allocation2 + $0xf0] sm:$0xff]
          %v1059 = vld [vmem:[#allocation2 + $0xf8] sm:$0xff]
          %v1060 = vld [vmem:[%s4] sm:$0xff]
          %v1061 = vld [vmem:[%s4 + $0x8] sm:$0xff]
          %v1062 = vld [vmem:[%s4 + $0x10] sm:$0xff]
          %v1063 = vld [vmem:[%s4 + $0x18] sm:$0xff]
          %v1064 = vld [vmem:[%s4 + $0x20] sm:$0xff]
          %v1065 = vld [vmem:[%s4 + $0x28] sm:$0xff]
          %v1066 = vld [vmem:[%s4 + $0x30] sm:$0xff]
          %v1067 = vld [vmem:[%s4 + $0x38] sm:$0xff]
          %v1068 = vld [vmem:[%s4 + $0x40] sm:$0xff]
          %v1069 = vld [vmem:[%s4 + $0x48] sm:$0xff]
          %v1070 = vld [vmem:[%s4 + $0x50] sm:$0xff]
          %v1071 = vld [vmem:[%s4 + $0x58] sm:$0xff]
          %v1072 = vld [vmem:[%s4 + $0x60] sm:$0xff]
          %v1073 = vld [vmem:[%s4 + $0x68] sm:$0xff]
          %v1074 = vld [vmem:[%s4 + $0x70] sm:$0xff]
          %v1075 = vld [vmem:[%s4 + $0x78] sm:$0xff]
          %v1076 = vld [vmem:[%s4 + $0x80] sm:$0xff]
          %v1077 = vld [vmem:[%s4 + $0x88] sm:$0xff]
          %v1078 = vld [vmem:[%s4 + $0x90] sm:$0xff]
          %v1079 = vld [vmem:[%s4 + $0x98] sm:$0xff]
          %v1080 = vld [vmem:[%s4 + $0xa0] sm:$0xff]
          %v1081 = vld [vmem:[%s4 + $0xa8] sm:$0xff]
          %v1082 = vld [vmem:[%s4 + $0xb0] sm:$0xff]
          %v1083 = vld [vmem:[%s4 + $0xb8] sm:$0xff]
          %v1084 = vld [vmem:[%s4 + $0xc0] sm:$0xff]
          %v1085 = vld [vmem:[%s4 + $0xc8] sm:$0xff]
          %v1086 = vld [vmem:[%s4 + $0xd0] sm:$0xff]
          %v1087 = vld [vmem:[%s4 + $0xd8] sm:$0xff]
          %v1088 = vld [vmem:[%s4 + $0xe0] sm:$0xff]
          %v1089 = vld [vmem:[%s4 + $0xe8] sm:$0xff]
          %v1090 = vld [vmem:[%s4 + $0xf0] sm:$0xff]
          %v1091 = vld [vmem:[%s4 + $0xf8] sm:$0xff]
          %v1092 = vmul.f32 %v1028, %v1060
          %v1093 = vmul.f32 %v1029, %v1061
          %v1094 = vmul.f32 %v1030, %v1062
          %v1095 = vmul.f32 %v1031, %v1063
          %v1096 = vmul.f32 %v1032, %v1064
          %v1097 = vmul.f32 %v1033, %v1065
          %v1098 = vmul.f32 %v1034, %v1066
          %v1099 = vmul.f32 %v1035, %v1067
          %v1100 = vmul.f32 %v1036, %v1068
          %v1101 = vmul.f32 %v1037, %v1069
          %v1102 = vmul.f32 %v1038, %v1070
          %v1103 = vmul.f32 %v1039, %v1071
          %v1104 = vmul.f32 %v1040, %v1072
          %v1105 = vmul.f32 %v1041, %v1073
          %v1106 = vmul.f32 %v1042, %v1074
          %v1107 = vmul.f32 %v1043, %v1075
          %v1108 = vmul.f32 %v1044, %v1076
          %v1109 = vmul.f32 %v1045, %v1077
          %v1110 = vmul.f32 %v1046, %v1078
          %v1111 = vmul.f32 %v1047, %v1079
          %v1112 = vmul.f32 %v1048, %v1080
          %v1113 = vmul.f32 %v1049, %v1081
          %v1114 = vmul.f32 %v1050, %v1082
          %v1115 = vmul.f32 %v1051, %v1083
          %v1116 = vmul.f32 %v1052, %v1084
          %v1117 = vmul.f32 %v1053, %v1085
          %v1118 = vmul.f32 %v1054, %v1086
          %v1119 = vmul.f32 %v1055, %v1087
          %v1120 = vmul.f32 %v1056, %v1088
          %v1121 = vmul.f32 %v1057, %v1089
          %v1122 = vmul.f32 %v1058, %v1090
          %v1123 = vmul.f32 %v1059, %v1091
          %vm1124 = vcmask 523264
          %1125 = vst.msk [vmem:[#allocation2] sm:$0xff] %vm1124, %v1092
          %1126 = vst.msk [vmem:[#allocation2 + $0x8] sm:$0xff] %vm1124, %v1093
          %1127 = vst.msk [vmem:[#allocation2 + $0x10] sm:$0xff] %vm1124, %v1094
          %1128 = vst.msk [vmem:[#allocation2 + $0x18] sm:$0xff] %vm1124, %v1095
          %1129 = vst.msk [vmem:[#allocation2 + $0x20] sm:$0xff] %vm1124, %v1096
          %1130 = vst.msk [vmem:[#allocation2 + $0x28] sm:$0xff] %vm1124, %v1097
          %1131 = vst.msk [vmem:[#allocation2 + $0x30] sm:$0xff] %vm1124, %v1098
          %1132 = vst.msk [vmem:[#allocation2 + $0x38] sm:$0xff] %vm1124, %v1099
          %1133 = vst.msk [vmem:[#allocation2 + $0x40] sm:$0xff] %vm1124, %v1100
          %1134 = vst.msk [vmem:[#allocation2 + $0x48] sm:$0xff] %vm1124, %v1101
          %1135 = vst.msk [vmem:[#allocation2 + $0x50] sm:$0xff] %vm1124, %v1102
          %1136 = vst.msk [vmem:[#allocation2 + $0x58] sm:$0xff] %vm1124, %v1103
          %1137 = vst.msk [vmem:[#allocation2 + $0x60] sm:$0xff] %vm1124, %v1104
          %1138 = vst.msk [vmem:[#allocation2 + $0x68] sm:$0xff] %vm1124, %v1105
          %1139 = vst.msk [vmem:[#allocation2 + $0x70] sm:$0xff] %vm1124, %v1106
          %1140 = vst.msk [vmem:[#allocation2 + $0x78] sm:$0xff] %vm1124, %v1107
          %1141 = vst.msk [vmem:[#allocation2 + $0x80] sm:$0xff] %vm1124, %v1108
          %1142 = vst.msk [vmem:[#allocation2 + $0x88] sm:$0xff] %vm1124, %v1109
          %1143 = vst.msk [vmem:[#allocation2 + $0x90] sm:$0xff] %vm1124, %v1110
          %1144 = vst.msk [vmem:[#allocation2 + $0x98] sm:$0xff] %vm1124, %v1111
          %1145 = vst.msk [vmem:[#allocation2 + $0xa0] sm:$0xff] %vm1124, %v1112
          %1146 = vst.msk [vmem:[#allocation2 + $0xa8] sm:$0xff] %vm1124, %v1113
          %1147 = vst.msk [vmem:[#allocation2 + $0xb0] sm:$0xff] %vm1124, %v1114
          %1148 = vst.msk [vmem:[#allocation2 + $0xb8] sm:$0xff] %vm1124, %v1115
          %1149 = vst.msk [vmem:[#allocation2 + $0xc0] sm:$0xff] %vm1124, %v1116
          %1150 = vst.msk [vmem:[#allocation2 + $0xc8] sm:$0xff] %vm1124, %v1117
          %1151 = vst.msk [vmem:[#allocation2 + $0xd0] sm:$0xff] %vm1124, %v1118
          %1152 = vst.msk [vmem:[#allocation2 + $0xd8] sm:$0xff] %vm1124, %v1119
          %1153 = vst.msk [vmem:[#allocation2 + $0xe0] sm:$0xff] %vm1124, %v1120
          %1154 = vst.msk [vmem:[#allocation2 + $0xe8] sm:$0xff] %vm1124, %v1121
          %1155 = vst.msk [vmem:[#allocation2 + $0xf0] sm:$0xff] %vm1124, %v1122
          %1156 = vst.msk [vmem:[#allocation2 + $0xf8] sm:$0xff] %vm1124, %v1123
        $region60: #{tpu_custom_call.1} parent=47 // pred_fallthru
          _
        %p1157 = scmp.eq.s32.totalorder %s27, 1
        // Predicated region
        $region61: #{tpu_custom_call.1} parent=47 // pred_check
          %p1158 = pneg %p1157
        $region62: #{tpu_custom_call.1} parent=47 // pred_check_branch
          %1160 = sbr.rel (%p1158) target = $region64
        $region63: #{tpu_custom_call.1} parent=47 // pred_region
          %v1161 = vld [vmem:[%s307] sm:$0xff]
          %v1162 = vld [vmem:[%s1] sm:$0xff]
          %v1163 = vld [vmem:[%s1 + $0x8] sm:$0xff]
          %v1164 = vld [vmem:[%s1 + $0x10] sm:$0xff]
          %v1165 = vld [vmem:[%s1 + $0x18] sm:$0xff]
          %v1166 = vld [vmem:[%s2] sm:$0x1]
          %v1168 = vlaneseq
          %v1169 = vshrl.u32 %v1168, 7
          %v1170 = vsub.s32 0, %v1169
          %v1171 = vrot.slane %v1166, %v1170
          %vm1173 = vcmask 261120
          %v1175 = vsel %vm1173, %v1161, 0
          %1177 = vmatprep.subr.mxu0 0.0
          %1178 = vmatpush1.msra.mxu0 %v1162
          %1179 = vmatprep.subr.mxu0 0.0
          %1180 = vmatpush1.msra.mxu0 %v1163
          %1181 = vmatprep.subr.mxu0 0.0
          %1182 = vmatpush1.msra.mxu0 %v1164
          %1183 = vmatprep.subr.mxu0 0.0
          %1184 = vmatpush1.msra.mxu0 %v1165
          %1185 = vmatprep.subr.mxu0 0.0
          %1186 = vmatpush1.msra.mxu0 0.0
          %1187 = vmatprep.subr.mxu0 0.0
          %1188 = vmatpush1.msra.mxu0 0.0
          %1189 = vmatprep.subr.mxu0 0.0
          %1190 = vmatpush1.msra.mxu0 0.0
          %1191 = vmatprep.subr.mxu0 0.0
          %1192 = vmatpush1.msra.mxu0 0.0
          %1193 = vmatprep.subr.mxu0 0.0
          %1194 = vmatpush1.msra.mxu0 0.0
          %1195 = vmatprep.subr.mxu0 0.0
          %1196 = vmatpush1.msra.mxu0 0.0
          %1197 = vmatprep.subr.mxu0 0.0
          %1198 = vmatpush1.msra.mxu0 0.0
          %1199 = vmatprep.subr.mxu0 0.0
          %1200 = vmatpush1.msra.mxu0 0.0
          %1201 = vmatprep.subr.mxu0 0.0
          %1202 = vmatpush1.msra.mxu0 0.0
          %1203 = vmatprep.subr.mxu0 0.0
          %1204 = vmatpush1.msra.mxu0 0.0
          %1205 = vmatprep.subr.mxu0 0.0
          %1206 = vmatpush1.msra.mxu0 0.0
          %1207 = vmatprep.subr.mxu0 0.0
          %1208 = vmatpush1.msra.mxu0 0.0
          %1209 = vmatprep.subr.mxu0 0.0
          %1210 = vmatpush1.msra.mxu0 0.0
          %1211 = vmatprep.subr.mxu0 0.0
          %1212 = vmatpush1.msra.mxu0 0.0
          %1213 = vmatprep.subr.mxu0 0.0
          %1214 = vmatpush1.msra.mxu0 0.0
          %1215 = vmatprep.subr.mxu0 0.0
          %1216 = vmatpush1.msra.mxu0 0.0
          %1217 = vmatprep.subr.mxu0 0.0
          %1218 = vmatpush1.msra.mxu0 0.0
          %1219 = vmatprep.subr.mxu0 0.0
          %1220 = vmatpush1.msra.mxu0 0.0
          %1221 = vmatprep.subr.mxu0 0.0
          %1222 = vmatpush1.msra.mxu0 0.0
          %1223 = vmatprep.subr.mxu0 0.0
          %1224 = vmatpush1.msra.mxu0 0.0
          %1225 = vmatprep.subr.mxu0 0.0
          %1226 = vmatpush1.msra.mxu0 0.0
          %1227 = vmatprep.subr.mxu0 0.0
          %1228 = vmatpush1.msra.mxu0 0.0
          %1229 = vmatprep.subr.mxu0 0.0
          %1230 = vmatpush1.msra.mxu0 0.0
          %1231 = vmatprep.subr.mxu0 0.0
          %1232 = vmatpush1.msra.mxu0 0.0
          %1233 = vmatprep.subr.mxu0 0.0
          %1234 = vmatpush1.msra.mxu0 0.0
          %1235 = vmatprep.subr.mxu0 0.0
          %1236 = vmatpush1.msra.mxu0 0.0
          %1237 = vmatprep.subr.mxu0 0.0
          %1238 = vmatpush1.msra.mxu0 0.0
          %1239 = vmatprep.subr.mxu0 0.0
          %1240 = vmatpush1.msra.mxu0 0.0
          %1241 = vmatprep.mubr.f32.mxu0 0.0
          %1242 = vmatmul.mubr.f32.gmra.mrb[0].mxu0 %v1175
          %v1243 = vpop.f32.mrb[0].mxu0
          %v1244 = vadd.f32 %v1171, %v1243
          %v1245 = vpop.f32.mrb[0].mxu0
          %1246 = vdwg.mxu0
          %v1247 = vld [vmem:[%s3] sm:$0xff]
          %v1248 = vld [vmem:[%s3 + $0x8] sm:$0xff]
          %v1249 = vld [vmem:[%s3 + $0x10] sm:$0xff]
          %v1250 = vld [vmem:[%s3 + $0x18] sm:$0xff]
          %v1251 = vld [vmem:[%s3 + $0x20] sm:$0xff]
          %v1252 = vld [vmem:[%s3 + $0x28] sm:$0xff]
          %v1253 = vld [vmem:[%s3 + $0x30] sm:$0xff]
          %v1254 = vld [vmem:[%s3 + $0x38] sm:$0xff]
          %v1256 = vsel %vm1173, %v1244, 0
          %1258 = vmatprep.subr.mxu0 %v1248
          %1259 = vmatpush1.msra.mxu0 %v1247
          %1260 = vmatprep.subr.mxu0 %v1250
          %1261 = vmatpush1.msra.mxu0 %v1249
          %1262 = vmatprep.subr.mxu0 %v1252
          %1263 = vmatpush1.msra.mxu0 %v1251
          %1264 = vmatprep.subr.mxu0 %v1254
          %1265 = vmatpush1.msra.mxu0 %v1253
          %1266 = vmatprep.subr.mxu0 0.0
          %1267 = vmatpush1.msra.mxu0 0.0
          %1268 = vmatprep.subr.mxu0 0.0
          %1269 = vmatpush1.msra.mxu0 0.0
          %1270 = vmatprep.subr.mxu0 0.0
          %1271 = vmatpush1.msra.mxu0 0.0
          %1272 = vmatprep.subr.mxu0 0.0
          %1273 = vmatpush1.msra.mxu0 0.0
          %1274 = vmatprep.subr.mxu0 0.0
          %1275 = vmatpush1.msra.mxu0 0.0
          %1276 = vmatprep.subr.mxu0 0.0
          %1277 = vmatpush1.msra.mxu0 0.0
          %1278 = vmatprep.subr.mxu0 0.0
          %1279 = vmatpush1.msra.mxu0 0.0
          %1280 = vmatprep.subr.mxu0 0.0
          %1281 = vmatpush1.msra.mxu0 0.0
          %1282 = vmatprep.subr.mxu0 0.0
          %1283 = vmatpush1.msra.mxu0 0.0
          %1284 = vmatprep.subr.mxu0 0.0
          %1285 = vmatpush1.msra.mxu0 0.0
          %1286 = vmatprep.subr.mxu0 0.0
          %1287 = vmatpush1.msra.mxu0 0.0
          %1288 = vmatprep.subr.mxu0 0.0
          %1289 = vmatpush1.msra.mxu0 0.0
          %1290 = vmatprep.subr.mxu0 0.0
          %1291 = vmatpush1.msra.mxu0 0.0
          %1292 = vmatprep.subr.mxu0 0.0
          %1293 = vmatpush1.msra.mxu0 0.0
          %1294 = vmatprep.subr.mxu0 0.0
          %1295 = vmatpush1.msra.mxu0 0.0
          %1296 = vmatprep.subr.mxu0 0.0
          %1297 = vmatpush1.msra.mxu0 0.0
          %1298 = vmatprep.subr.mxu0 0.0
          %1299 = vmatpush1.msra.mxu0 0.0
          %1300 = vmatprep.subr.mxu0 0.0
          %1301 = vmatpush1.msra.mxu0 0.0
          %1302 = vmatprep.subr.mxu0 0.0
          %1303 = vmatpush1.msra.mxu0 0.0
          %1304 = vmatprep.subr.mxu0 0.0
          %1305 = vmatpush1.msra.mxu0 0.0
          %1306 = vmatprep.subr.mxu0 0.0
          %1307 = vmatpush1.msra.mxu0 0.0
          %1308 = vmatprep.subr.mxu0 0.0
          %1309 = vmatpush1.msra.mxu0 0.0
          %1310 = vmatprep.subr.mxu0 0.0
          %1311 = vmatpush1.msra.mxu0 0.0
          %1312 = vmatprep.subr.mxu0 0.0
          %1313 = vmatpush1.msra.mxu0 0.0
          %1314 = vmatprep.subr.mxu0 0.0
          %1315 = vmatpush1.msra.mxu0 0.0
          %1316 = vmatprep.subr.mxu0 0.0
          %1317 = vmatpush1.msra.mxu0 0.0
          %1318 = vmatprep.subr.mxu0 0.0
          %1319 = vmatpush1.msra.mxu0 0.0
          %1320 = vmatprep.subr.mxu0 0.0
          %1321 = vmatpush1.msra.mxu0 0.0
          %1322 = vmatprep.mubr.f32.mxu0 0.0
          %1323 = vmatmul.mubr.f32.gmra.mrb[0].mxu0 %v1256
          %v1324 = vpop.f32.mrb[0].mxu0
          %v1325 = vadd.f32 0.0, %v1324
          %v1326 = vpop.f32.mrb[0].mxu0
          %v1327 = vadd.f32 0.0, %v1326
          %1328 = vdwg.mxu0
          %v1329 = vmax.f32 %v1325, 0.0
          %v1330 = vmax.f32 %v1327, 0.0
          %v1331 = vld [vmem:[#allocation2] sm:$0xff]
          %v1332 = vld [vmem:[#allocation2 + $0x8] sm:$0xff]
          %v1333 = vld [vmem:[#allocation2 + $0x10] sm:$0xff]
          %v1334 = vld [vmem:[#allocation2 + $0x18] sm:$0xff]
          %v1335 = vld [vmem:[#allocation2 + $0x20] sm:$0xff]
          %v1336 = vld [vmem:[#allocation2 + $0x28] sm:$0xff]
          %v1337 = vld [vmem:[#allocation2 + $0x30] sm:$0xff]
          %v1338 = vld [vmem:[#allocation2 + $0x38] sm:$0xff]
          %v1339 = vld [vmem:[#allocation2 + $0x40] sm:$0xff]
          %v1340 = vld [vmem:[#allocation2 + $0x48] sm:$0xff]
          %v1341 = vld [vmem:[#allocation2 + $0x50] sm:$0xff]
          %v1342 = vld [vmem:[#allocation2 + $0x58] sm:$0xff]
          %v1343 = vld [vmem:[#allocation2 + $0x60] sm:$0xff]
          %v1344 = vld [vmem:[#allocation2 + $0x68] sm:$0xff]
          %v1345 = vld [vmem:[#allocation2 + $0x70] sm:$0xff]
          %v1346 = vld [vmem:[#allocation2 + $0x78] sm:$0xff]
          %v1347 = vld [vmem:[#allocation2 + $0x80] sm:$0xff]
          %v1348 = vld [vmem:[#allocation2 + $0x88] sm:$0xff]
          %v1349 = vld [vmem:[#allocation2 + $0x90] sm:$0xff]
          %v1350 = vld [vmem:[#allocation2 + $0x98] sm:$0xff]
          %v1351 = vld [vmem:[#allocation2 + $0xa0] sm:$0xff]
          %v1352 = vld [vmem:[#allocation2 + $0xa8] sm:$0xff]
          %v1353 = vld [vmem:[#allocation2 + $0xb0] sm:$0xff]
          %v1354 = vld [vmem:[#allocation2 + $0xb8] sm:$0xff]
          %v1355 = vld [vmem:[#allocation2 + $0xc0] sm:$0xff]
          %v1356 = vld [vmem:[#allocation2 + $0xc8] sm:$0xff]
          %v1357 = vld [vmem:[#allocation2 + $0xd0] sm:$0xff]
          %v1358 = vld [vmem:[#allocation2 + $0xd8] sm:$0xff]
          %v1359 = vld [vmem:[#allocation2 + $0xe0] sm:$0xff]
          %v1360 = vld [vmem:[#allocation2 + $0xe8] sm:$0xff]
          %v1361 = vld [vmem:[#allocation2 + $0xf0] sm:$0xff]
          %v1362 = vld [vmem:[#allocation2 + $0xf8] sm:$0xff]
          %1363 = vmatprep.subr.mxu0 0.0
          %1364 = vmatpush1.msra.mxu0 %v1331
          %1365 = vmatprep.subr.mxu0 0.0
          %1366 = vmatpush1.msra.mxu0 %v1332
          %1367 = vmatprep.subr.mxu0 0.0
          %1368 = vmatpush1.msra.mxu0 %v1333
          %1369 = vmatprep.subr.mxu0 0.0
          %1370 = vmatpush1.msra.mxu0 %v1334
          %1371 = vmatprep.subr.mxu0 0.0
          %1372 = vmatpush1.msra.mxu0 %v1335
          %1373 = vmatprep.subr.mxu0 0.0
          %1374 = vmatpush1.msra.mxu0 %v1336
          %1375 = vmatprep.subr.mxu0 0.0
          %1376 = vmatpush1.msra.mxu0 %v1337
          %1377 = vmatprep.subr.mxu0 0.0
          %1378 = vmatpush1.msra.mxu0 %v1338
          %1379 = vmatprep.subr.mxu0 0.0
          %1380 = vmatpush1.msra.mxu0 %v1339
          %1381 = vmatprep.subr.mxu0 0.0
          %1382 = vmatpush1.msra.mxu0 %v1340
          %1383 = vmatprep.subr.mxu0 0.0
          %1384 = vmatpush1.msra.mxu0 %v1341
          %1385 = vmatprep.subr.mxu0 0.0
          %1386 = vmatpush1.msra.mxu0 %v1342
          %1387 = vmatprep.subr.mxu0 0.0
          %1388 = vmatpush1.msra.mxu0 %v1343
          %1389 = vmatprep.subr.mxu0 0.0
          %1390 = vmatpush1.msra.mxu0 %v1344
          %1391 = vmatprep.subr.mxu0 0.0
          %1392 = vmatpush1.msra.mxu0 %v1345
          %1393 = vmatprep.subr.mxu0 0.0
          %1394 = vmatpush1.msra.mxu0 %v1346
          %1395 = vmatprep.subr.mxu0 0.0
          %1396 = vmatpush1.msra.mxu0 %v1347
          %1397 = vmatprep.subr.mxu0 0.0
          %1398 = vmatpush1.msra.mxu0 %v1348
          %1399 = vmatprep.subr.mxu0 0.0
          %1400 = vmatpush1.msra.mxu0 %v1349
          %1401 = vmatprep.subr.mxu0 0.0
          %1402 = vmatpush1.msra.mxu0 %v1350
          %1403 = vmatprep.subr.mxu0 0.0
          %1404 = vmatpush1.msra.mxu0 %v1351
          %1405 = vmatprep.subr.mxu0 0.0
          %1406 = vmatpush1.msra.mxu0 %v1352
          %1407 = vmatprep.subr.mxu0 0.0
          %1408 = vmatpush1.msra.mxu0 %v1353
          %1409 = vmatprep.subr.mxu0 0.0
          %1410 = vmatpush1.msra.mxu0 %v1354
          %1411 = vmatprep.subr.mxu0 0.0
          %1412 = vmatpush1.msra.mxu0 %v1355
          %1413 = vmatprep.subr.mxu0 0.0
          %1414 = vmatpush1.msra.mxu0 %v1356
          %1415 = vmatprep.subr.mxu0 0.0
          %1416 = vmatpush1.msra.mxu0 %v1357
          %1417 = vmatprep.subr.mxu0 0.0
          %1418 = vmatpush1.msra.mxu0 %v1358
          %1419 = vmatprep.subr.mxu0 0.0
          %1420 = vmatpush1.msra.mxu0 %v1359
          %1421 = vmatprep.subr.mxu0 0.0
          %1422 = vmatpush1.msra.mxu0 %v1360
          %1423 = vmatprep.subr.mxu0 0.0
          %1424 = vmatpush1.msra.mxu0 %v1361
          %1425 = vmatprep.subr.mxu0 0.0
          %1426 = vmatpush1.msra.mxu0 %v1362
          %1427 = vmatprep.mubr.f32.mxu0 %v1330
          %1428 = vmatmul.mubr.f32.gmra.mrb[0].mxu0 %v1329
          %v1429 = vpop.f32.mrb[0].mxu0
          %v1430 = vadd.f32 0.0, %v1429
          %v1431 = vpop.f32.mrb[0].mxu0
          %1432 = vdwg.mxu0
          %v1433 = vadd.f32 %v1430, 1e-06
          %v1434 = vrcp.pop %v1433
          %1436 = vrot.lane.b32.xlu0 %v1434, 96
          %v1437 = vpop.permute.xlu0 %1436
          %v1439 = vmul.f32 %v1430, %v1437
          %v1440 = vld [vmem:[%s5] sm:$0xff]
          %v1441 = vld [vmem:[%s5 + $0x8] sm:$0xff]
          %v1442 = vld [vmem:[%s5 + $0x10] sm:$0xff]
          %v1443 = vld [vmem:[%s5 + $0x18] sm:$0xff]
          %v1444 = vld [vmem:[%s6] sm:$0x1]
          %v1446 = vlaneseq
          %v1447 = vshrl.u32 %v1446, 7
          %v1448 = vsub.s32 0, %v1447
          %v1449 = vrot.slane %v1444, %v1448
          %v1452 = vsel %vm1173, %v1439, 0
          %1454 = vmatprep.subr.mxu0 0.0
          %1455 = vmatpush1.msra.mxu0 %v1440
          %1456 = vmatprep.subr.mxu0 0.0
          %1457 = vmatpush1.msra.mxu0 %v1441
          %1458 = vmatprep.subr.mxu0 0.0
          %1459 = vmatpush1.msra.mxu0 %v1442
          %1460 = vmatprep.subr.mxu0 0.0
          %1461 = vmatpush1.msra.mxu0 %v1443
          %1462 = vmatprep.subr.mxu0 0.0
          %1463 = vmatpush1.msra.mxu0 0.0
          %1464 = vmatprep.subr.mxu0 0.0
          %1465 = vmatpush1.msra.mxu0 0.0
          %1466 = vmatprep.subr.mxu0 0.0
          %1467 = vmatpush1.msra.mxu0 0.0
          %1468 = vmatprep.subr.mxu0 0.0
          %1469 = vmatpush1.msra.mxu0 0.0
          %1470 = vmatprep.subr.mxu0 0.0
          %1471 = vmatpush1.msra.mxu0 0.0
          %1472 = vmatprep.subr.mxu0 0.0
          %1473 = vmatpush1.msra.mxu0 0.0
          %1474 = vmatprep.subr.mxu0 0.0
          %1475 = vmatpush1.msra.mxu0 0.0
          %1476 = vmatprep.subr.mxu0 0.0
          %1477 = vmatpush1.msra.mxu0 0.0
          %1478 = vmatprep.subr.mxu0 0.0
          %1479 = vmatpush1.msra.mxu0 0.0
          %1480 = vmatprep.subr.mxu0 0.0
          %1481 = vmatpush1.msra.mxu0 0.0
          %1482 = vmatprep.subr.mxu0 0.0
          %1483 = vmatpush1.msra.mxu0 0.0
          %1484 = vmatprep.subr.mxu0 0.0
          %1485 = vmatpush1.msra.mxu0 0.0
          %1486 = vmatprep.subr.mxu0 0.0
          %1487 = vmatpush1.msra.mxu0 0.0
          %1488 = vmatprep.subr.mxu0 0.0
          %1489 = vmatpush1.msra.mxu0 0.0
          %1490 = vmatprep.subr.mxu0 0.0
          %1491 = vmatpush1.msra.mxu0 0.0
          %1492 = vmatprep.subr.mxu0 0.0
          %1493 = vmatpush1.msra.mxu0 0.0
          %1494 = vmatprep.subr.mxu0 0.0
          %1495 = vmatpush1.msra.mxu0 0.0
          %1496 = vmatprep.subr.mxu0 0.0
          %1497 = vmatpush1.msra.mxu0 0.0
          %1498 = vmatprep.subr.mxu0 0.0
          %1499 = vmatpush1.msra.mxu0 0.0
          %1500 = vmatprep.subr.mxu0 0.0
          %1501 = vmatpush1.msra.mxu0 0.0
          %1502 = vmatprep.subr.mxu0 0.0
          %1503 = vmatpush1.msra.mxu0 0.0
          %1504 = vmatprep.subr.mxu0 0.0
          %1505 = vmatpush1.msra.mxu0 0.0
          %1506 = vmatprep.subr.mxu0 0.0
          %1507 = vmatpush1.msra.mxu0 0.0
          %1508 = vmatprep.subr.mxu0 0.0
          %1509 = vmatpush1.msra.mxu0 0.0
          %1510 = vmatprep.subr.mxu0 0.0
          %1511 = vmatpush1.msra.mxu0 0.0
          %1512 = vmatprep.subr.mxu0 0.0
          %1513 = vmatpush1.msra.mxu0 0.0
          %1514 = vmatprep.subr.mxu0 0.0
          %1515 = vmatpush1.msra.mxu0 0.0
          %1516 = vmatprep.subr.mxu0 0.0
          %1517 = vmatpush1.msra.mxu0 0.0
          %1518 = vmatprep.mubr.f32.mxu0 0.0
          %1519 = vmatmul.mubr.f32.gmra.mrb[0].mxu0 %v1452
          %v1520 = vpop.f32.mrb[0].mxu0
          %v1521 = vadd.f32 %v1449, %v1520
          %v1522 = vpop.f32.mrb[0].mxu0
          %1523 = vdwg.mxu0
          %1524 = vst.msk [vmem:[%s300] sm:$0xff] %vm1173, %v1521
        $region64: #{tpu_custom_call.1} parent=47 // pred_fallthru
          _
        %s1525 = sand.u32 %s206, 1
        %s1526 = scalar_lea.sflag [#allocation4], %s1525
        %s1527 = sand.u32 %s206, 1
        %s1528 = smul.addr %s1527, 8
        %s1529 = scalar_lea.vmem [#allocation3], %s1528
        // Predicated region
        $region65: #{tpu_custom_call.1} parent=47 // pred_check
          %p1530 = pneg %p216
        $region66: #{tpu_custom_call.1} parent=47 // pred_check_branch
          %1532 = sbr.rel (%p1530) target = $region68
        $region67: #{tpu_custom_call.1} parent=47 // pred_region
          %s1533 = smul.u32 %s27, %s28
          %s1535 = ssub.s32 128, 128
          %1536 = vsyncadd %s1526, %s1535
          %s1537 = sadd.s32 %s1533, %s26
          %s1538 = smul.addr %s1537, 128
          %s1539 = scalar_lea.hbm %s7, %s1538
          %s1541 = sshll.u32 %s1529, 4
          %s1542 = int_to_ptr.vmem [resolvable:$true] %s1541
          %1544 = dma.vmem_to_hbm [thread:$0]  %s1542, 128, %s1539, %s1526
        $region68: #{tpu_custom_call.1} parent=47 // pred_fallthru
          _
      $region48: #{tpu_custom_call.1} parent=5 // pred_fallthru
        _
      %p1545 = scmp.le.s32.totalorder 2, %s16
      // Predicated region
      $region69: #{tpu_custom_call.1} parent=5 // pred_check
        %p1546 = pneg %p1545
      $region70: #{tpu_custom_call.1} parent=5 // pred_check_branch
        %1548 = sbr.rel (%p1546) target = $region72
      $region71: #{tpu_custom_call.1} parent=5 // pred_region
        %s1549 = ssub.s32 %s16, 2
        // Predicated region
        $region73: #{tpu_custom_call.1} parent=71 // pred_check
          %p1550 = pneg %p222
        $region74: #{tpu_custom_call.1} parent=71 // pred_check_branch
          %1552 = sbr.rel (%p1550) target = $region76
        $region75: #{tpu_custom_call.1} parent=71 // pred_region
          %s1553 = sand.u32 %s207, 1
          %s1554 = scalar_lea.sflag [#allocation4], %s1553
          %s1555 = sand.u32 %s207, 1
          %s1556 = smul.addr %s1555, 8
          %s1557 = scalar_lea.vmem [#allocation3], %s1556
          %1558 = dma.done %s1554, 128
        $region76: #{tpu_custom_call.1} parent=71 // pred_fallthru
          _
      $region72: #{tpu_custom_call.1} parent=5 // pred_fallthru
        _
    $region6: #{tpu_custom_call.1} parent=1 // loop_footer
      %s20 = sadd.s32 1, %s16
    $region7: #{tpu_custom_call.1} parent=1 // loop_footer_branch
      %15 = sbr.rel target = $region3
    $region8: #{tpu_custom_call.1} parent=1 // loop_exit
      _
    %1559 = vsyncpa [#allocation4], 1
    %s1560 = scalar_lea.sflag [#allocation4], 1
    %1561 = vsyncpa %s1560, 1

// kernel: tpu_custom_call.1
$region0: #{tpu_custom_call.1}
  #allocation0 [shape = 'u32[]', space=smem, size = 0x4, offset = 0x4, fixed_abs, tag = 'smem constant byte address 0x4 - core index']
  #allocation1 [shape = 'u32[144,128]{1,0:T(1,128)}', space=vmem, size = 0x12000, scoped, tag = 'internal scratch']
  #allocation2 [shape = 'f32[256,64]{1,0:T(8,128)}', space=vmem, size = 0x20000, scoped, tag = 'scratch operand']
  %s0 = inlined_call_operand.vmem [shape: f32[2,8,32], index: 0, kind: input, shape index: {}]
  %s1 = inlined_call_operand.vmem [shape: f32[32,96], index: 1, kind: input, shape index: {}]
  %s2 = inlined_call_operand.vmem [shape: f32[1,96], index: 2, kind: input, shape index: {}]
  %s3 = inlined_call_operand.vmem [shape: f32[32,256], index: 3, kind: input, shape index: {}]
  %s4 = inlined_call_operand.vmem [shape: f32[256,64], index: 4, kind: input, shape index: {}]
  %s5 = inlined_call_operand.vmem [shape: f32[32,32], index: 5, kind: input, shape index: {}]
  %s6 = inlined_call_operand.vmem [shape: f32[1,32], index: 6, kind: input, shape index: {}]
  %s7 = inlined_call_operand.hbm [shape: f32[2,8,32], index: 7, kind: output, shape index: {}]
  %s8 = sld [smem:[#allocation0]]
  $region77: #{tpu_custom_call.1} parent=0
    _
  %s10 = ssub.s32 1, %s8
  %s11 = scalar_select 0, %s10, %s8
  $region1: #{tpu_custom_call.1} parent=0
    #allocation3 [shape = 'u8[8192]{0}', space=vmem, size = 0x2000, scoped, tag = 'output window, operand 0']
    #allocation4 [shape = 's32[2]{0}', space=sflag, size = 0x8, scoped, tag = 'scoped memory for tpu_custom_call.1']
    %12 = vsyncpa [#allocation4], 0
    %s13 = scalar_lea.sflag [#allocation4], 1
    %14 = vsyncpa %s13, 0
    loop: start=0, step=1, limit=6
    $region2: #{tpu_custom_call.1} parent=1 // loop_pre_header
      _
    $region3: #{tpu_custom_call.1} parent=1 // loop_header
      %s16 = sphi 0, %s20
      %p17 = scmp.ge.s32.totalorder %s16, 6
      %s23 = sphi 0, %s42
      %s24 = sphi 0, %s38
      %s25 = sphi 0, %s34
      %s26 = sphi 0, %s23
      %s27 = sphi 0, %s24
      %s28 = sphi 0, %s25
      %s29 = sphi 0, %s26
      %s30 = sphi 0, %s27
      %s31 = sphi 0, %s28
      %s47 = sphi 0, %s49
      %s50 = sphi 0, %s47
      %s51 = sphi 0, %s50
      %s67 = sphi 0, %s51
      %s71 = sphi 0, %s71
      %s73 = sphi 0, %s71
      %s74 = sphi 0, %s73
      %s88 = sphi 0, %s74
      %s92 = sphi 0, %s92
      %s94 = sphi 0, %s92
      %s95 = sphi 0, %s94
      %s109 = sphi 0, %s95
      %s113 = sphi 0, %s113
      %s115 = sphi 0, %s113
      %s116 = sphi 0, %s115
      %s130 = sphi 0, %s116
      %s134 = sphi 0, %s134
      %s136 = sphi 0, %s134
      %s137 = sphi 0, %s136
      %s151 = sphi 0, %s137
      %s155 = sphi 0, %s155
      %s157 = sphi 0, %s155
      %s158 = sphi 0, %s157
      %s172 = sphi 0, %s158
      %s176 = sphi 0, %s176
      %s178 = sphi 0, %s176
      %s179 = sphi 0, %s178
      %s193 = sphi 0, %s179
      %s203 = sphi 0, %s205
      %s206 = sphi 0, %s203
      %s207 = sphi 0, %s206
      %s223 = sphi 0, %s207
    $region4: #{tpu_custom_call.1} parent=1 // loop_header_branch
      %19 = sbr.rel (%p17) target = $region8
    $region5: #{tpu_custom_call.1} parent=1 // loop_body
      %s21 = ssub.s32 %s16, 1
      %s22 = ssub.s32 %s16, 2
      %s32 = sadd.s32 1, %s25
      %p33 = scmp.ge.s32.totalorder %s32, 1
      %s34 = scalar_select %p33, 0, %s32
      %s35 = sadd.s32 1, %s24
      %s36 = scalar_select %p33, %s35, %s24
      %p37 = scmp.ge.s32.totalorder %s36, 2
      %s38 = scalar_select %p37, 0, %s36
      %s39 = sadd.s32 1, %s23
      %s40 = scalar_select %p37, %s39, %s23
      %p41 = scmp.ge.s32.totalorder %s40, 2
      %s42 = scalar_select %p41, 0, %s40
      %s43 = ssub.s32 %s23, %s42
      %s44 = ssub.s32 %s25, %s34
      %s45 = sor.u32 %s43, %s44
      %p46 = scmp.eq.s32.totalorder %s45, 0
      %s48 = sadd.s32 %s47, 1
      %s49 = scalar_select %p46, %s47, %s48
      %p52 = pneg %p46
      %p53 = scmp.eq.s32.totalorder %s16, 3
      %p54 = por %p52, %p53
      %p55 = scmp.ne.s32.totalorder %s47, %s50
      %p56 = scmp.eq.s32.totalorder %s16, 0
      %p57 = por %p55, %p56
      %p58 = scmp.ne.s32.totalorder %s47, %s50
      %p59 = scmp.eq.s32.totalorder %s21, 3
      %p60 = por %p58, %p59
      %p61 = scmp.ne.s32.totalorder %s50, %s51
      %p62 = scmp.eq.s32.totalorder %s21, 0
      %p63 = por %p61, %p62
      %p64 = scmp.ne.s32.totalorder %s50, %s51
      %p65 = scmp.eq.s32.totalorder %s22, 3
      %p66 = por %p64, %p65
      %p68 = scmp.ne.s32.totalorder %s51, %s67
      %p69 = scmp.eq.s32.totalorder %s22, 0
      %p70 = por %p68, %p69
      %s72 = sadd.s32 %s71, 1
      %p75 = scmp.eq.s32.totalorder %s16, 3
      %p76 = scmp.ne.s32.totalorder %s71, %s73
      %p77 = scmp.eq.s32.totalorder %s16, 0
      %p78 = por %p76, %p77
      %p79 = scmp.ne.s32.totalorder %s71, %s73
      %p80 = scmp.eq.s32.totalorder %s21, 3
      %p81 = por %p79, %p80
      %p82 = scmp.ne.s32.totalorder %s73, %s74
      %p83 = scmp.eq.s32.totalorder %s21, 0
      %p84 = por %p82, %p83
      %p85 = scmp.ne.s32.totalorder %s73, %s74
      %p86 = scmp.eq.s32.totalorder %s22, 3
      %p87 = por %p85, %p86
      %p89 = scmp.ne.s32.totalorder %s74, %s88
      %p90 = scmp.eq.s32.totalorder %s22, 0
      %p91 = por %p89, %p90
      %s93 = sadd.s32 %s92, 1
      %p96 = scmp.eq.s32.totalorder %s16, 3
      %p97 = scmp.ne.s32.totalorder %s92, %s94
      %p98 = scmp.eq.s32.totalorder %s16, 0
      %p99 = por %p97, %p98
      %p100 = scmp.ne.s32.totalorder %s92, %s94
      %p101 = scmp.eq.s32.totalorder %s21, 3
      %p102 = por %p100, %p101
      %p103 = scmp.ne.s32.totalorder %s94, %s95
      %p104 = scmp.eq.s32.totalorder %s21, 0
      %p105 = por %p103, %p104
      %p106 = scmp.ne.s32.totalorder %s94, %s95
      %p107 = scmp.eq.s32.totalorder %s22, 3
      %p108 = por %p106, %p107
      %p110 = scmp.ne.s32.totalorder %s95, %s109
      %p111 = scmp.eq.s32.totalorder %s22, 0
      %p112 = por %p110, %p111
      %s114 = sadd.s32 %s113, 1
      %p117 = scmp.eq.s32.totalorder %s16, 3
      %p118 = scmp.ne.s32.totalorder %s113, %s115
      %p119 = scmp.eq.s32.totalorder %s16, 0
      %p120 = por %p118, %p119
      %p121 = scmp.ne.s32.totalorder %s113, %s115
      %p122 = scmp.eq.s32.totalorder %s21, 3
      %p123 = por %p121, %p122
      %p124 = scmp.ne.s32.totalorder %s115, %s116
      %p125 = scmp.eq.s32.totalorder %s21, 0
      %p126 = por %p124, %p125
      %p127 = scmp.ne.s32.totalorder %s115, %s116
      %p128 = scmp.eq.s32.totalorder %s22, 3
      %p129 = por %p127, %p128
      %p131 = scmp.ne.s32.totalorder %s116, %s130
      %p132 = scmp.eq.s32.totalorder %s22, 0
      %p133 = por %p131, %p132
      %s135 = sadd.s32 %s134, 1
      %p138 = scmp.eq.s32.totalorder %s16, 3
      %p139 = scmp.ne.s32.totalorder %s134, %s136
      %p140 = scmp.eq.s32.totalorder %s16, 0
      %p141 = por %p139, %p140
      %p142 = scmp.ne.s32.totalorder %s134, %s136
      %p143 = scmp.eq.s32.totalorder %s21, 3
      %p144 = por %p142, %p143
      %p145 = scmp.ne.s32.totalorder %s136, %s137
      %p146 = scmp.eq.s32.totalorder %s21, 0
      %p147 = por %p145, %p146
      %p148 = scmp.ne.s32.totalorder %s136, %s137
      %p149 = scmp.eq.s32.totalorder %s22, 3
      %p150 = por %p148, %p149
      %p152 = scmp.ne.s32.totalorder %s137, %s151
      %p153 = scmp.eq.s32.totalorder %s22, 0
      %p154 = por %p152, %p153
      %s156 = sadd.s32 %s155, 1
      %p159 = scmp.eq.s32.totalorder %s16, 3
      %p160 = scmp.ne.s32.totalorder %s155, %s157
      %p161 = scmp.eq.s32.totalorder %s16, 0
      %p162 = por %p160, %p161
      %p163 = scmp.ne.s32.totalorder %s155, %s157
      %p164 = scmp.eq.s32.totalorder %s21, 3
      %p165 = por %p163, %p164
      %p166 = scmp.ne.s32.totalorder %s157, %s158
      %p167 = scmp.eq.s32.totalorder %s21, 0
      %p168 = por %p166, %p167
      %p169 = scmp.ne.s32.totalorder %s157, %s158
      %p170 = scmp.eq.s32.totalorder %s22, 3
      %p171 = por %p169, %p170
      %p173 = scmp.ne.s32.totalorder %s158, %s172
      %p174 = scmp.eq.s32.totalorder %s22, 0
      %p175 = por %p173, %p174
      %s177 = sadd.s32 %s176, 1
      %p180 = scmp.eq.s32.totalorder %s16, 3
      %p181 = scmp.ne.s32.totalorder %s176, %s178
      %p182 = scmp.eq.s32.totalorder %s16, 0
      %p183 = por %p181, %p182
      %p184 = scmp.ne.s32.totalorder %s176, %s178
      %p185 = scmp.eq.s32.totalorder %s21, 3
      %p186 = por %p184, %p185
      %p187 = scmp.ne.s32.totalorder %s178, %s179
      %p188 = scmp.eq.s32.totalorder %s21, 0
      %p189 = por %p187, %p188
      %p190 = scmp.ne.s32.totalorder %s178, %s179
      %p191 = scmp.eq.s32.totalorder %s22, 3
      %p192 = por %p190, %p191
      %p194 = scmp.ne.s32.totalorder %s179, %s193
      %p195 = scmp.eq.s32.totalorder %s22, 0
      %p196 = por %p194, %p195
      %s197 = smul.u32 %s24, %s25
      %s198 = smul.u32 %s38, %s34
      %s199 = ssub.s32 %s23, %s42
      %s200 = ssub.s32 %s197, %s198
      %s201 = sor.u32 %s199, %s200
      %p202 = scmp.eq.s32.totalorder %s201, 0
      %s204 = sadd.s32 %s203, 1
      %s205 = scalar_select %p202, %s203, %s204
      %p208 = pneg %p202
      %p209 = scmp.eq.s32.totalorder %s16, 3
      %p210 = por %p208, %p209
      %p211 = scmp.ne.s32.totalorder %s203, %s206
      %p212 = scmp.eq.s32.totalorder %s16, 0
      %p213 = por %p211, %p212
      %p214 = scmp.ne.s32.totalorder %s203, %s206
      %p215 = scmp.eq.s32.totalorder %s21, 3
      %p216 = por %p214, %p215
      %p217 = scmp.ne.s32.totalorder %s206, %s207
      %p218 = scmp.eq.s32.totalorder %s21, 0
      %p219 = por %p217, %p218
      %p220 = scmp.ne.s32.totalorder %s206, %s207
      %p221 = scmp.eq.s32.totalorder %s22, 3
      %p222 = por %p220, %p221
      %p224 = scmp.ne.s32.totalorder %s207, %s223
      %p225 = scmp.eq.s32.totalorder %s22, 0
      %p226 = por %p224, %p225
      %p227 = scmp.le.s32.totalorder 1, %s16
      %p228 = scmp.lt.s32.totalorder %s16, 5
      %p229 = pnand %p227, %p228
      %p230 = pneg %p229
      // Predicated region
      $region9: #{tpu_custom_call.1} parent=5 // pred_check
        _
      $region10: #{tpu_custom_call.1} parent=5 // pred_check_branch
        %232 = sbr.rel (%p229) target = $region12
      $region11: #{tpu_custom_call.1} parent=5 // pred_region
        %s233 = ssub.s32 %s16, 1
        // Predicated region
        $region13: #{tpu_custom_call.1} parent=11 // pred_check
          %p234 = pneg %p84
        $region14: #{tpu_custom_call.1} parent=11 // pred_check_branch
          %236 = sbr.rel (%p234) target = $region16
        $region15: #{tpu_custom_call.1} parent=11 // pred_region
          _
        $region16: #{tpu_custom_call.1} parent=11 // pred_fallthru
          _
        // Predicated region
        $region17: #{tpu_custom_call.1} parent=11 // pred_check
          %p237 = pneg %p105
        $region18: #{tpu_custom_call.1} parent=11 // pred_check_branch
          %239 = sbr.rel (%p237) target = $region20
        $region19: #{tpu_custom_call.1} parent=11 // pred_region
          _
        $region20: #{tpu_custom_call.1} parent=11 // pred_fallthru
          _
        // Predicated region
        $region21: #{tpu_custom_call.1} parent=11 // pred_check
          %p240 = pneg %p126
        $region22: #{tpu_custom_call.1} parent=11 // pred_check_branch
          %242 = sbr.rel (%p240) target = $region24
        $region23: #{tpu_custom_call.1} parent=11 // pred_region
          _
        $region24: #{tpu_custom_call.1} parent=11 // pred_fallthru
          _
        // Predicated region
        $region25: #{tpu_custom_call.1} parent=11 // pred_check
          %p243 = pneg %p147
        $region26: #{tpu_custom_call.1} parent=11 // pred_check_branch
          %245 = sbr.rel (%p243) target = $region28
        $region27: #{tpu_custom_call.1} parent=11 // pred_region
          _
        $region28: #{tpu_custom_call.1} parent=11 // pred_fallthru
          _
        // Predicated region
        $region29: #{tpu_custom_call.1} parent=11 // pred_check
          %p246 = pneg %p168
        $region30: #{tpu_custom_call.1} parent=11 // pred_check_branch
          %248 = sbr.rel (%p246) target = $region32
        $region31: #{tpu_custom_call.1} parent=11 // pred_region
          _
        $region32: #{tpu_custom_call.1} parent=11 // pred_fallthru
          _
        // Predicated region
        $region33: #{tpu_custom_call.1} parent=11 // pred_check
          %p249 = pneg %p189
        $region34: #{tpu_custom_call.1} parent=11 // pred_check_branch
          %251 = sbr.rel (%p249) target = $region36
        $region35: #{tpu_custom_call.1} parent=11 // pred_region
          _
        $region36: #{tpu_custom_call.1} parent=11 // pred_fallthru
          _
      $region12: #{tpu_custom_call.1} parent=5 // pred_fallthru
        _
      %p252 = scmp.lt.s32.totalorder %s16, 4
      // Predicated region
      $region37: #{tpu_custom_call.1} parent=5 // pred_check
        %p253 = pneg %p252
      $region38: #{tpu_custom_call.1} parent=5 // pred_check_branch
        %255 = sbr.rel (%p253) target = $region40
      $region39: #{tpu_custom_call.1} parent=5 // pred_region
        // Predicated region
        $region41: #{tpu_custom_call.1} parent=39 // pred_check
          %p256 = pneg %p57
        $region42: #{tpu_custom_call.1} parent=39 // pred_check_branch
          %258 = sbr.rel (%p256) target = $region44
        $region43: #{tpu_custom_call.1} parent=39 // pred_region
          %p259 = scmp.lt.s32.totalorder %s23, 1
          %s260 = scalar_select %p259, %s23, 1
          %p261 = scmp.lt.s32.totalorder %s25, 0
          %s262 = scalar_select %p261, %s25, 0
          %s263 = sadd.s32 %s262, %s260
          %s264 = smul.addr %s263, 8
          %s265 = scalar_lea.vmem %s0, %s264
        $region44: #{tpu_custom_call.1} parent=39 // pred_fallthru
          _
      $region40: #{tpu_custom_call.1} parent=5 // pred_fallthru
        _
      %p266 = scmp.le.s32.totalorder 1, %s16
      %p267 = scmp.lt.s32.totalorder %s16, 5
      %p268 = pnand %p266, %p267
      %p269 = pneg %p268
      // Predicated region
      $region45: #{tpu_custom_call.1} parent=5 // pred_check
        _
      $region46: #{tpu_custom_call.1} parent=5 // pred_check_branch
        %271 = sbr.rel (%p268) target = $region48
      $region47: #{tpu_custom_call.1} parent=5 // pred_region
        %s272 = ssub.s32 %s16, 1
        %p273 = scmp.lt.s32.totalorder %s26, 1
        %s274 = scalar_select %p273, %s26, 1
        %p275 = scmp.lt.s32.totalorder %s28, 0
        %s276 = scalar_select %p275, %s28, 0
        %s277 = sadd.s32 %s276, %s274
        %s278 = smul.addr %s277, 8
        %s279 = scalar_lea.vmem %s0, %s278
        %p280 = pneg %p63
        %p281 = pneg %p60
        %p282 = pneg %p84
        %p283 = pneg %p81
        %p284 = pneg %p105
        %p285 = pneg %p102
        %p286 = pneg %p126
        %p287 = pneg %p123
        %p288 = pneg %p147
        %p289 = pneg %p144
        %p290 = pneg %p168
        %p291 = pneg %p165
        %p292 = pneg %p189
        %p293 = pneg %p186
        %p294 = pneg %p219
        %p295 = pneg %p216
        %s296 = sand.u32 %s206, 1
        %s297 = scalar_lea.sflag [#allocation4], %s296
        %s298 = sand.u32 %s206, 1
        %s299 = smul.addr %s298, 8
        %s300 = scalar_lea.vmem [#allocation3], %s299
        %p301 = scmp.lt.s32.totalorder %s26, 1
        %s302 = scalar_select %p301, %s26, 1
        %p303 = scmp.lt.s32.totalorder %s28, 0
        %s304 = scalar_select %p303, %s28, 0
        %s305 = sadd.s32 %s304, %s302
        %s306 = smul.addr %s305, 8
        %s307 = scalar_lea.vmem %s0, %s306
        %s308 = smul.u32 %s27, %s28
        %p309 = scmp.eq.s32.totalorder %s27, 0
        %p310 = scmp.eq.s32.totalorder %s28, 0
        %p311 = pnand %p309, %p310
        %p312 = pneg %p311
        // Predicated region
        $region49: #{tpu_custom_call.1} parent=47 // pred_check
          _
        $region50: #{tpu_custom_call.1} parent=47 // pred_check_branch
          %314 = sbr.rel (%p311) target = $region52
        $region51: #{tpu_custom_call.1} parent=47 // pred_region
          %vm315 = vcmask 523264
          %316 = vst.msk [vmem:[#allocation2] sm:$0xff] %vm315, 0.0
          %317 = vst.msk [vmem:[#allocation2 + $0x8] sm:$0xff] %vm315, 0.0
          %318 = vst.msk [vmem:[#allocation2 + $0x10] sm:$0xff] %vm315, 0.0
          %319 = vst.msk [vmem:[#allocation2 + $0x18] sm:$0xff] %vm315, 0.0
          %320 = vst.msk [vmem:[#allocation2 + $0x20] sm:$0xff] %vm315, 0.0
          %321 = vst.msk [vmem:[#allocation2 + $0x28] sm:$0xff] %vm315, 0.0
          %322 = vst.msk [vmem:[#allocation2 + $0x30] sm:$0xff] %vm315, 0.0
          %323 = vst.msk [vmem:[#allocation2 + $0x38] sm:$0xff] %vm315, 0.0
          %324 = vst.msk [vmem:[#allocation2 + $0x40] sm:$0xff] %vm315, 0.0
          %325 = vst.msk [vmem:[#allocation2 + $0x48] sm:$0xff] %vm315, 0.0
          %326 = vst.msk [vmem:[#allocation2 + $0x50] sm:$0xff] %vm315, 0.0
          %327 = vst.msk [vmem:[#allocation2 + $0x58] sm:$0xff] %vm315, 0.0
          %328 = vst.msk [vmem:[#allocation2 + $0x60] sm:$0xff] %vm315, 0.0
          %329 = vst.msk [vmem:[#allocation2 + $0x68] sm:$0xff] %vm315, 0.0
          %330 = vst.msk [vmem:[#allocation2 + $0x70] sm:$0xff] %vm315, 0.0
          %331 = vst.msk [vmem:[#allocation2 + $0x78] sm:$0xff] %vm315, 0.0
          %332 = vst.msk [vmem:[#allocation2 + $0x80] sm:$0xff] %vm315, 0.0
          %333 = vst.msk [vmem:[#allocation2 + $0x88] sm:$0xff] %vm315, 0.0
          %334 = vst.msk [vmem:[#allocation2 + $0x90] sm:$0xff] %vm315, 0.0
          %335 = vst.msk [vmem:[#allocation2 + $0x98] sm:$0xff] %vm315, 0.0
          %336 = vst.msk [vmem:[#allocation2 + $0xa0] sm:$0xff] %vm315, 0.0
          %337 = vst.msk [vmem:[#allocation2 + $0xa8] sm:$0xff] %vm315, 0.0
          %338 = vst.msk [vmem:[#allocation2 + $0xb0] sm:$0xff] %vm315, 0.0
          %339 = vst.msk [vmem:[#allocation2 + $0xb8] sm:$0xff] %vm315, 0.0
          %340 = vst.msk [vmem:[#allocation2 + $0xc0] sm:$0xff] %vm315, 0.0
          %341 = vst.msk [vmem:[#allocation2 + $0xc8] sm:$0xff] %vm315, 0.0
          %342 = vst.msk [vmem:[#allocation2 + $0xd0] sm:$0xff] %vm315, 0.0
          %343 = vst.msk [vmem:[#allocation2 + $0xd8] sm:$0xff] %vm315, 0.0
          %344 = vst.msk [vmem:[#allocation2 + $0xe0] sm:$0xff] %vm315, 0.0
          %345 = vst.msk [vmem:[#allocation2 + $0xe8] sm:$0xff] %vm315, 0.0
          %346 = vst.msk [vmem:[#allocation2 + $0xf0] sm:$0xff] %vm315, 0.0
          %347 = vst.msk [vmem:[#allocation2 + $0xf8] sm:$0xff] %vm315, 0.0
        $region52: #{tpu_custom_call.1} parent=47 // pred_fallthru
          _
        // Predicated region
        $region53: #{tpu_custom_call.1} parent=47 // pred_check
          %p348 = pneg %p309
        $region54: #{tpu_custom_call.1} parent=47 // pred_check_branch
          %350 = sbr.rel (%p348) target = $region56
        $region55: #{tpu_custom_call.1} parent=47 // pred_region
          %v351 = vld [vmem:[%s307] sm:$0xff]
          %v352 = vld [vmem:[%s1] sm:$0xff]
          %v353 = vld [vmem:[%s1 + $0x8] sm:$0xff]
          %v354 = vld [vmem:[%s1 + $0x10] sm:$0xff]
          %v355 = vld [vmem:[%s1 + $0x18] sm:$0xff]
          %v356 = vld [vmem:[%s2] sm:$0x1]
          %v358 = vlaneseq
          %v359 = vshrl.u32 %v358, 7
          %v360 = vsub.s32 0, %v359
          %v361 = vrot.slane %v356, %v360
          %366 = vrot.lane.b32.xlu0 %v352, 96
          %v367 = vpop.permute.xlu0 %366
          %368 = vrot.lane.b32.xlu0 %v353, 96
          %v369 = vpop.permute.xlu0 %368
          %370 = vrot.lane.b32.xlu0 %v354, 96
          %v371 = vpop.permute.xlu0 %370
          %372 = vrot.lane.b32.xlu0 %v355, 96
          %v373 = vpop.permute.xlu0 %372
          %378 = vrot.lane.b32.xlu0 %v361, 96
          %v379 = vpop.permute.xlu0 %378
          %vm381 = vcmask 261120
          %v383 = vsel %vm381, %v351, 0
          %385 = vmatprep.subr.mxu0 0.0
          %386 = vmatpush1.msra.mxu0 %v367
          %387 = vmatprep.subr.mxu0 0.0
          %388 = vmatpush1.msra.mxu0 %v369
          %389 = vmatprep.subr.mxu0 0.0
          %390 = vmatpush1.msra.mxu0 %v371
          %391 = vmatprep.subr.mxu0 0.0
          %392 = vmatpush1.msra.mxu0 %v373
          %393 = vmatprep.subr.mxu0 0.0
          %394 = vmatpush1.msra.mxu0 0.0
          %395 = vmatprep.subr.mxu0 0.0
          %396 = vmatpush1.msra.mxu0 0.0
          %397 = vmatprep.subr.mxu0 0.0
          %398 = vmatpush1.msra.mxu0 0.0
          %399 = vmatprep.subr.mxu0 0.0
          %400 = vmatpush1.msra.mxu0 0.0
          %401 = vmatprep.subr.mxu0 0.0
          %402 = vmatpush1.msra.mxu0 0.0
          %403 = vmatprep.subr.mxu0 0.0
          %404 = vmatpush1.msra.mxu0 0.0
          %405 = vmatprep.subr.mxu0 0.0
          %406 = vmatpush1.msra.mxu0 0.0
          %407 = vmatprep.subr.mxu0 0.0
          %408 = vmatpush1.msra.mxu0 0.0
          %409 = vmatprep.subr.mxu0 0.0
          %410 = vmatpush1.msra.mxu0 0.0
          %411 = vmatprep.subr.mxu0 0.0
          %412 = vmatpush1.msra.mxu0 0.0
          %413 = vmatprep.subr.mxu0 0.0
          %414 = vmatpush1.msra.mxu0 0.0
          %415 = vmatprep.subr.mxu0 0.0
          %416 = vmatpush1.msra.mxu0 0.0
          %417 = vmatprep.subr.mxu0 0.0
          %418 = vmatpush1.msra.mxu0 0.0
          %419 = vmatprep.subr.mxu0 0.0
          %420 = vmatpush1.msra.mxu0 0.0
          %421 = vmatprep.subr.mxu0 0.0
          %422 = vmatpush1.msra.mxu0 0.0
          %423 = vmatprep.subr.mxu0 0.0
          %424 = vmatpush1.msra.mxu0 0.0
          %425 = vmatprep.subr.mxu0 0.0
          %426 = vmatpush1.msra.mxu0 0.0
          %427 = vmatprep.subr.mxu0 0.0
          %428 = vmatpush1.msra.mxu0 0.0
          %429 = vmatprep.subr.mxu0 0.0
          %430 = vmatpush1.msra.mxu0 0.0
          %431 = vmatprep.subr.mxu0 0.0
          %432 = vmatpush1.msra.mxu0 0.0
          %433 = vmatprep.subr.mxu0 0.0
          %434 = vmatpush1.msra.mxu0 0.0
          %435 = vmatprep.subr.mxu0 0.0
          %436 = vmatpush1.msra.mxu0 0.0
          %437 = vmatprep.subr.mxu0 0.0
          %438 = vmatpush1.msra.mxu0 0.0
          %439 = vmatprep.subr.mxu0 0.0
          %440 = vmatpush1.msra.mxu0 0.0
          %441 = vmatprep.subr.mxu0 0.0
          %442 = vmatpush1.msra.mxu0 0.0
          %443 = vmatprep.subr.mxu0 0.0
          %444 = vmatpush1.msra.mxu0 0.0
          %445 = vmatprep.subr.mxu0 0.0
          %446 = vmatpush1.msra.mxu0 0.0
          %447 = vmatprep.subr.mxu0 0.0
          %448 = vmatpush1.msra.mxu0 0.0
          %449 = vmatprep.mubr.f32.mxu0 0.0
          %450 = vmatmul.mubr.f32.gmra.mrb[0].mxu0 %v383
          %v451 = vpop.f32.mrb[0].mxu0
          %v452 = vadd.f32 %v379, %v451
          %v453 = vpop.f32.mrb[0].mxu0
          %454 = vdwg.mxu0
          %v455 = vld [vmem:[%s3] sm:$0xff]
          %v456 = vld [vmem:[%s3 + $0x8] sm:$0xff]
          %v457 = vld [vmem:[%s3 + $0x10] sm:$0xff]
          %v458 = vld [vmem:[%s3 + $0x18] sm:$0xff]
          %v459 = vld [vmem:[%s3 + $0x20] sm:$0xff]
          %v460 = vld [vmem:[%s3 + $0x28] sm:$0xff]
          %v461 = vld [vmem:[%s3 + $0x30] sm:$0xff]
          %v462 = vld [vmem:[%s3 + $0x38] sm:$0xff]
          %v464 = vsel %vm381, %v452, 0
          %466 = vmatprep.subr.mxu0 %v456
          %467 = vmatpush1.msra.mxu0 %v455
          %468 = vmatprep.subr.mxu0 %v458
          %469 = vmatpush1.msra.mxu0 %v457
          %470 = vmatprep.subr.mxu0 %v460
          %471 = vmatpush1.msra.mxu0 %v459
          %472 = vmatprep.subr.mxu0 %v462
          %473 = vmatpush1.msra.mxu0 %v461
          %474 = vmatprep.subr.mxu0 0.0
          %475 = vmatpush1.msra.mxu0 0.0
          %476 = vmatprep.subr.mxu0 0.0
          %477 = vmatpush1.msra.mxu0 0.0
          %478 = vmatprep.subr.mxu0 0.0
          %479 = vmatpush1.msra.mxu0 0.0
          %480 = vmatprep.subr.mxu0 0.0
          %481 = vmatpush1.msra.mxu0 0.0
          %482 = vmatprep.subr.mxu0 0.0
          %483 = vmatpush1.msra.mxu0 0.0
          %484 = vmatprep.subr.mxu0 0.0
          %485 = vmatpush1.msra.mxu0 0.0
          %486 = vmatprep.subr.mxu0 0.0
          %487 = vmatpush1.msra.mxu0 0.0
          %488 = vmatprep.subr.mxu0 0.0
          %489 = vmatpush1.msra.mxu0 0.0
          %490 = vmatprep.subr.mxu0 0.0
          %491 = vmatpush1.msra.mxu0 0.0
          %492 = vmatprep.subr.mxu0 0.0
          %493 = vmatpush1.msra.mxu0 0.0
          %494 = vmatprep.subr.mxu0 0.0
          %495 = vmatpush1.msra.mxu0 0.0
          %496 = vmatprep.subr.mxu0 0.0
          %497 = vmatpush1.msra.mxu0 0.0
          %498 = vmatprep.subr.mxu0 0.0
          %499 = vmatpush1.msra.mxu0 0.0
          %500 = vmatprep.subr.mxu0 0.0
          %501 = vmatpush1.msra.mxu0 0.0
          %502 = vmatprep.subr.mxu0 0.0
          %503 = vmatpush1.msra.mxu0 0.0
          %504 = vmatprep.subr.mxu0 0.0
          %505 = vmatpush1.msra.mxu0 0.0
          %506 = vmatprep.subr.mxu0 0.0
          %507 = vmatpush1.msra.mxu0 0.0
          %508 = vmatprep.subr.mxu0 0.0
          %509 = vmatpush1.msra.mxu0 0.0
          %510 = vmatprep.subr.mxu0 0.0
          %511 = vmatpush1.msra.mxu0 0.0
          %512 = vmatprep.subr.mxu0 0.0
          %513 = vmatpush1.msra.mxu0 0.0
          %514 = vmatprep.subr.mxu0 0.0
          %515 = vmatpush1.msra.mxu0 0.0
          %516 = vmatprep.subr.mxu0 0.0
          %517 = vmatpush1.msra.mxu0 0.0
          %518 = vmatprep.subr.mxu0 0.0
          %519 = vmatpush1.msra.mxu0 0.0
          %520 = vmatprep.subr.mxu0 0.0
          %521 = vmatpush1.msra.mxu0 0.0
          %522 = vmatprep.subr.mxu0 0.0
          %523 = vmatpush1.msra.mxu0 0.0
          %524 = vmatprep.subr.mxu0 0.0
          %525 = vmatpush1.msra.mxu0 0.0
          %526 = vmatprep.subr.mxu0 0.0
          %527 = vmatpush1.msra.mxu0 0.0
          %528 = vmatprep.subr.mxu0 0.0
          %529 = vmatpush1.msra.mxu0 0.0
          %530 = vmatprep.mubr.f32.mxu0 0.0
          %531 = vmatmul.mubr.f32.gmra.mrb[0].mxu0 %v464
          %v532 = vpop.f32.mrb[0].mxu0
          %v533 = vadd.f32 0.0, %v532
          %v534 = vpop.f32.mrb[0].mxu0
          %v535 = vadd.f32 0.0, %v534
          %536 = vdwg.mxu0
          %v537 = vmax.f32 %v533, 0.0
          %v538 = vmax.f32 %v535, 0.0
          %539 = vrot.lane.b32.xlu0 %v452, 96
          %v540 = vpop.permute.xlu0 %539
          %v542 = vsel %vm381, %v540, 1.0
          %v543 = vld [vmem:[#allocation2] sm:$0xff]
          %v544 = vld [vmem:[#allocation2 + $0x8] sm:$0xff]
          %v545 = vld [vmem:[#allocation2 + $0x10] sm:$0xff]
          %v546 = vld [vmem:[#allocation2 + $0x18] sm:$0xff]
          %v547 = vld [vmem:[#allocation2 + $0x20] sm:$0xff]
          %v548 = vld [vmem:[#allocation2 + $0x28] sm:$0xff]
          %v549 = vld [vmem:[#allocation2 + $0x30] sm:$0xff]
          %v550 = vld [vmem:[#allocation2 + $0x38] sm:$0xff]
          %v551 = vld [vmem:[#allocation2 + $0x40] sm:$0xff]
          %v552 = vld [vmem:[#allocation2 + $0x48] sm:$0xff]
          %v553 = vld [vmem:[#allocation2 + $0x50] sm:$0xff]
          %v554 = vld [vmem:[#allocation2 + $0x58] sm:$0xff]
          %v555 = vld [vmem:[#allocation2 + $0x60] sm:$0xff]
          %v556 = vld [vmem:[#allocation2 + $0x68] sm:$0xff]
          %v557 = vld [vmem:[#allocation2 + $0x70] sm:$0xff]
          %v558 = vld [vmem:[#allocation2 + $0x78] sm:$0xff]
          %v559 = vld [vmem:[#allocation2 + $0x80] sm:$0xff]
          %v560 = vld [vmem:[#allocation2 + $0x88] sm:$0xff]
          %v561 = vld [vmem:[#allocation2 + $0x90] sm:$0xff]
          %v562 = vld [vmem:[#allocation2 + $0x98] sm:$0xff]
          %v563 = vld [vmem:[#allocation2 + $0xa0] sm:$0xff]
          %v564 = vld [vmem:[#allocation2 + $0xa8] sm:$0xff]
          %v565 = vld [vmem:[#allocation2 + $0xb0] sm:$0xff]
          %v566 = vld [vmem:[#allocation2 + $0xb8] sm:$0xff]
          %v567 = vld [vmem:[#allocation2 + $0xc0] sm:$0xff]
          %v568 = vld [vmem:[#allocation2 + $0xc8] sm:$0xff]
          %v569 = vld [vmem:[#allocation2 + $0xd0] sm:$0xff]
          %v570 = vld [vmem:[#allocation2 + $0xd8] sm:$0xff]
          %v571 = vld [vmem:[#allocation2 + $0xe0] sm:$0xff]
          %v572 = vld [vmem:[#allocation2 + $0xe8] sm:$0xff]
          %v573 = vld [vmem:[#allocation2 + $0xf0] sm:$0xff]
          %v574 = vld [vmem:[#allocation2 + $0xf8] sm:$0xff]
          %575 = vxpose.xlu0.b32.start [1/16] %v537, 128
          %576 = vxpose.xlu0.b32.cont [2/16] 0.0, 128
          %577 = vxpose.xlu0.b32.cont [3/16] 0.0, 128
          %578 = vxpose.xlu0.b32.cont [4/16] 0.0, 128
          %579 = vxpose.xlu0.b32.cont [5/16] 0.0, 128
          %580 = vxpose.xlu0.b32.cont [6/16] 0.0, 128
          %581 = vxpose.xlu0.b32.cont [7/16] 0.0, 128
          %582 = vxpose.xlu0.b32.cont [8/16] 0.0, 128
          %583 = vxpose.xlu0.b32.cont [9/16] 0.0, 128
          %584 = vxpose.xlu0.b32.cont [10/16] 0.0, 128
          %585 = vxpose.xlu0.b32.cont [11/16] 0.0, 128
          %586 = vxpose.xlu0.b32.cont [12/16] 0.0, 128
          %587 = vxpose.xlu0.b32.cont [13/16] 0.0, 128
          %588 = vxpose.xlu0.b32.cont [14/16] 0.0, 128
          %589 = vxpose.xlu0.b32.cont [15/16] 0.0, 128
          %590 = vxpose.xlu0.b32.end [16/16] 0.0, 128
          %v591 = vpop.trf.xlu0
          %v592 = vpop.trf.xlu0
          %v593 = vpop.trf.xlu0
          %v594 = vpop.trf.xlu0
          %v595 = vpop.trf.xlu0
          %v596 = vpop.trf.xlu0
          %v597 = vpop.trf.xlu0
          %v598 = vpop.trf.xlu0
          %v599 = vpop.trf.xlu0
          %v600 = vpop.trf.xlu0
          %v601 = vpop.trf.xlu0
          %v602 = vpop.trf.xlu0
          %v603 = vpop.trf.xlu0
          %v604 = vpop.trf.xlu0
          %v605 = vpop.trf.xlu0
          %v606 = vpop.trf.xlu0
          %607 = vxpose.xlu0.b32.start [1/16] %v538, 128
          %608 = vxpose.xlu0.b32.cont [2/16] 0.0, 128
          %609 = vxpose.xlu0.b32.cont [3/16] 0.0, 128
          %610 = vxpose.xlu0.b32.cont [4/16] 0.0, 128
          %611 = vxpose.xlu0.b32.cont [5/16] 0.0, 128
          %612 = vxpose.xlu0.b32.cont [6/16] 0.0, 128
          %613 = vxpose.xlu0.b32.cont [7/16] 0.0, 128
          %614 = vxpose.xlu0.b32.cont [8/16] 0.0, 128
          %615 = vxpose.xlu0.b32.cont [9/16] 0.0, 128
          %616 = vxpose.xlu0.b32.cont [10/16] 0.0, 128
          %617 = vxpose.xlu0.b32.cont [11/16] 0.0, 128
          %618 = vxpose.xlu0.b32.cont [12/16] 0.0, 128
          %619 = vxpose.xlu0.b32.cont [13/16] 0.0, 128
          %620 = vxpose.xlu0.b32.cont [14/16] 0.0, 128
          %621 = vxpose.xlu0.b32.cont [15/16] 0.0, 128
          %622 = vxpose.xlu0.b32.end [16/16] 0.0, 128
          %v623 = vpop.trf.xlu0
          %v624 = vpop.trf.xlu0
          %v625 = vpop.trf.xlu0
          %v626 = vpop.trf.xlu0
          %v627 = vpop.trf.xlu0
          %v628 = vpop.trf.xlu0
          %v629 = vpop.trf.xlu0
          %v630 = vpop.trf.xlu0
          %v631 = vpop.trf.xlu0
          %v632 = vpop.trf.xlu0
          %v633 = vpop.trf.xlu0
          %v634 = vpop.trf.xlu0
          %v635 = vpop.trf.xlu0
          %v636 = vpop.trf.xlu0
          %v637 = vpop.trf.xlu0
          %v638 = vpop.trf.xlu0
          %vm639 = vcmask 64512
          %v641 = vsel %vm639, %v591, 0
          %v644 = vsel %vm639, %v592, 0
          %v647 = vsel %vm639, %v593, 0
          %v650 = vsel %vm639, %v594, 0
          %v653 = vsel %vm639, %v595, 0
          %v656 = vsel %vm639, %v596, 0
          %v659 = vsel %vm639, %v597, 0
          %v662 = vsel %vm639, %v598, 0
          %v665 = vsel %vm639, %v599, 0
          %v668 = vsel %vm639, %v600, 0
          %v671 = vsel %vm639, %v601, 0
          %v674 = vsel %vm639, %v602, 0
          %v677 = vsel %vm639, %v603, 0
          %v680 = vsel %vm639, %v604, 0
          %v683 = vsel %vm639, %v605, 0
          %v686 = vsel %vm639, %v606, 0
          %v689 = vsel %vm639, %v623, 0
          %v692 = vsel %vm639, %v624, 0
          %v695 = vsel %vm639, %v625, 0
          %v698 = vsel %vm639, %v626, 0
          %v701 = vsel %vm639, %v627, 0
          %v704 = vsel %vm639, %v628, 0
          %v707 = vsel %vm639, %v629, 0
          %v710 = vsel %vm639, %v630, 0
          %v713 = vsel %vm639, %v631, 0
          %v716 = vsel %vm639, %v632, 0
          %v719 = vsel %vm639, %v633, 0
          %v722 = vsel %vm639, %v634, 0
          %v725 = vsel %vm639, %v635, 0
          %v728 = vsel %vm639, %v636, 0
          %v731 = vsel %vm639, %v637, 0
          %v734 = vsel %vm639, %v638, 0
          %736 = vmatprep.subr.mxu0 0.0
          %737 = vmatpush1.msra.mxu0 %v542
          %738 = vmatprep.subr.mxu0 0.0
          %739 = vmatpush1.msra.mxu0 0.0
          %740 = vmatprep.subr.mxu0 0.0
          %741 = vmatpush1.msra.mxu0 0.0
          %742 = vmatprep.subr.mxu0 0.0
          %743 = vmatpush1.msra.mxu0 0.0
          %744 = vmatprep.subr.mxu0 0.0
          %745 = vmatpush1.msra.mxu0 0.0
          %746 = vmatprep.subr.mxu0 0.0
          %747 = vmatpush1.msra.mxu0 0.0
          %748 = vmatprep.subr.mxu0 0.0
          %749 = vmatpush1.msra.mxu0 0.0
          %750 = vmatprep.subr.mxu0 0.0
          %751 = vmatpush1.msra.mxu0 0.0
          %752 = vmatprep.subr.mxu0 0.0
          %753 = vmatpush1.msra.mxu0 0.0
          %754 = vmatprep.subr.mxu0 0.0
          %755 = vmatpush1.msra.mxu0 0.0
          %756 = vmatprep.subr.mxu0 0.0
          %757 = vmatpush1.msra.mxu0 0.0
          %758 = vmatprep.subr.mxu0 0.0
          %759 = vmatpush1.msra.mxu0 0.0
          %760 = vmatprep.subr.mxu0 0.0
          %761 = vmatpush1.msra.mxu0 0.0
          %762 = vmatprep.subr.mxu0 0.0
          %763 = vmatpush1.msra.mxu0 0.0
          %764 = vmatprep.subr.mxu0 0.0
          %765 = vmatpush1.msra.mxu0 0.0
          %766 = vmatprep.subr.mxu0 0.0
          %767 = vmatpush1.msra.mxu0 0.0
          %768 = vmatprep.subr.mxu0 0.0
          %769 = vmatpush1.msra.mxu0 0.0
          %770 = vmatprep.subr.mxu0 0.0
          %771 = vmatpush1.msra.mxu0 0.0
          %772 = vmatprep.subr.mxu0 0.0
          %773 = vmatpush1.msra.mxu0 0.0
          %774 = vmatprep.subr.mxu0 0.0
          %775 = vmatpush1.msra.mxu0 0.0
          %776 = vmatprep.subr.mxu0 0.0
          %777 = vmatpush1.msra.mxu0 0.0
          %778 = vmatprep.subr.mxu0 0.0
          %779 = vmatpush1.msra.mxu0 0.0
          %780 = vmatprep.subr.mxu0 0.0
          %781 = vmatpush1.msra.mxu0 0.0
          %782 = vmatprep.subr.mxu0 0.0
          %783 = vmatpush1.msra.mxu0 0.0
          %784 = vmatprep.subr.mxu0 0.0
          %785 = vmatpush1.msra.mxu0 0.0
          %786 = vmatprep.subr.mxu0 0.0
          %787 = vmatpush1.msra.mxu0 0.0
          %788 = vmatprep.subr.mxu0 0.0
          %789 = vmatpush1.msra.mxu0 0.0
          %790 = vmatprep.subr.mxu0 0.0
          %791 = vmatpush1.msra.mxu0 0.0
          %792 = vmatprep.subr.mxu0 0.0
          %793 = vmatpush1.msra.mxu0 0.0
          %794 = vmatprep.subr.mxu0 0.0
          %795 = vmatpush1.msra.mxu0 0.0
          %796 = vmatprep.subr.mxu0 0.0
          %797 = vmatpush1.msra.mxu0 0.0
          %798 = vmatprep.subr.mxu0 0.0
          %799 = vmatpush1.msra.mxu0 0.0
          %800 = vmatprep.mubr.f32.mxu0 0.0
          %801 = vmatmul.mubr.f32.gmra.mrb[0].mxu0 %v641
          %v802 = vpop.f32.mrb[0].mxu0
          %v803 = vadd.f32 0.0, %v802
          %v804 = vpop.f32.mrb[0].mxu0
          %805 = vmatprep.mubr.f32.mxu0 0.0
          %806 = vmatmul.mubr.f32.gmra.mrb[0].mxu0 %v644
          %v807 = vpop.f32.mrb[0].mxu0
          %v808 = vadd.f32 0.0, %v807
          %v809 = vpop.f32.mrb[0].mxu0
          %810 = vmatprep.mubr.f32.mxu0 0.0
          %811 = vmatmul.mubr.f32.gmra.mrb[0].mxu0 %v647
          %v812 = vpop.f32.mrb[0].mxu0
          %v813 = vadd.f32 0.0, %v812
          %v814 = vpop.f32.mrb[0].mxu0
          %815 = vmatprep.mubr.f32.mxu0 0.0
          %816 = vmatmul.mubr.f32.gmra.mrb[0].mxu0 %v650
          %v817 = vpop.f32.mrb[0].mxu0
          %v818 = vadd.f32 0.0, %v817
          %v819 = vpop.f32.mrb[0].mxu0
          %820 = vmatprep.mubr.f32.mxu0 0.0
          %821 = vmatmul.mubr.f32.gmra.mrb[0].mxu0 %v653
          %v822 = vpop.f32.mrb[0].mxu0
          %v823 = vadd.f32 0.0, %v822
          %v824 = vpop.f32.mrb[0].mxu0
          %825 = vmatprep.mubr.f32.mxu0 0.0
          %826 = vmatmul.mubr.f32.gmra.mrb[0].mxu0 %v656
          %v827 = vpop.f32.mrb[0].mxu0
          %v828 = vadd.f32 0.0, %v827
          %v829 = vpop.f32.mrb[0].mxu0
          %830 = vmatprep.mubr.f32.mxu0 0.0
          %831 = vmatmul.mubr.f32.gmra.mrb[0].mxu0 %v659
          %v832 = vpop.f32.mrb[0].mxu0
          %v833 = vadd.f32 0.0, %v832
          %v834 = vpop.f32.mrb[0].mxu0
          %835 = vmatprep.mubr.f32.mxu0 0.0
          %836 = vmatmul.mubr.f32.gmra.mrb[0].mxu0 %v662
          %v837 = vpop.f32.mrb[0].mxu0
          %v838 = vadd.f32 0.0, %v837
          %v839 = vpop.f32.mrb[0].mxu0
          %840 = vmatprep.mubr.f32.mxu0 0.0
          %841 = vmatmul.mubr.f32.gmra.mrb[0].mxu0 %v665
          %v842 = vpop.f32.mrb[0].mxu0
          %v843 = vadd.f32 0.0, %v842
          %v844 = vpop.f32.mrb[0].mxu0
          %845 = vmatprep.mubr.f32.mxu0 0.0
          %846 = vmatmul.mubr.f32.gmra.mrb[0].mxu0 %v668
          %v847 = vpop.f32.mrb[0].mxu0
          %v848 = vadd.f32 0.0, %v847
          %v849 = vpop.f32.mrb[0].mxu0
          %850 = vmatprep.mubr.f32.mxu0 0.0
          %851 = vmatmul.mubr.f32.gmra.mrb[0].mxu0 %v671
          %v852 = vpop.f32.mrb[0].mxu0
          %v853 = vadd.f32 0.0, %v852
          %v854 = vpop.f32.mrb[0].mxu0
          %855 = vmatprep.mubr.f32.mxu0 0.0
          %856 = vmatmul.mubr.f32.gmra.mrb[0].mxu0 %v674
          %v857 = vpop.f32.mrb[0].mxu0
          %v858 = vadd.f32 0.0, %v857
          %v859 = vpop.f32.mrb[0].mxu0
          %860 = vmatprep.mubr.f32.mxu0 0.0
          %861 = vmatmul.mubr.f32.gmra.mrb[0].mxu0 %v677
          %v862 = vpop.f32.mrb[0].mxu0
          %v863 = vadd.f32 0.0, %v862
          %v864 = vpop.f32.mrb[0].mxu0
          %865 = vmatprep.mubr.f32.mxu0 0.0
          %866 = vmatmul.mubr.f32.gmra.mrb[0].mxu0 %v680
          %v867 = vpop.f32.mrb[0].mxu0
          %v868 = vadd.f32 0.0, %v867
          %v869 = vpop.f32.mrb[0].mxu0
          %870 = vmatprep.mubr.f32.mxu0 0.0
          %871 = vmatmul.mubr.f32.gmra.mrb[0].mxu0 %v683
          %v872 = vpop.f32.mrb[0].mxu0
          %v873 = vadd.f32 0.0, %v872
          %v874 = vpop.f32.mrb[0].mxu0
          %875 = vmatprep.mubr.f32.mxu0 0.0
          %876 = vmatmul.mubr.f32.gmra.mrb[0].mxu0 %v686
          %v877 = vpop.f32.mrb[0].mxu0
          %v878 = vadd.f32 0.0, %v877
          %v879 = vpop.f32.mrb[0].mxu0
          %880 = vmatprep.mubr.f32.mxu0 0.0
          %881 = vmatmul.mubr.f32.gmra.mrb[0].mxu0 %v689
          %v882 = vpop.f32.mrb[0].mxu0
          %v883 = vadd.f32 0.0, %v882
          %v884 = vpop.f32.mrb[0].mxu0
          %885 = vmatprep.mubr.f32.mxu0 0.0
          %886 = vmatmul.mubr.f32.gmra.mrb[0].mxu0 %v692
          %v887 = vpop.f32.mrb[0].mxu0
          %v888 = vadd.f32 0.0, %v887
          %v889 = vpop.f32.mrb[0].mxu0
          %890 = vmatprep.mubr.f32.mxu0 0.0
          %891 = vmatmul.mubr.f32.gmra.mrb[0].mxu0 %v695
          %v892 = vpop.f32.mrb[0].mxu0
          %v893 = vadd.f32 0.0, %v892
          %v894 = vpop.f32.mrb[0].mxu0
          %895 = vmatprep.mubr.f32.mxu0 0.0
          %896 = vmatmul.mubr.f32.gmra.mrb[0].mxu0 %v698
          %v897 = vpop.f32.mrb[0].mxu0
          %v898 = vadd.f32 0.0, %v897
          %v899 = vpop.f32.mrb[0].mxu0
          %900 = vmatprep.mubr.f32.mxu0 0.0
          %901 = vmatmul.mubr.f32.gmra.mrb[0].mxu0 %v701
          %v902 = vpop.f32.mrb[0].mxu0
          %v903 = vadd.f32 0.0, %v902
          %v904 = vpop.f32.mrb[0].mxu0
          %905 = vmatprep.mubr.f32.mxu0 0.0
          %906 = vmatmul.mubr.f32.gmra.mrb[0].mxu0 %v704
          %v907 = vpop.f32.mrb[0].mxu0
          %v908 = vadd.f32 0.0, %v907
          %v909 = vpop.f32.mrb[0].mxu0
          %910 = vmatprep.mubr.f32.mxu0 0.0
          %911 = vmatmul.mubr.f32.gmra.mrb[0].mxu0 %v707
          %v912 = vpop.f32.mrb[0].mxu0
          %v913 = vadd.f32 0.0, %v912
          %v914 = vpop.f32.mrb[0].mxu0
          %915 = vmatprep.mubr.f32.mxu0 0.0
          %916 = vmatmul.mubr.f32.gmra.mrb[0].mxu0 %v710
          %v917 = vpop.f32.mrb[0].mxu0
          %v918 = vadd.f32 0.0, %v917
          %v919 = vpop.f32.mrb[0].mxu0
          %920 = vmatprep.mubr.f32.mxu0 0.0
          %921 = vmatmul.mubr.f32.gmra.mrb[0].mxu0 %v713
          %v922 = vpop.f32.mrb[0].mxu0
          %v923 = vadd.f32 0.0, %v922
          %v924 = vpop.f32.mrb[0].mxu0
          %925 = vmatprep.mubr.f32.mxu0 0.0
          %926 = vmatmul.mubr.f32.gmra.mrb[0].mxu0 %v716
          %v927 = vpop.f32.mrb[0].mxu0
          %v928 = vadd.f32 0.0, %v927
          %v929 = vpop.f32.mrb[0].mxu0
          %930 = vmatprep.mubr.f32.mxu0 0.0
          %931 = vmatmul.mubr.f32.gmra.mrb[0].mxu0 %v719
          %v932 = vpop.f32.mrb[0].mxu0
          %v933 = vadd.f32 0.0, %v932
          %v934 = vpop.f32.mrb[0].mxu0
          %935 = vmatprep.mubr.f32.mxu0 0.0
          %936 = vmatmul.mubr.f32.gmra.mrb[0].mxu0 %v722
          %v937 = vpop.f32.mrb[0].mxu0
          %v938 = vadd.f32 0.0, %v937
          %v939 = vpop.f32.mrb[0].mxu0
          %940 = vmatprep.mubr.f32.mxu0 0.0
          %941 = vmatmul.mubr.f32.gmra.mrb[0].mxu0 %v725
          %v942 = vpop.f32.mrb[0].mxu0
          %v943 = vadd.f32 0.0, %v942
          %v944 = vpop.f32.mrb[0].mxu0
          %945 = vmatprep.mubr.f32.mxu0 0.0
          %946 = vmatmul.mubr.f32.gmra.mrb[0].mxu0 %v728
          %v947 = vpop.f32.mrb[0].mxu0
          %v948 = vadd.f32 0.0, %v947
          %v949 = vpop.f32.mrb[0].mxu0
          %950 = vmatprep.mubr.f32.mxu0 0.0
          %951 = vmatmul.mubr.f32.gmra.mrb[0].mxu0 %v731
          %v952 = vpop.f32.mrb[0].mxu0
          %v953 = vadd.f32 0.0, %v952
          %v954 = vpop.f32.mrb[0].mxu0
          %955 = vmatprep.mubr.f32.mxu0 0.0
          %956 = vmatmul.mubr.f32.gmra.mrb[0].mxu0 %v734
          %v957 = vpop.f32.mrb[0].mxu0
          %v958 = vadd.f32 0.0, %v957
          %v959 = vpop.f32.mrb[0].mxu0
          %960 = vdwg.mxu0
          %v961 = vadd.f32 %v543, %v803
          %v962 = vadd.f32 %v544, %v808
          %v963 = vadd.f32 %v545, %v813
          %v964 = vadd.f32 %v546, %v818
          %v965 = vadd.f32 %v547, %v823
          %v966 = vadd.f32 %v548, %v828
          %v967 = vadd.f32 %v549, %v833
          %v968 = vadd.f32 %v550, %v838
          %v969 = vadd.f32 %v551, %v843
          %v970 = vadd.f32 %v552, %v848
          %v971 = vadd.f32 %v553, %v853
          %v972 = vadd.f32 %v554, %v858
          %v973 = vadd.f32 %v555, %v863
          %v974 = vadd.f32 %v556, %v868
          %v975 = vadd.f32 %v557, %v873
          %v976 = vadd.f32 %v558, %v878
          %v977 = vadd.f32 %v559, %v883
          %v978 = vadd.f32 %v560, %v888
          %v979 = vadd.f32 %v561, %v893
          %v980 = vadd.f32 %v562, %v898
          %v981 = vadd.f32 %v563, %v903
          %v982 = vadd.f32 %v564, %v908
          %v983 = vadd.f32 %v565, %v913
          %v984 = vadd.f32 %v566, %v918
          %v985 = vadd.f32 %v567, %v923
          %v986 = vadd.f32 %v568, %v928
          %v987 = vadd.f32 %v569, %v933
          %v988 = vadd.f32 %v570, %v938
          %v989 = vadd.f32 %v571, %v943
          %v990 = vadd.f32 %v572, %v948
          %v991 = vadd.f32 %v573, %v953
          %v992 = vadd.f32 %v574, %v958
          %vm993 = vcmask 523264
          %994 = vst.msk [vmem:[#allocation2] sm:$0xff] %vm993, %v961
          %995 = vst.msk [vmem:[#allocation2 + $0x8] sm:$0xff] %vm993, %v962
          %996 = vst.msk [vmem:[#allocation2 + $0x10] sm:$0xff] %vm993, %v963
          %997 = vst.msk [vmem:[#allocation2 + $0x18] sm:$0xff] %vm993, %v964
          %998 = vst.msk [vmem:[#allocation2 + $0x20] sm:$0xff] %vm993, %v965
          %999 = vst.msk [vmem:[#allocation2 + $0x28] sm:$0xff] %vm993, %v966
          %1000 = vst.msk [vmem:[#allocation2 + $0x30] sm:$0xff] %vm993, %v967
          %1001 = vst.msk [vmem:[#allocation2 + $0x38] sm:$0xff] %vm993, %v968
          %1002 = vst.msk [vmem:[#allocation2 + $0x40] sm:$0xff] %vm993, %v969
          %1003 = vst.msk [vmem:[#allocation2 + $0x48] sm:$0xff] %vm993, %v970
          %1004 = vst.msk [vmem:[#allocation2 + $0x50] sm:$0xff] %vm993, %v971
          %1005 = vst.msk [vmem:[#allocation2 + $0x58] sm:$0xff] %vm993, %v972
          %1006 = vst.msk [vmem:[#allocation2 + $0x60] sm:$0xff] %vm993, %v973
          %1007 = vst.msk [vmem:[#allocation2 + $0x68] sm:$0xff] %vm993, %v974
          %1008 = vst.msk [vmem:[#allocation2 + $0x70] sm:$0xff] %vm993, %v975
          %1009 = vst.msk [vmem:[#allocation2 + $0x78] sm:$0xff] %vm993, %v976
          %1010 = vst.msk [vmem:[#allocation2 + $0x80] sm:$0xff] %vm993, %v977
          %1011 = vst.msk [vmem:[#allocation2 + $0x88] sm:$0xff] %vm993, %v978
          %1012 = vst.msk [vmem:[#allocation2 + $0x90] sm:$0xff] %vm993, %v979
          %1013 = vst.msk [vmem:[#allocation2 + $0x98] sm:$0xff] %vm993, %v980
          %1014 = vst.msk [vmem:[#allocation2 + $0xa0] sm:$0xff] %vm993, %v981
          %1015 = vst.msk [vmem:[#allocation2 + $0xa8] sm:$0xff] %vm993, %v982
          %1016 = vst.msk [vmem:[#allocation2 + $0xb0] sm:$0xff] %vm993, %v983
          %1017 = vst.msk [vmem:[#allocation2 + $0xb8] sm:$0xff] %vm993, %v984
          %1018 = vst.msk [vmem:[#allocation2 + $0xc0] sm:$0xff] %vm993, %v985
          %1019 = vst.msk [vmem:[#allocation2 + $0xc8] sm:$0xff] %vm993, %v986
          %1020 = vst.msk [vmem:[#allocation2 + $0xd0] sm:$0xff] %vm993, %v987
          %1021 = vst.msk [vmem:[#allocation2 + $0xd8] sm:$0xff] %vm993, %v988
          %1022 = vst.msk [vmem:[#allocation2 + $0xe0] sm:$0xff] %vm993, %v989
          %1023 = vst.msk [vmem:[#allocation2 + $0xe8] sm:$0xff] %vm993, %v990
          %1024 = vst.msk [vmem:[#allocation2 + $0xf0] sm:$0xff] %vm993, %v991
          %1025 = vst.msk [vmem:[#allocation2 + $0xf8] sm:$0xff] %vm993, %v992
        $region56: #{tpu_custom_call.1} parent=47 // pred_fallthru
          _
        // Predicated region
        $region57: #{tpu_custom_call.1} parent=47 // pred_check
          _
        $region58: #{tpu_custom_call.1} parent=47 // pred_check_branch
          %1027 = sbr.rel (%p311) target = $region60
        $region59: #{tpu_custom_call.1} parent=47 // pred_region
          %v1028 = vld [vmem:[#allocation2] sm:$0xff]
          %v1029 = vld [vmem:[#allocation2 + $0x8] sm:$0xff]
          %v1030 = vld [vmem:[#allocation2 + $0x10] sm:$0xff]
          %v1031 = vld [vmem:[#allocation2 + $0x18] sm:$0xff]
          %v1032 = vld [vmem:[#allocation2 + $0x20] sm:$0xff]
          %v1033 = vld [vmem:[#allocation2 + $0x28] sm:$0xff]
          %v1034 = vld [vmem:[#allocation2 + $0x30] sm:$0xff]
          %v1035 = vld [vmem:[#allocation2 + $0x38] sm:$0xff]
          %v1036 = vld [vmem:[#allocation2 + $0x40] sm:$0xff]
          %v1037 = vld [vmem:[#allocation2 + $0x48] sm:$0xff]
          %v1038 = vld [vmem:[#allocation2 + $0x50] sm:$0xff]
          %v1039 = vld [vmem:[#allocation2 + $0x58] sm:$0xff]
          %v1040 = vld [vmem:[#allocation2 + $0x60] sm:$0xff]
          %v1041 = vld [vmem:[#allocation2 + $0x68] sm:$0xff]
          %v1042 = vld [vmem:[#allocation2 + $0x70] sm:$0xff]
          %v1043 = vld [vmem:[#allocation2 + $0x78] sm:$0xff]
          %v1044 = vld [vmem:[#allocation2 + $0x80] sm:$0xff]
          %v1045 = vld [vmem:[#allocation2 + $0x88] sm:$0xff]
          %v1046 = vld [vmem:[#allocation2 + $0x90] sm:$0xff]
          %v1047 = vld [vmem:[#allocation2 + $0x98] sm:$0xff]
          %v1048 = vld [vmem:[#allocation2 + $0xa0] sm:$0xff]
          %v1049 = vld [vmem:[#allocation2 + $0xa8] sm:$0xff]
          %v1050 = vld [vmem:[#allocation2 + $0xb0] sm:$0xff]
          %v1051 = vld [vmem:[#allocation2 + $0xb8] sm:$0xff]
          %v1052 = vld [vmem:[#allocation2 + $0xc0] sm:$0xff]
          %v1053 = vld [vmem:[#allocation2 + $0xc8] sm:$0xff]
          %v1054 = vld [vmem:[#allocation2 + $0xd0] sm:$0xff]
          %v1055 = vld [vmem:[#allocation2 + $0xd8] sm:$0xff]
          %v1056 = vld [vmem:[#allocation2 + $0xe0] sm:$0xff]
          %v1057 = vld [vmem:[#allocation2 + $0xe8] sm:$0xff]
          %v1058 = vld [vmem:[#allocation2 + $0xf0] sm:$0xff]
          %v1059 = vld [vmem:[#allocation2 + $0xf8] sm:$0xff]
          %v1060 = vld [vmem:[%s4] sm:$0xff]
          %v1061 = vld [vmem:[%s4 + $0x8] sm:$0xff]
          %v1062 = vld [vmem:[%s4 + $0x10] sm:$0xff]
          %v1063 = vld [vmem:[%s4 + $0x18] sm:$0xff]
          %v1064 = vld [vmem:[%s4 + $0x20] sm:$0xff]
          %v1065 = vld [vmem:[%s4 + $0x28] sm:$0xff]
          %v1066 = vld [vmem:[%s4 + $0x30] sm:$0xff]
          %v1067 = vld [vmem:[%s4 + $0x38] sm:$0xff]
          %v1068 = vld [vmem:[%s4 + $0x40] sm:$0xff]
          %v1069 = vld [vmem:[%s4 + $0x48] sm:$0xff]
          %v1070 = vld [vmem:[%s4 + $0x50] sm:$0xff]
          %v1071 = vld [vmem:[%s4 + $0x58] sm:$0xff]
          %v1072 = vld [vmem:[%s4 + $0x60] sm:$0xff]
          %v1073 = vld [vmem:[%s4 + $0x68] sm:$0xff]
          %v1074 = vld [vmem:[%s4 + $0x70] sm:$0xff]
          %v1075 = vld [vmem:[%s4 + $0x78] sm:$0xff]
          %v1076 = vld [vmem:[%s4 + $0x80] sm:$0xff]
          %v1077 = vld [vmem:[%s4 + $0x88] sm:$0xff]
          %v1078 = vld [vmem:[%s4 + $0x90] sm:$0xff]
          %v1079 = vld [vmem:[%s4 + $0x98] sm:$0xff]
          %v1080 = vld [vmem:[%s4 + $0xa0] sm:$0xff]
          %v1081 = vld [vmem:[%s4 + $0xa8] sm:$0xff]
          %v1082 = vld [vmem:[%s4 + $0xb0] sm:$0xff]
          %v1083 = vld [vmem:[%s4 + $0xb8] sm:$0xff]
          %v1084 = vld [vmem:[%s4 + $0xc0] sm:$0xff]
          %v1085 = vld [vmem:[%s4 + $0xc8] sm:$0xff]
          %v1086 = vld [vmem:[%s4 + $0xd0] sm:$0xff]
          %v1087 = vld [vmem:[%s4 + $0xd8] sm:$0xff]
          %v1088 = vld [vmem:[%s4 + $0xe0] sm:$0xff]
          %v1089 = vld [vmem:[%s4 + $0xe8] sm:$0xff]
          %v1090 = vld [vmem:[%s4 + $0xf0] sm:$0xff]
          %v1091 = vld [vmem:[%s4 + $0xf8] sm:$0xff]
          %v1092 = vmul.f32 %v1028, %v1060
          %v1093 = vmul.f32 %v1029, %v1061
          %v1094 = vmul.f32 %v1030, %v1062
          %v1095 = vmul.f32 %v1031, %v1063
          %v1096 = vmul.f32 %v1032, %v1064
          %v1097 = vmul.f32 %v1033, %v1065
          %v1098 = vmul.f32 %v1034, %v1066
          %v1099 = vmul.f32 %v1035, %v1067
          %v1100 = vmul.f32 %v1036, %v1068
          %v1101 = vmul.f32 %v1037, %v1069
          %v1102 = vmul.f32 %v1038, %v1070
          %v1103 = vmul.f32 %v1039, %v1071
          %v1104 = vmul.f32 %v1040, %v1072
          %v1105 = vmul.f32 %v1041, %v1073
          %v1106 = vmul.f32 %v1042, %v1074
          %v1107 = vmul.f32 %v1043, %v1075
          %v1108 = vmul.f32 %v1044, %v1076
          %v1109 = vmul.f32 %v1045, %v1077
          %v1110 = vmul.f32 %v1046, %v1078
          %v1111 = vmul.f32 %v1047, %v1079
          %v1112 = vmul.f32 %v1048, %v1080
          %v1113 = vmul.f32 %v1049, %v1081
          %v1114 = vmul.f32 %v1050, %v1082
          %v1115 = vmul.f32 %v1051, %v1083
          %v1116 = vmul.f32 %v1052, %v1084
          %v1117 = vmul.f32 %v1053, %v1085
          %v1118 = vmul.f32 %v1054, %v1086
          %v1119 = vmul.f32 %v1055, %v1087
          %v1120 = vmul.f32 %v1056, %v1088
          %v1121 = vmul.f32 %v1057, %v1089
          %v1122 = vmul.f32 %v1058, %v1090
          %v1123 = vmul.f32 %v1059, %v1091
          %vm1124 = vcmask 523264
          %1125 = vst.msk [vmem:[#allocation2] sm:$0xff] %vm1124, %v1092
          %1126 = vst.msk [vmem:[#allocation2 + $0x8] sm:$0xff] %vm1124, %v1093
          %1127 = vst.msk [vmem:[#allocation2 + $0x10] sm:$0xff] %vm1124, %v1094
          %1128 = vst.msk [vmem:[#allocation2 + $0x18] sm:$0xff] %vm1124, %v1095
          %1129 = vst.msk [vmem:[#allocation2 + $0x20] sm:$0xff] %vm1124, %v1096
          %1130 = vst.msk [vmem:[#allocation2 + $0x28] sm:$0xff] %vm1124, %v1097
          %1131 = vst.msk [vmem:[#allocation2 + $0x30] sm:$0xff] %vm1124, %v1098
          %1132 = vst.msk [vmem:[#allocation2 + $0x38] sm:$0xff] %vm1124, %v1099
          %1133 = vst.msk [vmem:[#allocation2 + $0x40] sm:$0xff] %vm1124, %v1100
          %1134 = vst.msk [vmem:[#allocation2 + $0x48] sm:$0xff] %vm1124, %v1101
          %1135 = vst.msk [vmem:[#allocation2 + $0x50] sm:$0xff] %vm1124, %v1102
          %1136 = vst.msk [vmem:[#allocation2 + $0x58] sm:$0xff] %vm1124, %v1103
          %1137 = vst.msk [vmem:[#allocation2 + $0x60] sm:$0xff] %vm1124, %v1104
          %1138 = vst.msk [vmem:[#allocation2 + $0x68] sm:$0xff] %vm1124, %v1105
          %1139 = vst.msk [vmem:[#allocation2 + $0x70] sm:$0xff] %vm1124, %v1106
          %1140 = vst.msk [vmem:[#allocation2 + $0x78] sm:$0xff] %vm1124, %v1107
          %1141 = vst.msk [vmem:[#allocation2 + $0x80] sm:$0xff] %vm1124, %v1108
          %1142 = vst.msk [vmem:[#allocation2 + $0x88] sm:$0xff] %vm1124, %v1109
          %1143 = vst.msk [vmem:[#allocation2 + $0x90] sm:$0xff] %vm1124, %v1110
          %1144 = vst.msk [vmem:[#allocation2 + $0x98] sm:$0xff] %vm1124, %v1111
          %1145 = vst.msk [vmem:[#allocation2 + $0xa0] sm:$0xff] %vm1124, %v1112
          %1146 = vst.msk [vmem:[#allocation2 + $0xa8] sm:$0xff] %vm1124, %v1113
          %1147 = vst.msk [vmem:[#allocation2 + $0xb0] sm:$0xff] %vm1124, %v1114
          %1148 = vst.msk [vmem:[#allocation2 + $0xb8] sm:$0xff] %vm1124, %v1115
          %1149 = vst.msk [vmem:[#allocation2 + $0xc0] sm:$0xff] %vm1124, %v1116
          %1150 = vst.msk [vmem:[#allocation2 + $0xc8] sm:$0xff] %vm1124, %v1117
          %1151 = vst.msk [vmem:[#allocation2 + $0xd0] sm:$0xff] %vm1124, %v1118
          %1152 = vst.msk [vmem:[#allocation2 + $0xd8] sm:$0xff] %vm1124, %v1119
          %1153 = vst.msk [vmem:[#allocation2 + $0xe0] sm:$0xff] %vm1124, %v1120
          %1154 = vst.msk [vmem:[#allocation2 + $0xe8] sm:$0xff] %vm1124, %v1121
          %1155 = vst.msk [vmem:[#allocation2 + $0xf0] sm:$0xff] %vm1124, %v1122
          %1156 = vst.msk [vmem:[#allocation2 + $0xf8] sm:$0xff] %vm1124, %v1123
        $region60: #{tpu_custom_call.1} parent=47 // pred_fallthru
          _
        %p1157 = scmp.eq.s32.totalorder %s27, 1
        // Predicated region
        $region61: #{tpu_custom_call.1} parent=47 // pred_check
          %p1158 = pneg %p1157
        $region62: #{tpu_custom_call.1} parent=47 // pred_check_branch
          %1160 = sbr.rel (%p1158) target = $region64
        $region63: #{tpu_custom_call.1} parent=47 // pred_region
          %v1161 = vld [vmem:[%s307] sm:$0xff]
          %v1162 = vld [vmem:[%s1] sm:$0xff]
          %v1163 = vld [vmem:[%s1 + $0x8] sm:$0xff]
          %v1164 = vld [vmem:[%s1 + $0x10] sm:$0xff]
          %v1165 = vld [vmem:[%s1 + $0x18] sm:$0xff]
          %v1166 = vld [vmem:[%s2] sm:$0x1]
          %v1168 = vlaneseq
          %v1169 = vshrl.u32 %v1168, 7
          %v1170 = vsub.s32 0, %v1169
          %v1171 = vrot.slane %v1166, %v1170
          %vm1173 = vcmask 261120
          %v1175 = vsel %vm1173, %v1161, 0
          %1177 = vmatprep.subr.mxu0 0.0
          %1178 = vmatpush1.msra.mxu0 %v1162
          %1179 = vmatprep.subr.mxu0 0.0
          %1180 = vmatpush1.msra.mxu0 %v1163
          %1181 = vmatprep.subr.mxu0 0.0
          %1182 = vmatpush1.msra.mxu0 %v1164
          %1183 = vmatprep.subr.mxu0 0.0
          %1184 = vmatpush1.msra.mxu0 %v1165
          %1185 = vmatprep.subr.mxu0 0.0
          %1186 = vmatpush1.msra.mxu0 0.0
          %1187 = vmatprep.subr.mxu0 0.0
          %1188 = vmatpush1.msra.mxu0 0.0
          %1189 = vmatprep.subr.mxu0 0.0
          %1190 = vmatpush1.msra.mxu0 0.0
          %1191 = vmatprep.subr.mxu0 0.0
          %1192 = vmatpush1.msra.mxu0 0.0
          %1193 = vmatprep.subr.mxu0 0.0
          %1194 = vmatpush1.msra.mxu0 0.0
          %1195 = vmatprep.subr.mxu0 0.0
          %1196 = vmatpush1.msra.mxu0 0.0
          %1197 = vmatprep.subr.mxu0 0.0
          %1198 = vmatpush1.msra.mxu0 0.0
          %1199 = vmatprep.subr.mxu0 0.0
          %1200 = vmatpush1.msra.mxu0 0.0
          %1201 = vmatprep.subr.mxu0 0.0
          %1202 = vmatpush1.msra.mxu0 0.0
          %1203 = vmatprep.subr.mxu0 0.0
          %1204 = vmatpush1.msra.mxu0 0.0
          %1205 = vmatprep.subr.mxu0 0.0
          %1206 = vmatpush1.msra.mxu0 0.0
          %1207 = vmatprep.subr.mxu0 0.0
          %1208 = vmatpush1.msra.mxu0 0.0
          %1209 = vmatprep.subr.mxu0 0.0
          %1210 = vmatpush1.msra.mxu0 0.0
          %1211 = vmatprep.subr.mxu0 0.0
          %1212 = vmatpush1.msra.mxu0 0.0
          %1213 = vmatprep.subr.mxu0 0.0
          %1214 = vmatpush1.msra.mxu0 0.0
          %1215 = vmatprep.subr.mxu0 0.0
          %1216 = vmatpush1.msra.mxu0 0.0
          %1217 = vmatprep.subr.mxu0 0.0
          %1218 = vmatpush1.msra.mxu0 0.0
          %1219 = vmatprep.subr.mxu0 0.0
          %1220 = vmatpush1.msra.mxu0 0.0
          %1221 = vmatprep.subr.mxu0 0.0
          %1222 = vmatpush1.msra.mxu0 0.0
          %1223 = vmatprep.subr.mxu0 0.0
          %1224 = vmatpush1.msra.mxu0 0.0
          %1225 = vmatprep.subr.mxu0 0.0
          %1226 = vmatpush1.msra.mxu0 0.0
          %1227 = vmatprep.subr.mxu0 0.0
          %1228 = vmatpush1.msra.mxu0 0.0
          %1229 = vmatprep.subr.mxu0 0.0
          %1230 = vmatpush1.msra.mxu0 0.0
          %1231 = vmatprep.subr.mxu0 0.0
          %1232 = vmatpush1.msra.mxu0 0.0
          %1233 = vmatprep.subr.mxu0 0.0
          %1234 = vmatpush1.msra.mxu0 0.0
          %1235 = vmatprep.subr.mxu0 0.0
          %1236 = vmatpush1.msra.mxu0 0.0
          %1237 = vmatprep.subr.mxu0 0.0
          %1238 = vmatpush1.msra.mxu0 0.0
          %1239 = vmatprep.subr.mxu0 0.0
          %1240 = vmatpush1.msra.mxu0 0.0
          %1241 = vmatprep.mubr.f32.mxu0 0.0
          %1242 = vmatmul.mubr.f32.gmra.mrb[0].mxu0 %v1175
          %v1243 = vpop.f32.mrb[0].mxu0
          %v1244 = vadd.f32 %v1171, %v1243
          %v1245 = vpop.f32.mrb[0].mxu0
          %1246 = vdwg.mxu0
          %v1247 = vld [vmem:[%s3] sm:$0xff]
          %v1248 = vld [vmem:[%s3 + $0x8] sm:$0xff]
          %v1249 = vld [vmem:[%s3 + $0x10] sm:$0xff]
          %v1250 = vld [vmem:[%s3 + $0x18] sm:$0xff]
          %v1251 = vld [vmem:[%s3 + $0x20] sm:$0xff]
          %v1252 = vld [vmem:[%s3 + $0x28] sm:$0xff]
          %v1253 = vld [vmem:[%s3 + $0x30] sm:$0xff]
          %v1254 = vld [vmem:[%s3 + $0x38] sm:$0xff]
          %v1256 = vsel %vm1173, %v1244, 0
          %1258 = vmatprep.subr.mxu0 %v1248
          %1259 = vmatpush1.msra.mxu0 %v1247
          %1260 = vmatprep.subr.mxu0 %v1250
          %1261 = vmatpush1.msra.mxu0 %v1249
          %1262 = vmatprep.subr.mxu0 %v1252
          %1263 = vmatpush1.msra.mxu0 %v1251
          %1264 = vmatprep.subr.mxu0 %v1254
          %1265 = vmatpush1.msra.mxu0 %v1253
          %1266 = vmatprep.subr.mxu0 0.0
          %1267 = vmatpush1.msra.mxu0 0.0
          %1268 = vmatprep.subr.mxu0 0.0
          %1269 = vmatpush1.msra.mxu0 0.0
          %1270 = vmatprep.subr.mxu0 0.0
          %1271 = vmatpush1.msra.mxu0 0.0
          %1272 = vmatprep.subr.mxu0 0.0
          %1273 = vmatpush1.msra.mxu0 0.0
          %1274 = vmatprep.subr.mxu0 0.0
          %1275 = vmatpush1.msra.mxu0 0.0
          %1276 = vmatprep.subr.mxu0 0.0
          %1277 = vmatpush1.msra.mxu0 0.0
          %1278 = vmatprep.subr.mxu0 0.0
          %1279 = vmatpush1.msra.mxu0 0.0
          %1280 = vmatprep.subr.mxu0 0.0
          %1281 = vmatpush1.msra.mxu0 0.0
          %1282 = vmatprep.subr.mxu0 0.0
          %1283 = vmatpush1.msra.mxu0 0.0
          %1284 = vmatprep.subr.mxu0 0.0
          %1285 = vmatpush1.msra.mxu0 0.0
          %1286 = vmatprep.subr.mxu0 0.0
          %1287 = vmatpush1.msra.mxu0 0.0
          %1288 = vmatprep.subr.mxu0 0.0
          %1289 = vmatpush1.msra.mxu0 0.0
          %1290 = vmatprep.subr.mxu0 0.0
          %1291 = vmatpush1.msra.mxu0 0.0
          %1292 = vmatprep.subr.mxu0 0.0
          %1293 = vmatpush1.msra.mxu0 0.0
          %1294 = vmatprep.subr.mxu0 0.0
          %1295 = vmatpush1.msra.mxu0 0.0
          %1296 = vmatprep.subr.mxu0 0.0
          %1297 = vmatpush1.msra.mxu0 0.0
          %1298 = vmatprep.subr.mxu0 0.0
          %1299 = vmatpush1.msra.mxu0 0.0
          %1300 = vmatprep.subr.mxu0 0.0
          %1301 = vmatpush1.msra.mxu0 0.0
          %1302 = vmatprep.subr.mxu0 0.0
          %1303 = vmatpush1.msra.mxu0 0.0
          %1304 = vmatprep.subr.mxu0 0.0
          %1305 = vmatpush1.msra.mxu0 0.0
          %1306 = vmatprep.subr.mxu0 0.0
          %1307 = vmatpush1.msra.mxu0 0.0
          %1308 = vmatprep.subr.mxu0 0.0
          %1309 = vmatpush1.msra.mxu0 0.0
          %1310 = vmatprep.subr.mxu0 0.0
          %1311 = vmatpush1.msra.mxu0 0.0
          %1312 = vmatprep.subr.mxu0 0.0
          %1313 = vmatpush1.msra.mxu0 0.0
          %1314 = vmatprep.subr.mxu0 0.0
          %1315 = vmatpush1.msra.mxu0 0.0
          %1316 = vmatprep.subr.mxu0 0.0
          %1317 = vmatpush1.msra.mxu0 0.0
          %1318 = vmatprep.subr.mxu0 0.0
          %1319 = vmatpush1.msra.mxu0 0.0
          %1320 = vmatprep.subr.mxu0 0.0
          %1321 = vmatpush1.msra.mxu0 0.0
          %1322 = vmatprep.mubr.f32.mxu0 0.0
          %1323 = vmatmul.mubr.f32.gmra.mrb[0].mxu0 %v1256
          %v1324 = vpop.f32.mrb[0].mxu0
          %v1325 = vadd.f32 0.0, %v1324
          %v1326 = vpop.f32.mrb[0].mxu0
          %v1327 = vadd.f32 0.0, %v1326
          %1328 = vdwg.mxu0
          %v1329 = vmax.f32 %v1325, 0.0
          %v1330 = vmax.f32 %v1327, 0.0
          %v1331 = vld [vmem:[#allocation2] sm:$0xff]
          %v1332 = vld [vmem:[#allocation2 + $0x8] sm:$0xff]
          %v1333 = vld [vmem:[#allocation2 + $0x10] sm:$0xff]
          %v1334 = vld [vmem:[#allocation2 + $0x18] sm:$0xff]
          %v1335 = vld [vmem:[#allocation2 + $0x20] sm:$0xff]
          %v1336 = vld [vmem:[#allocation2 + $0x28] sm:$0xff]
          %v1337 = vld [vmem:[#allocation2 + $0x30] sm:$0xff]
          %v1338 = vld [vmem:[#allocation2 + $0x38] sm:$0xff]
          %v1339 = vld [vmem:[#allocation2 + $0x40] sm:$0xff]
          %v1340 = vld [vmem:[#allocation2 + $0x48] sm:$0xff]
          %v1341 = vld [vmem:[#allocation2 + $0x50] sm:$0xff]
          %v1342 = vld [vmem:[#allocation2 + $0x58] sm:$0xff]
          %v1343 = vld [vmem:[#allocation2 + $0x60] sm:$0xff]
          %v1344 = vld [vmem:[#allocation2 + $0x68] sm:$0xff]
          %v1345 = vld [vmem:[#allocation2 + $0x70] sm:$0xff]
          %v1346 = vld [vmem:[#allocation2 + $0x78] sm:$0xff]
          %v1347 = vld [vmem:[#allocation2 + $0x80] sm:$0xff]
          %v1348 = vld [vmem:[#allocation2 + $0x88] sm:$0xff]
          %v1349 = vld [vmem:[#allocation2 + $0x90] sm:$0xff]
          %v1350 = vld [vmem:[#allocation2 + $0x98] sm:$0xff]
          %v1351 = vld [vmem:[#allocation2 + $0xa0] sm:$0xff]
          %v1352 = vld [vmem:[#allocation2 + $0xa8] sm:$0xff]
          %v1353 = vld [vmem:[#allocation2 + $0xb0] sm:$0xff]
          %v1354 = vld [vmem:[#allocation2 + $0xb8] sm:$0xff]
          %v1355 = vld [vmem:[#allocation2 + $0xc0] sm:$0xff]
          %v1356 = vld [vmem:[#allocation2 + $0xc8] sm:$0xff]
          %v1357 = vld [vmem:[#allocation2 + $0xd0] sm:$0xff]
          %v1358 = vld [vmem:[#allocation2 + $0xd8] sm:$0xff]
          %v1359 = vld [vmem:[#allocation2 + $0xe0] sm:$0xff]
          %v1360 = vld [vmem:[#allocation2 + $0xe8] sm:$0xff]
          %v1361 = vld [vmem:[#allocation2 + $0xf0] sm:$0xff]
          %v1362 = vld [vmem:[#allocation2 + $0xf8] sm:$0xff]
          %1363 = vmatprep.subr.mxu0 0.0
          %1364 = vmatpush1.msra.mxu0 %v1331
          %1365 = vmatprep.subr.mxu0 0.0
          %1366 = vmatpush1.msra.mxu0 %v1332
          %1367 = vmatprep.subr.mxu0 0.0
          %1368 = vmatpush1.msra.mxu0 %v1333
          %1369 = vmatprep.subr.mxu0 0.0
          %1370 = vmatpush1.msra.mxu0 %v1334
          %1371 = vmatprep.subr.mxu0 0.0
          %1372 = vmatpush1.msra.mxu0 %v1335
          %1373 = vmatprep.subr.mxu0 0.0
          %1374 = vmatpush1.msra.mxu0 %v1336
          %1375 = vmatprep.subr.mxu0 0.0
          %1376 = vmatpush1.msra.mxu0 %v1337
          %1377 = vmatprep.subr.mxu0 0.0
          %1378 = vmatpush1.msra.mxu0 %v1338
          %1379 = vmatprep.subr.mxu0 0.0
          %1380 = vmatpush1.msra.mxu0 %v1339
          %1381 = vmatprep.subr.mxu0 0.0
          %1382 = vmatpush1.msra.mxu0 %v1340
          %1383 = vmatprep.subr.mxu0 0.0
          %1384 = vmatpush1.msra.mxu0 %v1341
          %1385 = vmatprep.subr.mxu0 0.0
          %1386 = vmatpush1.msra.mxu0 %v1342
          %1387 = vmatprep.subr.mxu0 0.0
          %1388 = vmatpush1.msra.mxu0 %v1343
          %1389 = vmatprep.subr.mxu0 0.0
          %1390 = vmatpush1.msra.mxu0 %v1344
          %1391 = vmatprep.subr.mxu0 0.0
          %1392 = vmatpush1.msra.mxu0 %v1345
          %1393 = vmatprep.subr.mxu0 0.0
          %1394 = vmatpush1.msra.mxu0 %v1346
          %1395 = vmatprep.subr.mxu0 0.0
          %1396 = vmatpush1.msra.mxu0 %v1347
          %1397 = vmatprep.subr.mxu0 0.0
          %1398 = vmatpush1.msra.mxu0 %v1348
          %1399 = vmatprep.subr.mxu0 0.0
          %1400 = vmatpush1.msra.mxu0 %v1349
          %1401 = vmatprep.subr.mxu0 0.0
          %1402 = vmatpush1.msra.mxu0 %v1350
          %1403 = vmatprep.subr.mxu0 0.0
          %1404 = vmatpush1.msra.mxu0 %v1351
          %1405 = vmatprep.subr.mxu0 0.0
          %1406 = vmatpush1.msra.mxu0 %v1352
          %1407 = vmatprep.subr.mxu0 0.0
          %1408 = vmatpush1.msra.mxu0 %v1353
          %1409 = vmatprep.subr.mxu0 0.0
          %1410 = vmatpush1.msra.mxu0 %v1354
          %1411 = vmatprep.subr.mxu0 0.0
          %1412 = vmatpush1.msra.mxu0 %v1355
          %1413 = vmatprep.subr.mxu0 0.0
          %1414 = vmatpush1.msra.mxu0 %v1356
          %1415 = vmatprep.subr.mxu0 0.0
          %1416 = vmatpush1.msra.mxu0 %v1357
          %1417 = vmatprep.subr.mxu0 0.0
          %1418 = vmatpush1.msra.mxu0 %v1358
          %1419 = vmatprep.subr.mxu0 0.0
          %1420 = vmatpush1.msra.mxu0 %v1359
          %1421 = vmatprep.subr.mxu0 0.0
          %1422 = vmatpush1.msra.mxu0 %v1360
          %1423 = vmatprep.subr.mxu0 0.0
          %1424 = vmatpush1.msra.mxu0 %v1361
          %1425 = vmatprep.subr.mxu0 0.0
          %1426 = vmatpush1.msra.mxu0 %v1362
          %1427 = vmatprep.mubr.f32.mxu0 %v1330
          %1428 = vmatmul.mubr.f32.gmra.mrb[0].mxu0 %v1329
          %v1429 = vpop.f32.mrb[0].mxu0
          %v1430 = vadd.f32 0.0, %v1429
          %v1431 = vpop.f32.mrb[0].mxu0
          %1432 = vdwg.mxu0
          %v1433 = vadd.f32 %v1430, 1e-06
          %v1434 = vrcp.pop %v1433
          %1436 = vrot.lane.b32.xlu0 %v1434, 96
          %v1437 = vpop.permute.xlu0 %1436
          %v1439 = vmul.f32 %v1430, %v1437
          %v1440 = vld [vmem:[%s5] sm:$0xff]
          %v1441 = vld [vmem:[%s5 + $0x8] sm:$0xff]
          %v1442 = vld [vmem:[%s5 + $0x10] sm:$0xff]
          %v1443 = vld [vmem:[%s5 + $0x18] sm:$0xff]
          %v1444 = vld [vmem:[%s6] sm:$0x1]
          %v1446 = vlaneseq
          %v1447 = vshrl.u32 %v1446, 7
          %v1448 = vsub.s32 0, %v1447
          %v1449 = vrot.slane %v1444, %v1448
          %v1452 = vsel %vm1173, %v1439, 0
          %1454 = vmatprep.subr.mxu0 0.0
          %1455 = vmatpush1.msra.mxu0 %v1440
          %1456 = vmatprep.subr.mxu0 0.0
          %1457 = vmatpush1.msra.mxu0 %v1441
          %1458 = vmatprep.subr.mxu0 0.0
          %1459 = vmatpush1.msra.mxu0 %v1442
          %1460 = vmatprep.subr.mxu0 0.0
          %1461 = vmatpush1.msra.mxu0 %v1443
          %1462 = vmatprep.subr.mxu0 0.0
          %1463 = vmatpush1.msra.mxu0 0.0
          %1464 = vmatprep.subr.mxu0 0.0
          %1465 = vmatpush1.msra.mxu0 0.0
          %1466 = vmatprep.subr.mxu0 0.0
          %1467 = vmatpush1.msra.mxu0 0.0
          %1468 = vmatprep.subr.mxu0 0.0
          %1469 = vmatpush1.msra.mxu0 0.0
          %1470 = vmatprep.subr.mxu0 0.0
          %1471 = vmatpush1.msra.mxu0 0.0
          %1472 = vmatprep.subr.mxu0 0.0
          %1473 = vmatpush1.msra.mxu0 0.0
          %1474 = vmatprep.subr.mxu0 0.0
          %1475 = vmatpush1.msra.mxu0 0.0
          %1476 = vmatprep.subr.mxu0 0.0
          %1477 = vmatpush1.msra.mxu0 0.0
          %1478 = vmatprep.subr.mxu0 0.0
          %1479 = vmatpush1.msra.mxu0 0.0
          %1480 = vmatprep.subr.mxu0 0.0
          %1481 = vmatpush1.msra.mxu0 0.0
          %1482 = vmatprep.subr.mxu0 0.0
          %1483 = vmatpush1.msra.mxu0 0.0
          %1484 = vmatprep.subr.mxu0 0.0
          %1485 = vmatpush1.msra.mxu0 0.0
          %1486 = vmatprep.subr.mxu0 0.0
          %1487 = vmatpush1.msra.mxu0 0.0
          %1488 = vmatprep.subr.mxu0 0.0
          %1489 = vmatpush1.msra.mxu0 0.0
          %1490 = vmatprep.subr.mxu0 0.0
          %1491 = vmatpush1.msra.mxu0 0.0
          %1492 = vmatprep.subr.mxu0 0.0
          %1493 = vmatpush1.msra.mxu0 0.0
          %1494 = vmatprep.subr.mxu0 0.0
          %1495 = vmatpush1.msra.mxu0 0.0
          %1496 = vmatprep.subr.mxu0 0.0
          %1497 = vmatpush1.msra.mxu0 0.0
          %1498 = vmatprep.subr.mxu0 0.0
          %1499 = vmatpush1.msra.mxu0 0.0
          %1500 = vmatprep.subr.mxu0 0.0
          %1501 = vmatpush1.msra.mxu0 0.0
          %1502 = vmatprep.subr.mxu0 0.0
          %1503 = vmatpush1.msra.mxu0 0.0
          %1504 = vmatprep.subr.mxu0 0.0
          %1505 = vmatpush1.msra.mxu0 0.0
          %1506 = vmatprep.subr.mxu0 0.0
          %1507 = vmatpush1.msra.mxu0 0.0
          %1508 = vmatprep.subr.mxu0 0.0
          %1509 = vmatpush1.msra.mxu0 0.0
          %1510 = vmatprep.subr.mxu0 0.0
          %1511 = vmatpush1.msra.mxu0 0.0
          %1512 = vmatprep.subr.mxu0 0.0
          %1513 = vmatpush1.msra.mxu0 0.0
          %1514 = vmatprep.subr.mxu0 0.0
          %1515 = vmatpush1.msra.mxu0 0.0
          %1516 = vmatprep.subr.mxu0 0.0
          %1517 = vmatpush1.msra.mxu0 0.0
          %1518 = vmatprep.mubr.f32.mxu0 0.0
          %1519 = vmatmul.mubr.f32.gmra.mrb[0].mxu0 %v1452
          %v1520 = vpop.f32.mrb[0].mxu0
          %v1521 = vadd.f32 %v1449, %v1520
          %v1522 = vpop.f32.mrb[0].mxu0
          %1523 = vdwg.mxu0
          %1524 = vst.msk [vmem:[%s300] sm:$0xff] %vm1173, %v1521
        $region64: #{tpu_custom_call.1} parent=47 // pred_fallthru
          _
        %s1525 = sand.u32 %s206, 1
        %s1526 = scalar_lea.sflag [#allocation4], %s1525
        %s1527 = sand.u32 %s206, 1
        %s1528 = smul.addr %s1527, 8
        %s1529 = scalar_lea.vmem [#allocation3], %s1528
        // Predicated region
        $region65: #{tpu_custom_call.1} parent=47 // pred_check
          %p1530 = pneg %p216
        $region66: #{tpu_custom_call.1} parent=47 // pred_check_branch
          %1532 = sbr.rel (%p1530) target = $region68
        $region67: #{tpu_custom_call.1} parent=47 // pred_region
          %s1533 = smul.u32 %s27, %s28
          %s1535 = ssub.s32 128, 128
          %1536 = vsyncadd %s1526, %s1535
          %s1537 = sadd.s32 %s1533, %s26
          %s1538 = smul.addr %s1537, 128
          %s1539 = scalar_lea.hbm %s7, %s1538
          %s1541 = sshll.u32 %s1529, 4
          %s1542 = int_to_ptr.vmem [resolvable:$true] %s1541
          %1544 = dma.vmem_to_hbm [thread:$0]  %s1542, 128, %s1539, %s1526
        $region68: #{tpu_custom_call.1} parent=47 // pred_fallthru
          _
      $region48: #{tpu_custom_call.1} parent=5 // pred_fallthru
        _
      %p1545 = scmp.le.s32.totalorder 2, %s16
      // Predicated region
      $region69: #{tpu_custom_call.1} parent=5 // pred_check
        %p1546 = pneg %p1545
      $region70: #{tpu_custom_call.1} parent=5 // pred_check_branch
        %1548 = sbr.rel (%p1546) target = $region72
      $region71: #{tpu_custom_call.1} parent=5 // pred_region
        %s1549 = ssub.s32 %s16, 2
        // Predicated region
        $region73: #{tpu_custom_call.1} parent=71 // pred_check
          %p1550 = pneg %p222
        $region74: #{tpu_custom_call.1} parent=71 // pred_check_branch
          %1552 = sbr.rel (%p1550) target = $region76
        $region75: #{tpu_custom_call.1} parent=71 // pred_region
          %s1553 = sand.u32 %s207, 1
          %s1554 = scalar_lea.sflag [#allocation4], %s1553
          %s1555 = sand.u32 %s207, 1
          %s1556 = smul.addr %s1555, 8
          %s1557 = scalar_lea.vmem [#allocation3], %s1556
          %1558 = dma.done %s1554, 128
        $region76: #{tpu_custom_call.1} parent=71 // pred_fallthru
          _
      $region72: #{tpu_custom_call.1} parent=5 // pred_fallthru
        _
    $region6: #{tpu_custom_call.1} parent=1 // loop_footer
      %s20 = sadd.s32 1, %s16
    $region7: #{tpu_custom_call.1} parent=1 // loop_footer_branch
      %15 = sbr.rel target = $region3
    $region8: #{tpu_custom_call.1} parent=1 // loop_exit
      _
    %1559 = vsyncpa [#allocation4], 1
    %s1560 = scalar_lea.sflag [#allocation4], 1
    %1561 = vsyncpa %s1560, 1

</llo_original>
